<compile_context>
chip_gen: v6e
topology: v6e:2x2x1
jax: 0.10.0
libtpu: 0.0.40
codegen_flags: <defaults>
</compile_context>

<pallas_src>
import jax
import jax.numpy as jnp
from jax.experimental import pallas as pl
from jax.experimental.pallas import tpu as pltpu

V = 21128   # vocab size (nn.Embedding num_embeddings)
E = 128     # embedding dim
H = 128     # GRU hidden size


def bigru_fc_kernel(ids_ref, emb_hbm,
                    wif_ref, wifb_ref, whf_ref,
                    bgi_f_ref, bgi_fb_ref, bhn_f_ref, bhn_b_ref,
                    wfcf_ref, wfcb_ref, bfc_ref,
                    out_ref,
                    x_vmem, gather_sem):
    B, T = ids_ref.shape
    B_pad = x_vmem.shape[0] // T        # sublane-padded batch (multiple of 8)

    # Deterministic pad rows (they stay row-isolated through every later op,
    # but keep them finite).  Must happen before any DMA into x_vmem starts.
    x_vmem[...] = jnp.zeros_like(x_vmem)

    # ---- 1) Fused nn.Embedding gather (+ implicit (B,T,E)->(T,B,E) transpose)
    # One row DMA per real token from the HBM table into a time-major,
    # batch-padded (T*B_pad, E) VMEM scratch.  The t = T-1 rows are issued
    # first and tracked on gather_sem[0] so their wait (and the backward-
    # direction compute) proceeds while the remaining rows (gather_sem[1]) are
    # still in flight.  All ids are read from SMEM before the first wait.
    def issue(t, b, sem_idx):
        cp = pltpu.make_async_copy(
            emb_hbm.at[pl.ds(ids_ref[b, t], 1), :],
            x_vmem.at[pl.ds(t * B_pad + b, 1), :],
            gather_sem.at[sem_idx])
        cp.start()
        return cp

    last_copies = [issue(T - 1, b, 0) for b in range(B)]
    rest_copies = [issue(t, b, 1) for t in range(T - 1) for b in range(B)]
    # TODO(synk): for production-sized B*T, replace the unrolled issue/wait
    # lists with a pl.loop over rows and gather from a bf16 copy of the table
    # (halves DMA bytes and scratch); at T*B = 16 the unrolled f32 form is
    # fine and avoids packed sub-row DMA corner cases.

    for cp in last_copies:
        cp.wait()

    # ---- 2a) Last-timestep input projection for BOTH directions fused into a
    # single (B_pad, E) @ (E, 6H) MXU matmul, computed while the other T-1
    # timesteps' DMAs are still landing.
    x_last = x_vmem[(T - 1) * B_pad:, :].astype(jnp.bfloat16)     # (B_pad, E)
    gi_last = (jnp.dot(x_last, wifb_ref[...],
                       preferred_element_type=jnp.float32)
               + bgi_fb_ref[...])                                 # (B_pad, 6H)
    gi_f_last = gi_last[:, :3 * H]                                # forward, t = T-1
    gi_b = gi_last[:, 3 * H:]                                     # backward

    # Backward direction: the bi-GRU output read by x[:, -1, :] is a single
    # reversed-GRU step from h0 = 0, so gh_b == b_hh_b (r/z parts folded into
    # the gi bias in the wrapper) and no h @ w_hh_b matmul is needed.
    r_b = jax.nn.sigmoid(gi_b[:, 0:H])
    z_b = jax.nn.sigmoid(gi_b[:, H:2 * H])
    n_b = jnp.tanh(gi_b[:, 2 * H:] + r_b * bhn_b_ref[...])
    h_b = (1.0 - z_b) * n_b                       # + z_b * h0 with h0 = 0

    for cp in rest_copies:
        cp.wait()

    # ---- 2b) Forward input projection for timesteps 0..T-2 hoisted out of
    # the recurrence: one batched ((T-1)*B_pad, E) @ (E, 3H) MXU matmul.
    x_first = x_vmem[:(T - 1) * B_pad, :].astype(jnp.bfloat16)
    gi_first = (jnp.dot(x_first, wif_ref[...],
                        preferred_element_type=jnp.float32)
                + bgi_f_ref[...])                                 # ((T-1)*B_pad, 3H)

    # ---- 3) Forward recurrence: only the h-dependent matmul is serial; every
    # slice is a full 8-sublane / 128-lane-aligned tile.  T is small and
    # static -> full unroll.
    # TODO(synk): keep w_hh resident in MXU staging registers across the T
    # dependent steps (pltpu.matmul_push_rhs once, matmul_acc_lhs/matmul_pop
    # per step, tiled per generation: 3x128-lane tiles on v5e's 4x128^2 MXUs,
    # 256+128 split on v6e/v7x's 2x256^2).  Not emitted here because the
    # resident-RHS intrinsics' tile-width and accumulator semantics are
    # generation-specific and unverifiable in this environment; jnp.dot keeps
    # the kernel portable and correct.
    w_hh = whf_ref[...]                           # (H, 3H) bf16, hoisted load
    bhn_f = jnp.broadcast_to(bhn_f_ref[...], (B_pad, H))   # hoisted broadcast
    h = jnp.zeros((B_pad, H), jnp.float32)
    for t in range(T):
        gi = gi_f_last if t == T - 1 else gi_first[t * B_pad:(t + 1) * B_pad, :]
        # h feeds the MXU in bf16 (f32 accumulate, f32 gate math on the VPU);
        # the per-step re-quantisation drift grows roughly linearly with T and
        # stays a few 1e-3 absolute at T = 8.
        gh = jnp.dot(h.astype(jnp.bfloat16), w_hh,
                     preferred_element_type=jnp.float32)
        r = jax.nn.sigmoid(gi[:, 0:H] + gh[:, 0:H])
        z = jax.nn.sigmoid(gi[:, H:2 * H] + gh[:, H:2 * H])
        n = jnp.tanh(gi[:, 2 * H:] + r * (gh[:, 2 * H:] + bhn_f))
        h = (1.0 - z) * n + z * h

    # ---- 4) fc on concat([h_f, h_b]) as two half-matmuls (w_fc pre-split in
    # the wrapper; avoids in-kernel lane concatenate / slice copies).  Padded
    # output rows are sliced away in the wrapper.
    out_ref[...] = (
        jnp.dot(h.astype(jnp.bfloat16), wfcf_ref[...],
                preferred_element_type=jnp.float32)
        + jnp.dot(h_b.astype(jnp.bfloat16), wfcb_ref[...],
                  preferred_element_type=jnp.float32)
        + bfc_ref[...])


def init_params(key, label_num):
    ks = jax.random.split(key, 11)
    s = 1.0 / jnp.sqrt(jnp.float32(H))
    u = lambda k, shape: jax.random.uniform(k, shape, jnp.float32, -s, s)
    return {
        "embedding": jax.random.normal(ks[0], (V, E), jnp.float32),
        "w_ih_f": u(ks[1], (3 * H, E)),  "w_hh_f": u(ks[2], (3 * H, H)),
        "b_ih_f": u(ks[3], (3 * H,)),    "b_hh_f": u(ks[4], (3 * H,)),
        "w_ih_b": u(ks[5], (3 * H, E)),  "w_hh_b": u(ks[6], (3 * H, H)),
        "b_ih_b": u(ks[7], (3 * H,)),    "b_hh_b": u(ks[8], (3 * H,)),
        "w_fc":   u(ks[9], (label_num, 2 * H)),
        "b_fc":   u(ks[10], (label_num,)),
    }


def trans_forward(ids, mask, params):
    """Equivalent of trans.forward(x, mask, label=None) -> (None, logits)."""
    del mask                                     # unused by the module forward
    B, T = ids.shape
    label_num = params["w_fc"].shape[0]
    B_pad = max(8, ((B + 7) // 8) * 8)           # sublane multiple

    # --- wrapper-side parameter prep (one-time in real serving) -------------
    bf16 = lambda a: a.astype(jnp.bfloat16)
    w_ih_f = bf16(params["w_ih_f"].T)            # (E, 3H)
    w_ih_b = bf16(params["w_ih_b"].T)            # (E, 3H)
    w_ih_fb = jnp.concatenate([w_ih_f, w_ih_b], axis=1)   # (E, 6H) fused last-step RHS
    w_hh_f = bf16(params["w_hh_f"].T)            # (H, 3H)

    def fold_bias(b_ih, b_hh):
        # r,z gates see b_ih + b_hh; n gate keeps b_ih with gi and b_hh with
        # gh (multiplied by r), so only the latter stays separate.
        gi_bias = jnp.concatenate([b_ih[:2 * H] + b_hh[:2 * H], b_ih[2 * H:]])
        return gi_bias[None, :], b_hh[2 * H:][None, :]

    bgi_f, bhn_f = fold_bias(params["b_ih_f"], params["b_hh_f"])
    bgi_b, bhn_b = fold_bias(params["b_ih_b"], params["b_hh_b"])
    bgi_fb = jnp.concatenate([bgi_f, bgi_b], axis=1)       # (1, 6H)

    w_fc = params["w_fc"].T                      # (2H, label_num)
    w_fc_f = bf16(w_fc[:H, :])
    w_fc_b = bf16(w_fc[H:, :])
    b_fc = params["b_fc"][None, :]

    vmem = pl.BlockSpec(memory_space=pltpu.MemorySpace.VMEM)
    smem = pl.BlockSpec(memory_space=pltpu.MemorySpace.SMEM)
    hbm = pl.BlockSpec(memory_space=pl.ANY)

    logits_pad = pl.pallas_call(
        bigru_fc_kernel,
        out_shape=jax.ShapeDtypeStruct((B_pad, label_num), jnp.float32),
        in_specs=[smem, hbm] + [vmem] * 10,
        out_specs=vmem,
        scratch_shapes=[
            pltpu.VMEM((T * B_pad, E), jnp.float32),   # gathered x, time-major
            pltpu.SemaphoreType.DMA((2,)),             # [t=T-1 group, rest]
        ],
        # TODO(synk): at production batch sizes, add a batch grid axis with
        # dimension_semantics=("parallel",) so v7x's two TensorCores run
        # independent batch shards, and set vmem_limit_bytes explicitly;
        # pointless at B=2 (weights would just be duplicated).
    )(ids, params["embedding"],
      w_ih_f, w_ih_fb, w_hh_f,
      bgi_f, bgi_fb, bhn_f, bhn_b,
      w_fc_f, w_fc_b, b_fc)
    # TODO(synk): CrossEntropyLoss branch only triggers when label is given;
    # the label=None path returns (None, logits) exactly as the module does.
    # Dropout(0.1) is identity at inference.
    return None, logits_pad[:B]


def reference_forward(ids, params):
    """Pure-JAX f32 reference of the same bidirectional GRU + fc math."""
    emb = params["embedding"][ids]
    B, T, _ = emb.shape

    def run_dir(xs, w_ih, w_hh, b_ih, b_hh):
        h = jnp.zeros((B, H), jnp.float32)
        outs = []
        for t in range(T):
            x_t = xs[:, t, :]
            gi = x_t @ w_ih.T + b_ih
            gh = h @ w_hh.T + b_hh
            r = jax.nn.sigmoid(gi[:, :H] + gh[:, :H])
            z = jax.nn.sigmoid(gi[:, H:2 * H] + gh[:, H:2 * H])
            n = jnp.tanh(gi[:, 2 * H:] + r * gh[:, 2 * H:])
            h = (1.0 - z) * n + z * h
            outs.append(h)
        return jnp.stack(outs, axis=1)

    out_f = run_dir(emb, params["w_ih_f"], params["w_hh_f"],
                    params["b_ih_f"], params["b_hh_f"])
    out_b = run_dir(emb[:, ::-1, :], params["w_ih_b"], params["w_hh_b"],
                    params["b_ih_b"], params["b_hh_b"])[:, ::-1, :]
    last = jnp.concatenate([out_f, out_b], axis=-1)[:, -1, :]
    return last @ params["w_fc"].T + params["b_fc"]


if __name__ == "__main__":
    key = jax.random.PRNGKey(0)
    k_param, k_ids = jax.random.split(key)

    B, T, label_num = 2, 8, 8
    params = init_params(k_param, label_num)
    ids = jax.random.randint(k_ids, (B, T), 0, V, dtype=jnp.int32)
    mask = jnp.ones((B, T), jnp.int32)   # unused by forward (as in the module)

    loss, logits = jax.jit(trans_forward)(ids, mask, params)
    logits = jax.block_until_ready(logits)

    ref = jax.block_until_ready(reference_forward(ids, params))
    assert logits.shape == (B, label_num)
    assert loss is None
    # bf16 MXU operands (f32 accumulate / f32 gate math) vs a pure-f32
    # reference: tolerance tightened from 5e-2 to 1e-2 per review; observed
    # drift at T=8 is a few 1e-3 and grows with longer sequences.
    assert jnp.allclose(logits, ref, atol=1e-2, rtol=1e-2), (logits, ref)
    print("KERNEL_OK")
</pallas_src>

<mosaic_0001>
module attributes {stable_mosaic.version = 11 : i64} {
  func.func @bigru_fc_kernel(%arg0: memref<2x8xi32, #tpu.memory_space<smem>>, %arg1: memref<21128x128xf32, #tpu.memory_space<any>>, %arg2: memref<128x384xbf16, #tpu.memory_space<vmem>>, %arg3: memref<128x768xbf16, #tpu.memory_space<vmem>>, %arg4: memref<128x384xbf16, #tpu.memory_space<vmem>>, %arg5: memref<1x384xf32, #tpu.memory_space<vmem>>, %arg6: memref<1x768xf32, #tpu.memory_space<vmem>>, %arg7: memref<1x128xf32, #tpu.memory_space<vmem>>, %arg8: memref<1x128xf32, #tpu.memory_space<vmem>>, %arg9: memref<128x8xbf16, #tpu.memory_space<vmem>>, %arg10: memref<128x8xbf16, #tpu.memory_space<vmem>>, %arg11: memref<1x8xf32, #tpu.memory_space<vmem>>, %arg12: memref<8x8xf32, #tpu.memory_space<vmem>>, %arg13: memref<64x128xf32, #tpu.memory_space<vmem>>, %arg14: memref<2x!tpu.dma_semaphore, #tpu.memory_space<semaphore_mem>>) attributes {dimension_semantics = [], scalar_prefetch = 0 : i64, scratch_operands = 2 : i64, tpu.core_type = #tpu.core_type<tc>} {
    %cst = arith.constant 0.000000e+00 : f32
    %0 = vector.broadcast %cst : f32 to vector<64x128xf32>
    %c0 = arith.constant 0 : index
    %c0_0 = arith.constant 0 : index
    %1 = vector.load %arg13[%c0, %c0_0] : memref<64x128xf32, #tpu.memory_space<vmem>>, vector<64x128xf32>
    tpu.vector_store %arg13[%c0, %c0_0], %0 {strides = array<i32>} : memref<64x128xf32, #tpu.memory_space<vmem>>, vector<64x128xf32>,
    %c0_1 = arith.constant 0 : index
    %c7 = arith.constant 7 : index
    %2 = memref.load %arg0[%c0_1, %c7] : memref<2x8xi32, #tpu.memory_space<smem>>
    %c0_i32 = arith.constant 0 : i32
    %c0_i32_2 = arith.constant 0 : i32
    %3 = tpu.memref_slice %arg1[%2, %c0_i32_2] : memref<21128x128xf32, #tpu.memory_space<any>> -> memref<1x128xf32, #tpu.memory_space<any>>
    %c56_i32 = arith.constant 56 : i32
    %c0_i32_3 = arith.constant 0 : i32
    %4 = tpu.memref_slice %arg13[%c56_i32, %c0_i32_3] : memref<64x128xf32, #tpu.memory_space<vmem>> -> memref<1x128xf32, #tpu.memory_space<vmem>>
    %5 = tpu.memref_slice %arg14[%c0_i32] : memref<2x!tpu.dma_semaphore, #tpu.memory_space<semaphore_mem>> -> memref<1x!tpu.dma_semaphore, #tpu.memory_space<semaphore_mem>>
    %6 = tpu.memref_squeeze %5 : memref<1x!tpu.dma_semaphore, #tpu.memory_space<semaphore_mem>> -> memref<!tpu.dma_semaphore, #tpu.memory_space<semaphore_mem>>
    tpu.enqueue_dma source(%3 : memref<1x128xf32, #tpu.memory_space<any>>) target(%4 : memref<1x128xf32, #tpu.memory_space<vmem>>) target_semaphore(%6 : memref<!tpu.dma_semaphore, #tpu.memory_space<semaphore_mem>>)
    %c1 = arith.constant 1 : index
    %c7_4 = arith.constant 7 : index
    %7 = memref.load %arg0[%c1, %c7_4] : memref<2x8xi32, #tpu.memory_space<smem>>
    %c0_i32_5 = arith.constant 0 : i32
    %c0_i32_6 = arith.constant 0 : i32
    %8 = tpu.memref_slice %arg1[%7, %c0_i32_6] : memref<21128x128xf32, #tpu.memory_space<any>> -> memref<1x128xf32, #tpu.memory_space<any>>
    %c57_i32 = arith.constant 57 : i32
    %c0_i32_7 = arith.constant 0 : i32
    %9 = tpu.memref_slice %arg13[%c57_i32, %c0_i32_7] : memref<64x128xf32, #tpu.memory_space<vmem>> -> memref<1x128xf32, #tpu.memory_space<vmem>>
    %10 = tpu.memref_slice %arg14[%c0_i32_5] : memref<2x!tpu.dma_semaphore, #tpu.memory_space<semaphore_mem>> -> memref<1x!tpu.dma_semaphore, #tpu.memory_space<semaphore_mem>>
    %11 = tpu.memref_squeeze %10 : memref<1x!tpu.dma_semaphore, #tpu.memory_space<semaphore_mem>> -> memref<!tpu.dma_semaphore, #tpu.memory_space<semaphore_mem>>
    tpu.enqueue_dma source(%8 : memref<1x128xf32, #tpu.memory_space<any>>) target(%9 : memref<1x128xf32, #tpu.memory_space<vmem>>) target_semaphore(%11 : memref<!tpu.dma_semaphore, #tpu.memory_space<semaphore_mem>>)
    %c0_8 = arith.constant 0 : index
    %c0_9 = arith.constant 0 : index
    %12 = memref.load %arg0[%c0_8, %c0_9] : memref<2x8xi32, #tpu.memory_space<smem>>
    %c1_i32 = arith.constant 1 : i32
    %c0_i32_10 = arith.constant 0 : i32
    %13 = tpu.memref_slice %arg1[%12, %c0_i32_10] : memref<21128x128xf32, #tpu.memory_space<any>> -> memref<1x128xf32, #tpu.memory_space<any>>
    %c0_i32_11 = arith.constant 0 : i32
    %c0_i32_12 = arith.constant 0 : i32
    %14 = tpu.memref_slice %arg13[%c0_i32_11, %c0_i32_12] : memref<64x128xf32, #tpu.memory_space<vmem>> -> memref<1x128xf32, #tpu.memory_space<vmem>>
    %15 = tpu.memref_slice %arg14[%c1_i32] : memref<2x!tpu.dma_semaphore, #tpu.memory_space<semaphore_mem>> -> memref<1x!tpu.dma_semaphore, #tpu.memory_space<semaphore_mem>>
    %16 = tpu.memref_squeeze %15 : memref<1x!tpu.dma_semaphore, #tpu.memory_space<semaphore_mem>> -> memref<!tpu.dma_semaphore, #tpu.memory_space<semaphore_mem>>
    tpu.enqueue_dma source(%13 : memref<1x128xf32, #tpu.memory_space<any>>) target(%14 : memref<1x128xf32, #tpu.memory_space<vmem>>) target_semaphore(%16 : memref<!tpu.dma_semaphore, #tpu.memory_space<semaphore_mem>>)
    %c1_13 = arith.constant 1 : index
    %c0_14 = arith.constant 0 : index
    %17 = memref.load %arg0[%c1_13, %c0_14] : memref<2x8xi32, #tpu.memory_space<smem>>
    %c1_i32_15 = arith.constant 1 : i32
    %c0_i32_16 = arith.constant 0 : i32
    %18 = tpu.memref_slice %arg1[%17, %c0_i32_16] : memref<21128x128xf32, #tpu.memory_space<any>> -> memref<1x128xf32, #tpu.memory_space<any>>
    %c1_i32_17 = arith.constant 1 : i32
    %c0_i32_18 = arith.constant 0 : i32
    %19 = tpu.memref_slice %arg13[%c1_i32_17, %c0_i32_18] : memref<64x128xf32, #tpu.memory_space<vmem>> -> memref<1x128xf32, #tpu.memory_space<vmem>>
    %20 = tpu.memref_slice %arg14[%c1_i32_15] : memref<2x!tpu.dma_semaphore, #tpu.memory_space<semaphore_mem>> -> memref<1x!tpu.dma_semaphore, #tpu.memory_space<semaphore_mem>>
    %21 = tpu.memref_squeeze %20 : memref<1x!tpu.dma_semaphore, #tpu.memory_space<semaphore_mem>> -> memref<!tpu.dma_semaphore, #tpu.memory_space<semaphore_mem>>
    tpu.enqueue_dma source(%18 : memref<1x128xf32, #tpu.memory_space<any>>) target(%19 : memref<1x128xf32, #tpu.memory_space<vmem>>) target_semaphore(%21 : memref<!tpu.dma_semaphore, #tpu.memory_space<semaphore_mem>>)
    %c0_19 = arith.constant 0 : index
    %c1_20 = arith.constant 1 : index
    %22 = memref.load %arg0[%c0_19, %c1_20] : memref<2x8xi32, #tpu.memory_space<smem>>
    %c1_i32_21 = arith.constant 1 : i32
    %c0_i32_22 = arith.constant 0 : i32
    %23 = tpu.memref_slice %arg1[%22, %c0_i32_22] : memref<21128x128xf32, #tpu.memory_space<any>> -> memref<1x128xf32, #tpu.memory_space<any>>
    %c8_i32 = arith.constant 8 : i32
    %c0_i32_23 = arith.constant 0 : i32
    %24 = tpu.memref_slice %arg13[%c8_i32, %c0_i32_23] : memref<64x128xf32, #tpu.memory_space<vmem>> -> memref<1x128xf32, #tpu.memory_space<vmem>>
    %25 = tpu.memref_slice %arg14[%c1_i32_21] : memref<2x!tpu.dma_semaphore, #tpu.memory_space<semaphore_mem>> -> memref<1x!tpu.dma_semaphore, #tpu.memory_space<semaphore_mem>>
    %26 = tpu.memref_squeeze %25 : memref<1x!tpu.dma_semaphore, #tpu.memory_space<semaphore_mem>> -> memref<!tpu.dma_semaphore, #tpu.memory_space<semaphore_mem>>
    tpu.enqueue_dma source(%23 : memref<1x128xf32, #tpu.memory_space<any>>) target(%24 : memref<1x128xf32, #tpu.memory_space<vmem>>) target_semaphore(%26 : memref<!tpu.dma_semaphore, #tpu.memory_space<semaphore_mem>>)
    %c1_24 = arith.constant 1 : index
    %c1_25 = arith.constant 1 : index
    %27 = memref.load %arg0[%c1_24, %c1_25] : memref<2x8xi32, #tpu.memory_space<smem>>
    %c1_i32_26 = arith.constant 1 : i32
    %c0_i32_27 = arith.constant 0 : i32
    %28 = tpu.memref_slice %arg1[%27, %c0_i32_27] : memref<21128x128xf32, #tpu.memory_space<any>> -> memref<1x128xf32, #tpu.memory_space<any>>
    %c9_i32 = arith.constant 9 : i32
    %c0_i32_28 = arith.constant 0 : i32
    %29 = tpu.memref_slice %arg13[%c9_i32, %c0_i32_28] : memref<64x128xf32, #tpu.memory_space<vmem>> -> memref<1x128xf32, #tpu.memory_space<vmem>>
    %30 = tpu.memref_slice %arg14[%c1_i32_26] : memref<2x!tpu.dma_semaphore, #tpu.memory_space<semaphore_mem>> -> memref<1x!tpu.dma_semaphore, #tpu.memory_space<semaphore_mem>>
    %31 = tpu.memref_squeeze %30 : memref<1x!tpu.dma_semaphore, #tpu.memory_space<semaphore_mem>> -> memref<!tpu.dma_semaphore, #tpu.memory_space<semaphore_mem>>
    tpu.enqueue_dma source(%28 : memref<1x128xf32, #tpu.memory_space<any>>) target(%29 : memref<1x128xf32, #tpu.memory_space<vmem>>) target_semaphore(%31 : memref<!tpu.dma_semaphore, #tpu.memory_space<semaphore_mem>>)
    %c0_29 = arith.constant 0 : index
    %c2 = arith.constant 2 : index
    %32 = memref.load %arg0[%c0_29, %c2] : memref<2x8xi32, #tpu.memory_space<smem>>
    %c1_i32_30 = arith.constant 1 : i32
    %c0_i32_31 = arith.constant 0 : i32
    %33 = tpu.memref_slice %arg1[%32, %c0_i32_31] : memref<21128x128xf32, #tpu.memory_space<any>> -> memref<1x128xf32, #tpu.memory_space<any>>
    %c16_i32 = arith.constant 16 : i32
    %c0_i32_32 = arith.constant 0 : i32
    %34 = tpu.memref_slice %arg13[%c16_i32, %c0_i32_32] : memref<64x128xf32, #tpu.memory_space<vmem>> -> memref<1x128xf32, #tpu.memory_space<vmem>>
    %35 = tpu.memref_slice %arg14[%c1_i32_30] : memref<2x!tpu.dma_semaphore, #tpu.memory_space<semaphore_mem>> -> memref<1x!tpu.dma_semaphore, #tpu.memory_space<semaphore_mem>>
    %36 = tpu.memref_squeeze %35 : memref<1x!tpu.dma_semaphore, #tpu.memory_space<semaphore_mem>> -> memref<!tpu.dma_semaphore, #tpu.memory_space<semaphore_mem>>
    tpu.enqueue_dma source(%33 : memref<1x128xf32, #tpu.memory_space<any>>) target(%34 : memref<1x128xf32, #tpu.memory_space<vmem>>) target_semaphore(%36 : memref<!tpu.dma_semaphore, #tpu.memory_space<semaphore_mem>>)
    %c1_33 = arith.constant 1 : index
    %c2_34 = arith.constant 2 : index
    %37 = memref.load %arg0[%c1_33, %c2_34] : memref<2x8xi32, #tpu.memory_space<smem>>
    %c1_i32_35 = arith.constant 1 : i32
    %c0_i32_36 = arith.constant 0 : i32
    %38 = tpu.memref_slice %arg1[%37, %c0_i32_36] : memref<21128x128xf32, #tpu.memory_space<any>> -> memref<1x128xf32, #tpu.memory_space<any>>
    %c17_i32 = arith.constant 17 : i32
    %c0_i32_37 = arith.constant 0 : i32
    %39 = tpu.memref_slice %arg13[%c17_i32, %c0_i32_37] : memref<64x128xf32, #tpu.memory_space<vmem>> -> memref<1x128xf32, #tpu.memory_space<vmem>>
    %40 = tpu.memref_slice %arg14[%c1_i32_35] : memref<2x!tpu.dma_semaphore, #tpu.memory_space<semaphore_mem>> -> memref<1x!tpu.dma_semaphore, #tpu.memory_space<semaphore_mem>>
    %41 = tpu.memref_squeeze %40 : memref<1x!tpu.dma_semaphore, #tpu.memory_space<semaphore_mem>> -> memref<!tpu.dma_semaphore, #tpu.memory_space<semaphore_mem>>
    tpu.enqueue_dma source(%38 : memref<1x128xf32, #tpu.memory_space<any>>) target(%39 : memref<1x128xf32, #tpu.memory_space<vmem>>) target_semaphore(%41 : memref<!tpu.dma_semaphore, #tpu.memory_space<semaphore_mem>>)
    %c0_38 = arith.constant 0 : index
    %c3 = arith.constant 3 : index
    %42 = memref.load %arg0[%c0_38, %c3] : memref<2x8xi32, #tpu.memory_space<smem>>
    %c1_i32_39 = arith.constant 1 : i32
    %c0_i32_40 = arith.constant 0 : i32
    %43 = tpu.memref_slice %arg1[%42, %c0_i32_40] : memref<21128x128xf32, #tpu.memory_space<any>> -> memref<1x128xf32, #tpu.memory_space<any>>
    %c24_i32 = arith.constant 24 : i32
    %c0_i32_41 = arith.constant 0 : i32
    %44 = tpu.memref_slice %arg13[%c24_i32, %c0_i32_41] : memref<64x128xf32, #tpu.memory_space<vmem>> -> memref<1x128xf32, #tpu.memory_space<vmem>>
    %45 = tpu.memref_slice %arg14[%c1_i32_39] : memref<2x!tpu.dma_semaphore, #tpu.memory_space<semaphore_mem>> -> memref<1x!tpu.dma_semaphore, #tpu.memory_space<semaphore_mem>>
    %46 = tpu.memref_squeeze %45 : memref<1x!tpu.dma_semaphore, #tpu.memory_space<semaphore_mem>> -> memref<!tpu.dma_semaphore, #tpu.memory_space<semaphore_mem>>
    tpu.enqueue_dma source(%43 : memref<1x128xf32, #tpu.memory_space<any>>) target(%44 : memref<1x128xf32, #tpu.memory_space<vmem>>) target_semaphore(%46 : memref<!tpu.dma_semaphore, #tpu.memory_space<semaphore_mem>>)
    %c1_42 = arith.constant 1 : index
    %c3_43 = arith.constant 3 : index
    %47 = memref.load %arg0[%c1_42, %c3_43] : memref<2x8xi32, #tpu.memory_space<smem>>
    %c1_i32_44 = arith.constant 1 : i32
    %c0_i32_45 = arith.constant 0 : i32
    %48 = tpu.memref_slice %arg1[%47, %c0_i32_45] : memref<21128x128xf32, #tpu.memory_space<any>> -> memref<1x128xf32, #tpu.memory_space<any>>
    %c25_i32 = arith.constant 25 : i32
    %c0_i32_46 = arith.constant 0 : i32
    %49 = tpu.memref_slice %arg13[%c25_i32, %c0_i32_46] : memref<64x128xf32, #tpu.memory_space<vmem>> -> memref<1x128xf32, #tpu.memory_space<vmem>>
    %50 = tpu.memref_slice %arg14[%c1_i32_44] : memref<2x!tpu.dma_semaphore, #tpu.memory_space<semaphore_mem>> -> memref<1x!tpu.dma_semaphore, #tpu.memory_space<semaphore_mem>>
    %51 = tpu.memref_squeeze %50 : memref<1x!tpu.dma_semaphore, #tpu.memory_space<semaphore_mem>> -> memref<!tpu.dma_semaphore, #tpu.memory_space<semaphore_mem>>
    tpu.enqueue_dma source(%48 : memref<1x128xf32, #tpu.memory_space<any>>) target(%49 : memref<1x128xf32, #tpu.memory_space<vmem>>) target_semaphore(%51 : memref<!tpu.dma_semaphore, #tpu.memory_space<semaphore_mem>>)
    %c0_47 = arith.constant 0 : index
    %c4 = arith.constant 4 : index
    %52 = memref.load %arg0[%c0_47, %c4] : memref<2x8xi32, #tpu.memory_space<smem>>
    %c1_i32_48 = arith.constant 1 : i32
    %c0_i32_49 = arith.constant 0 : i32
    %53 = tpu.memref_slice %arg1[%52, %c0_i32_49] : memref<21128x128xf32, #tpu.memory_space<any>> -> memref<1x128xf32, #tpu.memory_space<any>>
    %c32_i32 = arith.constant 32 : i32
    %c0_i32_50 = arith.constant 0 : i32
    %54 = tpu.memref_slice %arg13[%c32_i32, %c0_i32_50] : memref<64x128xf32, #tpu.memory_space<vmem>> -> memref<1x128xf32, #tpu.memory_space<vmem>>
    %55 = tpu.memref_slice %arg14[%c1_i32_48] : memref<2x!tpu.dma_semaphore, #tpu.memory_space<semaphore_mem>> -> memref<1x!tpu.dma_semaphore, #tpu.memory_space<semaphore_mem>>
    %56 = tpu.memref_squeeze %55 : memref<1x!tpu.dma_semaphore, #tpu.memory_space<semaphore_mem>> -> memref<!tpu.dma_semaphore, #tpu.memory_space<semaphore_mem>>
    tpu.enqueue_dma source(%53 : memref<1x128xf32, #tpu.memory_space<any>>) target(%54 : memref<1x128xf32, #tpu.memory_space<vmem>>) target_semaphore(%56 : memref<!tpu.dma_semaphore, #tpu.memory_space<semaphore_mem>>)
    %c1_51 = arith.constant 1 : index
    %c4_52 = arith.constant 4 : index
    %57 = memref.load %arg0[%c1_51, %c4_52] : memref<2x8xi32, #tpu.memory_space<smem>>
    %c1_i32_53 = arith.constant 1 : i32
    %c0_i32_54 = arith.constant 0 : i32
    %58 = tpu.memref_slice %arg1[%57, %c0_i32_54] : memref<21128x128xf32, #tpu.memory_space<any>> -> memref<1x128xf32, #tpu.memory_space<any>>
    %c33_i32 = arith.constant 33 : i32
    %c0_i32_55 = arith.constant 0 : i32
    %59 = tpu.memref_slice %arg13[%c33_i32, %c0_i32_55] : memref<64x128xf32, #tpu.memory_space<vmem>> -> memref<1x128xf32, #tpu.memory_space<vmem>>
    %60 = tpu.memref_slice %arg14[%c1_i32_53] : memref<2x!tpu.dma_semaphore, #tpu.memory_space<semaphore_mem>> -> memref<1x!tpu.dma_semaphore, #tpu.memory_space<semaphore_mem>>
    %61 = tpu.memref_squeeze %60 : memref<1x!tpu.dma_semaphore, #tpu.memory_space<semaphore_mem>> -> memref<!tpu.dma_semaphore, #tpu.memory_space<semaphore_mem>>
    tpu.enqueue_dma source(%58 : memref<1x128xf32, #tpu.memory_space<any>>) target(%59 : memref<1x128xf32, #tpu.memory_space<vmem>>) target_semaphore(%61 : memref<!tpu.dma_semaphore, #tpu.memory_space<semaphore_mem>>)
    %c0_56 = arith.constant 0 : index
    %c5 = arith.constant 5 : index
    %62 = memref.load %arg0[%c0_56, %c5] : memref<2x8xi32, #tpu.memory_space<smem>>
    %c1_i32_57 = arith.constant 1 : i32
    %c0_i32_58 = arith.constant 0 : i32
    %63 = tpu.memref_slice %arg1[%62, %c0_i32_58] : memref<21128x128xf32, #tpu.memory_space<any>> -> memref<1x128xf32, #tpu.memory_space<any>>
    %c40_i32 = arith.constant 40 : i32
    %c0_i32_59 = arith.constant 0 : i32
    %64 = tpu.memref_slice %arg13[%c40_i32, %c0_i32_59] : memref<64x128xf32, #tpu.memory_space<vmem>> -> memref<1x128xf32, #tpu.memory_space<vmem>>
    %65 = tpu.memref_slice %arg14[%c1_i32_57] : memref<2x!tpu.dma_semaphore, #tpu.memory_space<semaphore_mem>> -> memref<1x!tpu.dma_semaphore, #tpu.memory_space<semaphore_mem>>
    %66 = tpu.memref_squeeze %65 : memref<1x!tpu.dma_semaphore, #tpu.memory_space<semaphore_mem>> -> memref<!tpu.dma_semaphore, #tpu.memory_space<semaphore_mem>>
    tpu.enqueue_dma source(%63 : memref<1x128xf32, #tpu.memory_space<any>>) target(%64 : memref<1x128xf32, #tpu.memory_space<vmem>>) target_semaphore(%66 : memref<!tpu.dma_semaphore, #tpu.memory_space<semaphore_mem>>)
    %c1_60 = arith.constant 1 : index
    %c5_61 = arith.constant 5 : index
    %67 = memref.load %arg0[%c1_60, %c5_61] : memref<2x8xi32, #tpu.memory_space<smem>>
    %c1_i32_62 = arith.constant 1 : i32
    %c0_i32_63 = arith.constant 0 : i32
    %68 = tpu.memref_slice %arg1[%67, %c0_i32_63] : memref<21128x128xf32, #tpu.memory_space<any>> -> memref<1x128xf32, #tpu.memory_space<any>>
    %c41_i32 = arith.constant 41 : i32
    %c0_i32_64 = arith.constant 0 : i32
    %69 = tpu.memref_slice %arg13[%c41_i32, %c0_i32_64] : memref<64x128xf32, #tpu.memory_space<vmem>> -> memref<1x128xf32, #tpu.memory_space<vmem>>
    %70 = tpu.memref_slice %arg14[%c1_i32_62] : memref<2x!tpu.dma_semaphore, #tpu.memory_space<semaphore_mem>> -> memref<1x!tpu.dma_semaphore, #tpu.memory_space<semaphore_mem>>
    %71 = tpu.memref_squeeze %70 : memref<1x!tpu.dma_semaphore, #tpu.memory_space<semaphore_mem>> -> memref<!tpu.dma_semaphore, #tpu.memory_space<semaphore_mem>>
    tpu.enqueue_dma source(%68 : memref<1x128xf32, #tpu.memory_space<any>>) target(%69 : memref<1x128xf32, #tpu.memory_space<vmem>>) target_semaphore(%71 : memref<!tpu.dma_semaphore, #tpu.memory_space<semaphore_mem>>)
    %c0_65 = arith.constant 0 : index
    %c6 = arith.constant 6 : index
    %72 = memref.load %arg0[%c0_65, %c6] : memref<2x8xi32, #tpu.memory_space<smem>>
    %c1_i32_66 = arith.constant 1 : i32
    %c0_i32_67 = arith.constant 0 : i32
    %73 = tpu.memref_slice %arg1[%72, %c0_i32_67] : memref<21128x128xf32, #tpu.memory_space<any>> -> memref<1x128xf32, #tpu.memory_space<any>>
    %c48_i32 = arith.constant 48 : i32
    %c0_i32_68 = arith.constant 0 : i32
    %74 = tpu.memref_slice %arg13[%c48_i32, %c0_i32_68] : memref<64x128xf32, #tpu.memory_space<vmem>> -> memref<1x128xf32, #tpu.memory_space<vmem>>
    %75 = tpu.memref_slice %arg14[%c1_i32_66] : memref<2x!tpu.dma_semaphore, #tpu.memory_space<semaphore_mem>> -> memref<1x!tpu.dma_semaphore, #tpu.memory_space<semaphore_mem>>
    %76 = tpu.memref_squeeze %75 : memref<1x!tpu.dma_semaphore, #tpu.memory_space<semaphore_mem>> -> memref<!tpu.dma_semaphore, #tpu.memory_space<semaphore_mem>>
    tpu.enqueue_dma source(%73 : memref<1x128xf32, #tpu.memory_space<any>>) target(%74 : memref<1x128xf32, #tpu.memory_space<vmem>>) target_semaphore(%76 : memref<!tpu.dma_semaphore, #tpu.memory_space<semaphore_mem>>)
    %c1_69 = arith.constant 1 : index
    %c6_70 = arith.constant 6 : index
    %77 = memref.load %arg0[%c1_69, %c6_70] : memref<2x8xi32, #tpu.memory_space<smem>>
    %c1_i32_71 = arith.constant 1 : i32
    %c0_i32_72 = arith.constant 0 : i32
    %78 = tpu.memref_slice %arg1[%77, %c0_i32_72] : memref<21128x128xf32, #tpu.memory_space<any>> -> memref<1x128xf32, #tpu.memory_space<any>>
    %c49_i32 = arith.constant 49 : i32
    %c0_i32_73 = arith.constant 0 : i32
    %79 = tpu.memref_slice %arg13[%c49_i32, %c0_i32_73] : memref<64x128xf32, #tpu.memory_space<vmem>> -> memref<1x128xf32, #tpu.memory_space<vmem>>
    %80 = tpu.memref_slice %arg14[%c1_i32_71] : memref<2x!tpu.dma_semaphore, #tpu.memory_space<semaphore_mem>> -> memref<1x!tpu.dma_semaphore, #tpu.memory_space<semaphore_mem>>
    %81 = tpu.memref_squeeze %80 : memref<1x!tpu.dma_semaphore, #tpu.memory_space<semaphore_mem>> -> memref<!tpu.dma_semaphore, #tpu.memory_space<semaphore_mem>>
    tpu.enqueue_dma source(%78 : memref<1x128xf32, #tpu.memory_space<any>>) target(%79 : memref<1x128xf32, #tpu.memory_space<vmem>>) target_semaphore(%81 : memref<!tpu.dma_semaphore, #tpu.memory_space<semaphore_mem>>)
    %c0_i32_74 = arith.constant 0 : i32
    %c0_i32_75 = arith.constant 0 : i32
    %82 = tpu.memref_slice %arg1[%2, %c0_i32_75] : memref<21128x128xf32, #tpu.memory_space<any>> -> memref<1x128xf32, #tpu.memory_space<any>>
    %c56_i32_76 = arith.constant 56 : i32
    %c0_i32_77 = arith.constant 0 : i32
    %83 = tpu.memref_slice %arg13[%c56_i32_76, %c0_i32_77] : memref<64x128xf32, #tpu.memory_space<vmem>> -> memref<1x128xf32, #tpu.memory_space<vmem>>
    %84 = tpu.memref_slice %arg14[%c0_i32_74] : memref<2x!tpu.dma_semaphore, #tpu.memory_space<semaphore_mem>> -> memref<1x!tpu.dma_semaphore, #tpu.memory_space<semaphore_mem>>
    %85 = tpu.memref_squeeze %84 : memref<1x!tpu.dma_semaphore, #tpu.memory_space<semaphore_mem>> -> memref<!tpu.dma_semaphore, #tpu.memory_space<semaphore_mem>>
    tpu.wait_dma2 semaphore(%85 : memref<!tpu.dma_semaphore, #tpu.memory_space<semaphore_mem>>) src(%82 : memref<1x128xf32, #tpu.memory_space<any>>) dst(%83 : memref<1x128xf32, #tpu.memory_space<vmem>>)
    %c0_i32_78 = arith.constant 0 : i32
    %c0_i32_79 = arith.constant 0 : i32
    %86 = tpu.memref_slice %arg1[%7, %c0_i32_79] : memref<21128x128xf32, #tpu.memory_space<any>> -> memref<1x128xf32, #tpu.memory_space<any>>
    %c57_i32_80 = arith.constant 57 : i32
    %c0_i32_81 = arith.constant 0 : i32
    %87 = tpu.memref_slice %arg13[%c57_i32_80, %c0_i32_81] : memref<64x128xf32, #tpu.memory_space<vmem>> -> memref<1x128xf32, #tpu.memory_space<vmem>>
    %88 = tpu.memref_slice %arg14[%c0_i32_78] : memref<2x!tpu.dma_semaphore, #tpu.memory_space<semaphore_mem>> -> memref<1x!tpu.dma_semaphore, #tpu.memory_space<semaphore_mem>>
    %89 = tpu.memref_squeeze %88 : memref<1x!tpu.dma_semaphore, #tpu.memory_space<semaphore_mem>> -> memref<!tpu.dma_semaphore, #tpu.memory_space<semaphore_mem>>
    tpu.wait_dma2 semaphore(%89 : memref<!tpu.dma_semaphore, #tpu.memory_space<semaphore_mem>>) src(%86 : memref<1x128xf32, #tpu.memory_space<any>>) dst(%87 : memref<1x128xf32, #tpu.memory_space<vmem>>)
    %c56 = arith.constant 56 : index
    %c0_82 = arith.constant 0 : index
    %90 = vector.load %arg13[%c56, %c0_82] : memref<64x128xf32, #tpu.memory_space<vmem>>, vector<8x128xf32>
    %91 = arith.truncf %90 : vector<8x128xf32> to vector<8x128xbf16>
    %c0_83 = arith.constant 0 : index
    %c0_84 = arith.constant 0 : index
    %92 = vector.load %arg3[%c0_83, %c0_84] : memref<128x768xbf16, #tpu.memory_space<vmem>>, vector<128x768xbf16>
    %cst_85 = arith.constant dense<0.000000e+00> : vector<8x768xf32>
    %93 = tpu.matmul %91, %92, %cst_85 {dimension_numbers = #tpu.dot_dimension_numbers<[1], [0], [0], [1], [0, 0, 1, 1], [], []>} : vector<8x128xbf16>, vector<128x768xbf16>, vector<8x768xf32> -> vector<8x768xf32>
    %c0_86 = arith.constant 0 : index
    %c0_87 = arith.constant 0 : index
    %94 = vector.load %arg6[%c0_86, %c0_87] : memref<1x768xf32, #tpu.memory_space<vmem>>, vector<1x768xf32>
    %95 = vector.broadcast %94 : vector<1x768xf32> to vector<8x768xf32>
    %96 = arith.addf %93, %95 : vector<8x768xf32>
    %97 = vector.extract_strided_slice %96 {offsets = [0, 0], sizes = [8, 384], strides = [1, 1]} : vector<8x768xf32> to vector<8x384xf32>
    %98 = vector.extract_strided_slice %96 {offsets = [0, 384], sizes = [8, 384], strides = [1, 1]} : vector<8x768xf32> to vector<8x384xf32>
    %99 = vector.extract_strided_slice %98 {offsets = [0, 0], sizes = [8, 128], strides = [1, 1]} : vector<8x384xf32> to vector<8x128xf32>
    %100 = arith.negf %99 : vector<8x128xf32>
    %101 = math.exp %100 : vector<8x128xf32>
    %cst_88 = arith.constant 1.000000e+00 : f32
    %102 = vector.broadcast %cst_88 : f32 to vector<8x128xf32>
    %103 = arith.addf %102, %101 : vector<8x128xf32>
    %104 = arith.divf %102, %103 : vector<8x128xf32>
    %105 = vector.extract_strided_slice %98 {offsets = [0, 128], sizes = [8, 128], strides = [1, 1]} : vector<8x384xf32> to vector<8x128xf32>
    %106 = arith.negf %105 : vector<8x128xf32>
    %107 = math.exp %106 : vector<8x128xf32>
    %cst_89 = arith.constant 1.000000e+00 : f32
    %108 = vector.broadcast %cst_89 : f32 to vector<8x128xf32>
    %109 = arith.addf %108, %107 : vector<8x128xf32>
    %110 = arith.divf %108, %109 : vector<8x128xf32>
    %111 = vector.extract_strided_slice %98 {offsets = [0, 256], sizes = [8, 128], strides = [1, 1]} : vector<8x384xf32> to vector<8x128xf32>
    %c0_90 = arith.constant 0 : index
    %c0_91 = arith.constant 0 : index
    %112 = vector.load %arg8[%c0_90, %c0_91] : memref<1x128xf32, #tpu.memory_space<vmem>>, vector<1x128xf32>
    %113 = vector.broadcast %112 : vector<1x128xf32> to vector<8x128xf32>
    %114 = arith.mulf %104, %113 : vector<8x128xf32>
    %115 = arith.addf %111, %114 : vector<8x128xf32>
    %116 = math.tanh %115 : vector<8x128xf32>
    %cst_92 = arith.constant 1.000000e+00 : f32
    %117 = vector.broadcast %cst_92 : f32 to vector<8x128xf32>
    %118 = arith.subf %117, %110 : vector<8x128xf32>
    %119 = arith.mulf %118, %116 : vector<8x128xf32>
    %c1_i32_93 = arith.constant 1 : i32
    %c0_i32_94 = arith.constant 0 : i32
    %120 = tpu.memref_slice %arg1[%12, %c0_i32_94] : memref<21128x128xf32, #tpu.memory_space<any>> -> memref<1x128xf32, #tpu.memory_space<any>>
    %c0_i32_95 = arith.constant 0 : i32
    %c0_i32_96 = arith.constant 0 : i32
    %121 = tpu.memref_slice %arg13[%c0_i32_95, %c0_i32_96] : memref<64x128xf32, #tpu.memory_space<vmem>> -> memref<1x128xf32, #tpu.memory_space<vmem>>
    %122 = tpu.memref_slice %arg14[%c1_i32_93] : memref<2x!tpu.dma_semaphore, #tpu.memory_space<semaphore_mem>> -> memref<1x!tpu.dma_semaphore, #tpu.memory_space<semaphore_mem>>
    %123 = tpu.memref_squeeze %122 : memref<1x!tpu.dma_semaphore, #tpu.memory_space<semaphore_mem>> -> memref<!tpu.dma_semaphore, #tpu.memory_space<semaphore_mem>>
    tpu.wait_dma2 semaphore(%123 : memref<!tpu.dma_semaphore, #tpu.memory_space<semaphore_mem>>) src(%120 : memref<1x128xf32, #tpu.memory_space<any>>) dst(%121 : memref<1x128xf32, #tpu.memory_space<vmem>>)
    %c1_i32_97 = arith.constant 1 : i32
    %c0_i32_98 = arith.constant 0 : i32
    %124 = tpu.memref_slice %arg1[%17, %c0_i32_98] : memref<21128x128xf32, #tpu.memory_space<any>> -> memref<1x128xf32, #tpu.memory_space<any>>
    %c1_i32_99 = arith.constant 1 : i32
    %c0_i32_100 = arith.constant 0 : i32
    %125 = tpu.memref_slice %arg13[%c1_i32_99, %c0_i32_100] : memref<64x128xf32, #tpu.memory_space<vmem>> -> memref<1x128xf32, #tpu.memory_space<vmem>>
    %126 = tpu.memref_slice %arg14[%c1_i32_97] : memref<2x!tpu.dma_semaphore, #tpu.memory_space<semaphore_mem>> -> memref<1x!tpu.dma_semaphore, #tpu.memory_space<semaphore_mem>>
    %127 = tpu.memref_squeeze %126 : memref<1x!tpu.dma_semaphore, #tpu.memory_space<semaphore_mem>> -> memref<!tpu.dma_semaphore, #tpu.memory_space<semaphore_mem>>
    tpu.wait_dma2 semaphore(%127 : memref<!tpu.dma_semaphore, #tpu.memory_space<semaphore_mem>>) src(%124 : memref<1x128xf32, #tpu.memory_space<any>>) dst(%125 : memref<1x128xf32, #tpu.memory_space<vmem>>)
    %c1_i32_101 = arith.constant 1 : i32
    %c0_i32_102 = arith.constant 0 : i32
    %128 = tpu.memref_slice %arg1[%22, %c0_i32_102] : memref<21128x128xf32, #tpu.memory_space<any>> -> memref<1x128xf32, #tpu.memory_space<any>>
    %c8_i32_103 = arith.constant 8 : i32
    %c0_i32_104 = arith.constant 0 : i32
    %129 = tpu.memref_slice %arg13[%c8_i32_103, %c0_i32_104] : memref<64x128xf32, #tpu.memory_space<vmem>> -> memref<1x128xf32, #tpu.memory_space<vmem>>
    %130 = tpu.memref_slice %arg14[%c1_i32_101] : memref<2x!tpu.dma_semaphore, #tpu.memory_space<semaphore_mem>> -> memref<1x!tpu.dma_semaphore, #tpu.memory_space<semaphore_mem>>
    %131 = tpu.memref_squeeze %130 : memref<1x!tpu.dma_semaphore, #tpu.memory_space<semaphore_mem>> -> memref<!tpu.dma_semaphore, #tpu.memory_space<semaphore_mem>>
    tpu.wait_dma2 semaphore(%131 : memref<!tpu.dma_semaphore, #tpu.memory_space<semaphore_mem>>) src(%128 : memref<1x128xf32, #tpu.memory_space<any>>) dst(%129 : memref<1x128xf32, #tpu.memory_space<vmem>>)
    %c1_i32_105 = arith.constant 1 : i32
    %c0_i32_106 = arith.constant 0 : i32
    %132 = tpu.memref_slice %arg1[%27, %c0_i32_106] : memref<21128x128xf32, #tpu.memory_space<any>> -> memref<1x128xf32, #tpu.memory_space<any>>
    %c9_i32_107 = arith.constant 9 : i32
    %c0_i32_108 = arith.constant 0 : i32
    %133 = tpu.memref_slice %arg13[%c9_i32_107, %c0_i32_108] : memref<64x128xf32, #tpu.memory_space<vmem>> -> memref<1x128xf32, #tpu.memory_space<vmem>>
    %134 = tpu.memref_slice %arg14[%c1_i32_105] : memref<2x!tpu.dma_semaphore, #tpu.memory_space<semaphore_mem>> -> memref<1x!tpu.dma_semaphore, #tpu.memory_space<semaphore_mem>>
    %135 = tpu.memref_squeeze %134 : memref<1x!tpu.dma_semaphore, #tpu.memory_space<semaphore_mem>> -> memref<!tpu.dma_semaphore, #tpu.memory_space<semaphore_mem>>
    tpu.wait_dma2 semaphore(%135 : memref<!tpu.dma_semaphore, #tpu.memory_space<semaphore_mem>>) src(%132 : memref<1x128xf32, #tpu.memory_space<any>>) dst(%133 : memref<1x128xf32, #tpu.memory_space<vmem>>)
    %c1_i32_109 = arith.constant 1 : i32
    %c0_i32_110 = arith.constant 0 : i32
    %136 = tpu.memref_slice %arg1[%32, %c0_i32_110] : memref<21128x128xf32, #tpu.memory_space<any>> -> memref<1x128xf32, #tpu.memory_space<any>>
    %c16_i32_111 = arith.constant 16 : i32
    %c0_i32_112 = arith.constant 0 : i32
    %137 = tpu.memref_slice %arg13[%c16_i32_111, %c0_i32_112] : memref<64x128xf32, #tpu.memory_space<vmem>> -> memref<1x128xf32, #tpu.memory_space<vmem>>
    %138 = tpu.memref_slice %arg14[%c1_i32_109] : memref<2x!tpu.dma_semaphore, #tpu.memory_space<semaphore_mem>> -> memref<1x!tpu.dma_semaphore, #tpu.memory_space<semaphore_mem>>
    %139 = tpu.memref_squeeze %138 : memref<1x!tpu.dma_semaphore, #tpu.memory_space<semaphore_mem>> -> memref<!tpu.dma_semaphore, #tpu.memory_space<semaphore_mem>>
    tpu.wait_dma2 semaphore(%139 : memref<!tpu.dma_semaphore, #tpu.memory_space<semaphore_mem>>) src(%136 : memref<1x128xf32, #tpu.memory_space<any>>) dst(%137 : memref<1x128xf32, #tpu.memory_space<vmem>>)
    %c1_i32_113 = arith.constant 1 : i32
    %c0_i32_114 = arith.constant 0 : i32
    %140 = tpu.memref_slice %arg1[%37, %c0_i32_114] : memref<21128x128xf32, #tpu.memory_space<any>> -> memref<1x128xf32, #tpu.memory_space<any>>
    %c17_i32_115 = arith.constant 17 : i32
    %c0_i32_116 = arith.constant 0 : i32
    %141 = tpu.memref_slice %arg13[%c17_i32_115, %c0_i32_116] : memref<64x128xf32, #tpu.memory_space<vmem>> -> memref<1x128xf32, #tpu.memory_space<vmem>>
    %142 = tpu.memref_slice %arg14[%c1_i32_113] : memref<2x!tpu.dma_semaphore, #tpu.memory_space<semaphore_mem>> -> memref<1x!tpu.dma_semaphore, #tpu.memory_space<semaphore_mem>>
    %143 = tpu.memref_squeeze %142 : memref<1x!tpu.dma_semaphore, #tpu.memory_space<semaphore_mem>> -> memref<!tpu.dma_semaphore, #tpu.memory_space<semaphore_mem>>
    tpu.wait_dma2 semaphore(%143 : memref<!tpu.dma_semaphore, #tpu.memory_space<semaphore_mem>>) src(%140 : memref<1x128xf32, #tpu.memory_space<any>>) dst(%141 : memref<1x128xf32, #tpu.memory_space<vmem>>)
    %c1_i32_117 = arith.constant 1 : i32
    %c0_i32_118 = arith.constant 0 : i32
    %144 = tpu.memref_slice %arg1[%42, %c0_i32_118] : memref<21128x128xf32, #tpu.memory_space<any>> -> memref<1x128xf32, #tpu.memory_space<any>>
    %c24_i32_119 = arith.constant 24 : i32
    %c0_i32_120 = arith.constant 0 : i32
    %145 = tpu.memref_slice %arg13[%c24_i32_119, %c0_i32_120] : memref<64x128xf32, #tpu.memory_space<vmem>> -> memref<1x128xf32, #tpu.memory_space<vmem>>
    %146 = tpu.memref_slice %arg14[%c1_i32_117] : memref<2x!tpu.dma_semaphore, #tpu.memory_space<semaphore_mem>> -> memref<1x!tpu.dma_semaphore, #tpu.memory_space<semaphore_mem>>
    %147 = tpu.memref_squeeze %146 : memref<1x!tpu.dma_semaphore, #tpu.memory_space<semaphore_mem>> -> memref<!tpu.dma_semaphore, #tpu.memory_space<semaphore_mem>>
    tpu.wait_dma2 semaphore(%147 : memref<!tpu.dma_semaphore, #tpu.memory_space<semaphore_mem>>) src(%144 : memref<1x128xf32, #tpu.memory_space<any>>) dst(%145 : memref<1x128xf32, #tpu.memory_space<vmem>>)
    %c1_i32_121 = arith.constant 1 : i32
    %c0_i32_122 = arith.constant 0 : i32
    %148 = tpu.memref_slice %arg1[%47, %c0_i32_122] : memref<21128x128xf32, #tpu.memory_space<any>> -> memref<1x128xf32, #tpu.memory_space<any>>
    %c25_i32_123 = arith.constant 25 : i32
    %c0_i32_124 = arith.constant 0 : i32
    %149 = tpu.memref_slice %arg13[%c25_i32_123, %c0_i32_124] : memref<64x128xf32, #tpu.memory_space<vmem>> -> memref<1x128xf32, #tpu.memory_space<vmem>>
    %150 = tpu.memref_slice %arg14[%c1_i32_121] : memref<2x!tpu.dma_semaphore, #tpu.memory_space<semaphore_mem>> -> memref<1x!tpu.dma_semaphore, #tpu.memory_space<semaphore_mem>>
    %151 = tpu.memref_squeeze %150 : memref<1x!tpu.dma_semaphore, #tpu.memory_space<semaphore_mem>> -> memref<!tpu.dma_semaphore, #tpu.memory_space<semaphore_mem>>
    tpu.wait_dma2 semaphore(%151 : memref<!tpu.dma_semaphore, #tpu.memory_space<semaphore_mem>>) src(%148 : memref<1x128xf32, #tpu.memory_space<any>>) dst(%149 : memref<1x128xf32, #tpu.memory_space<vmem>>)
    %c1_i32_125 = arith.constant 1 : i32
    %c0_i32_126 = arith.constant 0 : i32
    %152 = tpu.memref_slice %arg1[%52, %c0_i32_126] : memref<21128x128xf32, #tpu.memory_space<any>> -> memref<1x128xf32, #tpu.memory_space<any>>
    %c32_i32_127 = arith.constant 32 : i32
    %c0_i32_128 = arith.constant 0 : i32
    %153 = tpu.memref_slice %arg13[%c32_i32_127, %c0_i32_128] : memref<64x128xf32, #tpu.memory_space<vmem>> -> memref<1x128xf32, #tpu.memory_space<vmem>>
    %154 = tpu.memref_slice %arg14[%c1_i32_125] : memref<2x!tpu.dma_semaphore, #tpu.memory_space<semaphore_mem>> -> memref<1x!tpu.dma_semaphore, #tpu.memory_space<semaphore_mem>>
    %155 = tpu.memref_squeeze %154 : memref<1x!tpu.dma_semaphore, #tpu.memory_space<semaphore_mem>> -> memref<!tpu.dma_semaphore, #tpu.memory_space<semaphore_mem>>
    tpu.wait_dma2 semaphore(%155 : memref<!tpu.dma_semaphore, #tpu.memory_space<semaphore_mem>>) src(%152 : memref<1x128xf32, #tpu.memory_space<any>>) dst(%153 : memref<1x128xf32, #tpu.memory_space<vmem>>)
    %c1_i32_129 = arith.constant 1 : i32
    %c0_i32_130 = arith.constant 0 : i32
    %156 = tpu.memref_slice %arg1[%57, %c0_i32_130] : memref<21128x128xf32, #tpu.memory_space<any>> -> memref<1x128xf32, #tpu.memory_space<any>>
    %c33_i32_131 = arith.constant 33 : i32
    %c0_i32_132 = arith.constant 0 : i32
    %157 = tpu.memref_slice %arg13[%c33_i32_131, %c0_i32_132] : memref<64x128xf32, #tpu.memory_space<vmem>> -> memref<1x128xf32, #tpu.memory_space<vmem>>
    %158 = tpu.memref_slice %arg14[%c1_i32_129] : memref<2x!tpu.dma_semaphore, #tpu.memory_space<semaphore_mem>> -> memref<1x!tpu.dma_semaphore, #tpu.memory_space<semaphore_mem>>
    %159 = tpu.memref_squeeze %158 : memref<1x!tpu.dma_semaphore, #tpu.memory_space<semaphore_mem>> -> memref<!tpu.dma_semaphore, #tpu.memory_space<semaphore_mem>>
    tpu.wait_dma2 semaphore(%159 : memref<!tpu.dma_semaphore, #tpu.memory_space<semaphore_mem>>) src(%156 : memref<1x128xf32, #tpu.memory_space<any>>) dst(%157 : memref<1x128xf32, #tpu.memory_space<vmem>>)
    %c1_i32_133 = arith.constant 1 : i32
    %c0_i32_134 = arith.constant 0 : i32
    %160 = tpu.memref_slice %arg1[%62, %c0_i32_134] : memref<21128x128xf32, #tpu.memory_space<any>> -> memref<1x128xf32, #tpu.memory_space<any>>
    %c40_i32_135 = arith.constant 40 : i32
    %c0_i32_136 = arith.constant 0 : i32
    %161 = tpu.memref_slice %arg13[%c40_i32_135, %c0_i32_136] : memref<64x128xf32, #tpu.memory_space<vmem>> -> memref<1x128xf32, #tpu.memory_space<vmem>>
    %162 = tpu.memref_slice %arg14[%c1_i32_133] : memref<2x!tpu.dma_semaphore, #tpu.memory_space<semaphore_mem>> -> memref<1x!tpu.dma_semaphore, #tpu.memory_space<semaphore_mem>>
    %163 = tpu.memref_squeeze %162 : memref<1x!tpu.dma_semaphore, #tpu.memory_space<semaphore_mem>> -> memref<!tpu.dma_semaphore, #tpu.memory_space<semaphore_mem>>
    tpu.wait_dma2 semaphore(%163 : memref<!tpu.dma_semaphore, #tpu.memory_space<semaphore_mem>>) src(%160 : memref<1x128xf32, #tpu.memory_space<any>>) dst(%161 : memref<1x128xf32, #tpu.memory_space<vmem>>)
    %c1_i32_137 = arith.constant 1 : i32
    %c0_i32_138 = arith.constant 0 : i32
    %164 = tpu.memref_slice %arg1[%67, %c0_i32_138] : memref<21128x128xf32, #tpu.memory_space<any>> -> memref<1x128xf32, #tpu.memory_space<any>>
    %c41_i32_139 = arith.constant 41 : i32
    %c0_i32_140 = arith.constant 0 : i32
    %165 = tpu.memref_slice %arg13[%c41_i32_139, %c0_i32_140] : memref<64x128xf32, #tpu.memory_space<vmem>> -> memref<1x128xf32, #tpu.memory_space<vmem>>
    %166 = tpu.memref_slice %arg14[%c1_i32_137] : memref<2x!tpu.dma_semaphore, #tpu.memory_space<semaphore_mem>> -> memref<1x!tpu.dma_semaphore, #tpu.memory_space<semaphore_mem>>
    %167 = tpu.memref_squeeze %166 : memref<1x!tpu.dma_semaphore, #tpu.memory_space<semaphore_mem>> -> memref<!tpu.dma_semaphore, #tpu.memory_space<semaphore_mem>>
    tpu.wait_dma2 semaphore(%167 : memref<!tpu.dma_semaphore, #tpu.memory_space<semaphore_mem>>) src(%164 : memref<1x128xf32, #tpu.memory_space<any>>) dst(%165 : memref<1x128xf32, #tpu.memory_space<vmem>>)
    %c1_i32_141 = arith.constant 1 : i32
    %c0_i32_142 = arith.constant 0 : i32
    %168 = tpu.memref_slice %arg1[%72, %c0_i32_142] : memref<21128x128xf32, #tpu.memory_space<any>> -> memref<1x128xf32, #tpu.memory_space<any>>
    %c48_i32_143 = arith.constant 48 : i32
    %c0_i32_144 = arith.constant 0 : i32
    %169 = tpu.memref_slice %arg13[%c48_i32_143, %c0_i32_144] : memref<64x128xf32, #tpu.memory_space<vmem>> -> memref<1x128xf32, #tpu.memory_space<vmem>>
    %170 = tpu.memref_slice %arg14[%c1_i32_141] : memref<2x!tpu.dma_semaphore, #tpu.memory_space<semaphore_mem>> -> memref<1x!tpu.dma_semaphore, #tpu.memory_space<semaphore_mem>>
    %171 = tpu.memref_squeeze %170 : memref<1x!tpu.dma_semaphore, #tpu.memory_space<semaphore_mem>> -> memref<!tpu.dma_semaphore, #tpu.memory_space<semaphore_mem>>
    tpu.wait_dma2 semaphore(%171 : memref<!tpu.dma_semaphore, #tpu.memory_space<semaphore_mem>>) src(%168 : memref<1x128xf32, #tpu.memory_space<any>>) dst(%169 : memref<1x128xf32, #tpu.memory_space<vmem>>)
    %c1_i32_145 = arith.constant 1 : i32
    %c0_i32_146 = arith.constant 0 : i32
    %172 = tpu.memref_slice %arg1[%77, %c0_i32_146] : memref<21128x128xf32, #tpu.memory_space<any>> -> memref<1x128xf32, #tpu.memory_space<any>>
    %c49_i32_147 = arith.constant 49 : i32
    %c0_i32_148 = arith.constant 0 : i32
    %173 = tpu.memref_slice %arg13[%c49_i32_147, %c0_i32_148] : memref<64x128xf32, #tpu.memory_space<vmem>> -> memref<1x128xf32, #tpu.memory_space<vmem>>
    %174 = tpu.memref_slice %arg14[%c1_i32_145] : memref<2x!tpu.dma_semaphore, #tpu.memory_space<semaphore_mem>> -> memref<1x!tpu.dma_semaphore, #tpu.memory_space<semaphore_mem>>
    %175 = tpu.memref_squeeze %174 : memref<1x!tpu.dma_semaphore, #tpu.memory_space<semaphore_mem>> -> memref<!tpu.dma_semaphore, #tpu.memory_space<semaphore_mem>>
    tpu.wait_dma2 semaphore(%175 : memref<!tpu.dma_semaphore, #tpu.memory_space<semaphore_mem>>) src(%172 : memref<1x128xf32, #tpu.memory_space<any>>) dst(%173 : memref<1x128xf32, #tpu.memory_space<vmem>>)
    %c0_149 = arith.constant 0 : index
    %c0_150 = arith.constant 0 : index
    %176 = vector.load %arg13[%c0_149, %c0_150] : memref<64x128xf32, #tpu.memory_space<vmem>>, vector<56x128xf32>
    %177 = arith.truncf %176 : vector<56x128xf32> to vector<56x128xbf16>
    %c0_151 = arith.constant 0 : index
    %c0_152 = arith.constant 0 : index
    %178 = vector.load %arg2[%c0_151, %c0_152] : memref<128x384xbf16, #tpu.memory_space<vmem>>, vector<128x384xbf16>
    %cst_153 = arith.constant dense<0.000000e+00> : vector<56x384xf32>
    %179 = tpu.matmul %177, %178, %cst_153 {dimension_numbers = #tpu.dot_dimension_numbers<[1], [0], [0], [1], [0, 0, 1, 1], [], []>} : vector<56x128xbf16>, vector<128x384xbf16>, vector<56x384xf32> -> vector<56x384xf32>
    %c0_154 = arith.constant 0 : index
    %c0_155 = arith.constant 0 : index
    %180 = vector.load %arg5[%c0_154, %c0_155] : memref<1x384xf32, #tpu.memory_space<vmem>>, vector<1x384xf32>
    %181 = vector.broadcast %180 : vector<1x384xf32> to vector<56x384xf32>
    %182 = arith.addf %179, %181 : vector<56x384xf32>
    %c0_156 = arith.constant 0 : index
    %c0_157 = arith.constant 0 : index
    %183 = vector.load %arg4[%c0_156, %c0_157] : memref<128x384xbf16, #tpu.memory_space<vmem>>, vector<128x384xbf16>
    %c0_158 = arith.constant 0 : index
    %c0_159 = arith.constant 0 : index
    %184 = vector.load %arg7[%c0_158, %c0_159] : memref<1x128xf32, #tpu.memory_space<vmem>>, vector<1x128xf32>
    %185 = vector.shape_cast %184 : vector<1x128xf32> to vector<1x128xf32>
    %186 = vector.broadcast %185 : vector<1x128xf32> to vector<8x128xf32>
    %cst_160 = arith.constant 0.000000e+00 : f32
    %187 = vector.broadcast %cst_160 : f32 to vector<8x128xf32>
    %188 = vector.extract_strided_slice %182 {offsets = [0, 0], sizes = [8, 384], strides = [1, 1]} : vector<56x384xf32> to vector<8x384xf32>
    %189 = arith.truncf %187 : vector<8x128xf32> to vector<8x128xbf16>
    %cst_161 = arith.constant dense<0.000000e+00> : vector<8x384xf32>
    %190 = tpu.matmul %189, %183, %cst_161 {dimension_numbers = #tpu.dot_dimension_numbers<[1], [0], [0], [1], [0, 0, 1, 1], [], []>} : vector<8x128xbf16>, vector<128x384xbf16>, vector<8x384xf32> -> vector<8x384xf32>
    %191 = vector.extract_strided_slice %188 {offsets = [0, 0], sizes = [8, 128], strides = [1, 1]} : vector<8x384xf32> to vector<8x128xf32>
    %192 = vector.extract_strided_slice %190 {offsets = [0, 0], sizes = [8, 128], strides = [1, 1]} : vector<8x384xf32> to vector<8x128xf32>
    %193 = arith.addf %191, %192 : vector<8x128xf32>
    %194 = arith.negf %193 : vector<8x128xf32>
    %195 = math.exp %194 : vector<8x128xf32>
    %cst_162 = arith.constant 1.000000e+00 : f32
    %196 = vector.broadcast %cst_162 : f32 to vector<8x128xf32>
    %197 = arith.addf %196, %195 : vector<8x128xf32>
    %198 = arith.divf %196, %197 : vector<8x128xf32>
    %199 = vector.extract_strided_slice %188 {offsets = [0, 128], sizes = [8, 128], strides = [1, 1]} : vector<8x384xf32> to vector<8x128xf32>
    %200 = vector.extract_strided_slice %190 {offsets = [0, 128], sizes = [8, 128], strides = [1, 1]} : vector<8x384xf32> to vector<8x128xf32>
    %201 = arith.addf %199, %200 : vector<8x128xf32>
    %202 = arith.negf %201 : vector<8x128xf32>
    %203 = math.exp %202 : vector<8x128xf32>
    %cst_163 = arith.constant 1.000000e+00 : f32
    %204 = vector.broadcast %cst_163 : f32 to vector<8x128xf32>
    %205 = arith.addf %204, %203 : vector<8x128xf32>
    %206 = arith.divf %204, %205 : vector<8x128xf32>
    %207 = vector.extract_strided_slice %188 {offsets = [0, 256], sizes = [8, 128], strides = [1, 1]} : vector<8x384xf32> to vector<8x128xf32>
    %208 = vector.extract_strided_slice %190 {offsets = [0, 256], sizes = [8, 128], strides = [1, 1]} : vector<8x384xf32> to vector<8x128xf32>
    %209 = arith.addf %208, %186 : vector<8x128xf32>
    %210 = arith.mulf %198, %209 : vector<8x128xf32>
    %211 = arith.addf %207, %210 : vector<8x128xf32>
    %212 = math.tanh %211 : vector<8x128xf32>
    %cst_164 = arith.constant 1.000000e+00 : f32
    %213 = vector.broadcast %cst_164 : f32 to vector<8x128xf32>
    %214 = arith.subf %213, %206 : vector<8x128xf32>
    %215 = arith.mulf %214, %212 : vector<8x128xf32>
    %216 = arith.mulf %206, %187 : vector<8x128xf32>
    %217 = arith.addf %215, %216 : vector<8x128xf32>
    %218 = vector.extract_strided_slice %182 {offsets = [8, 0], sizes = [8, 384], strides = [1, 1]} : vector<56x384xf32> to vector<8x384xf32>
    %219 = arith.truncf %217 : vector<8x128xf32> to vector<8x128xbf16>
    %cst_165 = arith.constant dense<0.000000e+00> : vector<8x384xf32>
    %220 = tpu.matmul %219, %183, %cst_165 {dimension_numbers = #tpu.dot_dimension_numbers<[1], [0], [0], [1], [0, 0, 1, 1], [], []>} : vector<8x128xbf16>, vector<128x384xbf16>, vector<8x384xf32> -> vector<8x384xf32>
    %221 = vector.extract_strided_slice %218 {offsets = [0, 0], sizes = [8, 128], strides = [1, 1]} : vector<8x384xf32> to vector<8x128xf32>
    %222 = vector.extract_strided_slice %220 {offsets = [0, 0], sizes = [8, 128], strides = [1, 1]} : vector<8x384xf32> to vector<8x128xf32>
    %223 = arith.addf %221, %222 : vector<8x128xf32>
    %224 = arith.negf %223 : vector<8x128xf32>
    %225 = math.exp %224 : vector<8x128xf32>
    %cst_166 = arith.constant 1.000000e+00 : f32
    %226 = vector.broadcast %cst_166 : f32 to vector<8x128xf32>
    %227 = arith.addf %226, %225 : vector<8x128xf32>
    %228 = arith.divf %226, %227 : vector<8x128xf32>
    %229 = vector.extract_strided_slice %218 {offsets = [0, 128], sizes = [8, 128], strides = [1, 1]} : vector<8x384xf32> to vector<8x128xf32>
    %230 = vector.extract_strided_slice %220 {offsets = [0, 128], sizes = [8, 128], strides = [1, 1]} : vector<8x384xf32> to vector<8x128xf32>
    %231 = arith.addf %229, %230 : vector<8x128xf32>
    %232 = arith.negf %231 : vector<8x128xf32>
    %233 = math.exp %232 : vector<8x128xf32>
    %cst_167 = arith.constant 1.000000e+00 : f32
    %234 = vector.broadcast %cst_167 : f32 to vector<8x128xf32>
    %235 = arith.addf %234, %233 : vector<8x128xf32>
    %236 = arith.divf %234, %235 : vector<8x128xf32>
    %237 = vector.extract_strided_slice %218 {offsets = [0, 256], sizes = [8, 128], strides = [1, 1]} : vector<8x384xf32> to vector<8x128xf32>
    %238 = vector.extract_strided_slice %220 {offsets = [0, 256], sizes = [8, 128], strides = [1, 1]} : vector<8x384xf32> to vector<8x128xf32>
    %239 = arith.addf %238, %186 : vector<8x128xf32>
    %240 = arith.mulf %228, %239 : vector<8x128xf32>
    %241 = arith.addf %237, %240 : vector<8x128xf32>
    %242 = math.tanh %241 : vector<8x128xf32>
    %cst_168 = arith.constant 1.000000e+00 : f32
    %243 = vector.broadcast %cst_168 : f32 to vector<8x128xf32>
    %244 = arith.subf %243, %236 : vector<8x128xf32>
    %245 = arith.mulf %244, %242 : vector<8x128xf32>
    %246 = arith.mulf %236, %217 : vector<8x128xf32>
    %247 = arith.addf %245, %246 : vector<8x128xf32>
    %248 = vector.extract_strided_slice %182 {offsets = [16, 0], sizes = [8, 384], strides = [1, 1]} : vector<56x384xf32> to vector<8x384xf32>
    %249 = arith.truncf %247 : vector<8x128xf32> to vector<8x128xbf16>
    %cst_169 = arith.constant dense<0.000000e+00> : vector<8x384xf32>
    %250 = tpu.matmul %249, %183, %cst_169 {dimension_numbers = #tpu.dot_dimension_numbers<[1], [0], [0], [1], [0, 0, 1, 1], [], []>} : vector<8x128xbf16>, vector<128x384xbf16>, vector<8x384xf32> -> vector<8x384xf32>
    %251 = vector.extract_strided_slice %248 {offsets = [0, 0], sizes = [8, 128], strides = [1, 1]} : vector<8x384xf32> to vector<8x128xf32>
    %252 = vector.extract_strided_slice %250 {offsets = [0, 0], sizes = [8, 128], strides = [1, 1]} : vector<8x384xf32> to vector<8x128xf32>
    %253 = arith.addf %251, %252 : vector<8x128xf32>
    %254 = arith.negf %253 : vector<8x128xf32>
    %255 = math.exp %254 : vector<8x128xf32>
    %cst_170 = arith.constant 1.000000e+00 : f32
    %256 = vector.broadcast %cst_170 : f32 to vector<8x128xf32>
    %257 = arith.addf %256, %255 : vector<8x128xf32>
    %258 = arith.divf %256, %257 : vector<8x128xf32>
    %259 = vector.extract_strided_slice %248 {offsets = [0, 128], sizes = [8, 128], strides = [1, 1]} : vector<8x384xf32> to vector<8x128xf32>
    %260 = vector.extract_strided_slice %250 {offsets = [0, 128], sizes = [8, 128], strides = [1, 1]} : vector<8x384xf32> to vector<8x128xf32>
    %261 = arith.addf %259, %260 : vector<8x128xf32>
    %262 = arith.negf %261 : vector<8x128xf32>
    %263 = math.exp %262 : vector<8x128xf32>
    %cst_171 = arith.constant 1.000000e+00 : f32
    %264 = vector.broadcast %cst_171 : f32 to vector<8x128xf32>
    %265 = arith.addf %264, %263 : vector<8x128xf32>
    %266 = arith.divf %264, %265 : vector<8x128xf32>
    %267 = vector.extract_strided_slice %248 {offsets = [0, 256], sizes = [8, 128], strides = [1, 1]} : vector<8x384xf32> to vector<8x128xf32>
    %268 = vector.extract_strided_slice %250 {offsets = [0, 256], sizes = [8, 128], strides = [1, 1]} : vector<8x384xf32> to vector<8x128xf32>
    %269 = arith.addf %268, %186 : vector<8x128xf32>
    %270 = arith.mulf %258, %269 : vector<8x128xf32>
    %271 = arith.addf %267, %270 : vector<8x128xf32>
    %272 = math.tanh %271 : vector<8x128xf32>
    %cst_172 = arith.constant 1.000000e+00 : f32
    %273 = vector.broadcast %cst_172 : f32 to vector<8x128xf32>
    %274 = arith.subf %273, %266 : vector<8x128xf32>
    %275 = arith.mulf %274, %272 : vector<8x128xf32>
    %276 = arith.mulf %266, %247 : vector<8x128xf32>
    %277 = arith.addf %275, %276 : vector<8x128xf32>
    %278 = vector.extract_strided_slice %182 {offsets = [24, 0], sizes = [8, 384], strides = [1, 1]} : vector<56x384xf32> to vector<8x384xf32>
    %279 = arith.truncf %277 : vector<8x128xf32> to vector<8x128xbf16>
    %cst_173 = arith.constant dense<0.000000e+00> : vector<8x384xf32>
    %280 = tpu.matmul %279, %183, %cst_173 {dimension_numbers = #tpu.dot_dimension_numbers<[1], [0], [0], [1], [0, 0, 1, 1], [], []>} : vector<8x128xbf16>, vector<128x384xbf16>, vector<8x384xf32> -> vector<8x384xf32>
    %281 = vector.extract_strided_slice %278 {offsets = [0, 0], sizes = [8, 128], strides = [1, 1]} : vector<8x384xf32> to vector<8x128xf32>
    %282 = vector.extract_strided_slice %280 {offsets = [0, 0], sizes = [8, 128], strides = [1, 1]} : vector<8x384xf32> to vector<8x128xf32>
    %283 = arith.addf %281, %282 : vector<8x128xf32>
    %284 = arith.negf %283 : vector<8x128xf32>
    %285 = math.exp %284 : vector<8x128xf32>
    %cst_174 = arith.constant 1.000000e+00 : f32
    %286 = vector.broadcast %cst_174 : f32 to vector<8x128xf32>
    %287 = arith.addf %286, %285 : vector<8x128xf32>
    %288 = arith.divf %286, %287 : vector<8x128xf32>
    %289 = vector.extract_strided_slice %278 {offsets = [0, 128], sizes = [8, 128], strides = [1, 1]} : vector<8x384xf32> to vector<8x128xf32>
    %290 = vector.extract_strided_slice %280 {offsets = [0, 128], sizes = [8, 128], strides = [1, 1]} : vector<8x384xf32> to vector<8x128xf32>
    %291 = arith.addf %289, %290 : vector<8x128xf32>
    %292 = arith.negf %291 : vector<8x128xf32>
    %293 = math.exp %292 : vector<8x128xf32>
    %cst_175 = arith.constant 1.000000e+00 : f32
    %294 = vector.broadcast %cst_175 : f32 to vector<8x128xf32>
    %295 = arith.addf %294, %293 : vector<8x128xf32>
    %296 = arith.divf %294, %295 : vector<8x128xf32>
    %297 = vector.extract_strided_slice %278 {offsets = [0, 256], sizes = [8, 128], strides = [1, 1]} : vector<8x384xf32> to vector<8x128xf32>
    %298 = vector.extract_strided_slice %280 {offsets = [0, 256], sizes = [8, 128], strides = [1, 1]} : vector<8x384xf32> to vector<8x128xf32>
    %299 = arith.addf %298, %186 : vector<8x128xf32>
    %300 = arith.mulf %288, %299 : vector<8x128xf32>
    %301 = arith.addf %297, %300 : vector<8x128xf32>
    %302 = math.tanh %301 : vector<8x128xf32>
    %cst_176 = arith.constant 1.000000e+00 : f32
    %303 = vector.broadcast %cst_176 : f32 to vector<8x128xf32>
    %304 = arith.subf %303, %296 : vector<8x128xf32>
    %305 = arith.mulf %304, %302 : vector<8x128xf32>
    %306 = arith.mulf %296, %277 : vector<8x128xf32>
    %307 = arith.addf %305, %306 : vector<8x128xf32>
    %308 = vector.extract_strided_slice %182 {offsets = [32, 0], sizes = [8, 384], strides = [1, 1]} : vector<56x384xf32> to vector<8x384xf32>
    %309 = arith.truncf %307 : vector<8x128xf32> to vector<8x128xbf16>
    %cst_177 = arith.constant dense<0.000000e+00> : vector<8x384xf32>
    %310 = tpu.matmul %309, %183, %cst_177 {dimension_numbers = #tpu.dot_dimension_numbers<[1], [0], [0], [1], [0, 0, 1, 1], [], []>} : vector<8x128xbf16>, vector<128x384xbf16>, vector<8x384xf32> -> vector<8x384xf32>
    %311 = vector.extract_strided_slice %308 {offsets = [0, 0], sizes = [8, 128], strides = [1, 1]} : vector<8x384xf32> to vector<8x128xf32>
    %312 = vector.extract_strided_slice %310 {offsets = [0, 0], sizes = [8, 128], strides = [1, 1]} : vector<8x384xf32> to vector<8x128xf32>
    %313 = arith.addf %311, %312 : vector<8x128xf32>
    %314 = arith.negf %313 : vector<8x128xf32>
    %315 = math.exp %314 : vector<8x128xf32>
    %cst_178 = arith.constant 1.000000e+00 : f32
    %316 = vector.broadcast %cst_178 : f32 to vector<8x128xf32>
    %317 = arith.addf %316, %315 : vector<8x128xf32>
    %318 = arith.divf %316, %317 : vector<8x128xf32>
    %319 = vector.extract_strided_slice %308 {offsets = [0, 128], sizes = [8, 128], strides = [1, 1]} : vector<8x384xf32> to vector<8x128xf32>
    %320 = vector.extract_strided_slice %310 {offsets = [0, 128], sizes = [8, 128], strides = [1, 1]} : vector<8x384xf32> to vector<8x128xf32>
    %321 = arith.addf %319, %320 : vector<8x128xf32>
    %322 = arith.negf %321 : vector<8x128xf32>
    %323 = math.exp %322 : vector<8x128xf32>
    %cst_179 = arith.constant 1.000000e+00 : f32
    %324 = vector.broadcast %cst_179 : f32 to vector<8x128xf32>
    %325 = arith.addf %324, %323 : vector<8x128xf32>
    %326 = arith.divf %324, %325 : vector<8x128xf32>
    %327 = vector.extract_strided_slice %308 {offsets = [0, 256], sizes = [8, 128], strides = [1, 1]} : vector<8x384xf32> to vector<8x128xf32>
    %328 = vector.extract_strided_slice %310 {offsets = [0, 256], sizes = [8, 128], strides = [1, 1]} : vector<8x384xf32> to vector<8x128xf32>
    %329 = arith.addf %328, %186 : vector<8x128xf32>
    %330 = arith.mulf %318, %329 : vector<8x128xf32>
    %331 = arith.addf %327, %330 : vector<8x128xf32>
    %332 = math.tanh %331 : vector<8x128xf32>
    %cst_180 = arith.constant 1.000000e+00 : f32
    %333 = vector.broadcast %cst_180 : f32 to vector<8x128xf32>
    %334 = arith.subf %333, %326 : vector<8x128xf32>
    %335 = arith.mulf %334, %332 : vector<8x128xf32>
    %336 = arith.mulf %326, %307 : vector<8x128xf32>
    %337 = arith.addf %335, %336 : vector<8x128xf32>
    %338 = vector.extract_strided_slice %182 {offsets = [40, 0], sizes = [8, 384], strides = [1, 1]} : vector<56x384xf32> to vector<8x384xf32>
    %339 = arith.truncf %337 : vector<8x128xf32> to vector<8x128xbf16>
    %cst_181 = arith.constant dense<0.000000e+00> : vector<8x384xf32>
    %340 = tpu.matmul %339, %183, %cst_181 {dimension_numbers = #tpu.dot_dimension_numbers<[1], [0], [0], [1], [0, 0, 1, 1], [], []>} : vector<8x128xbf16>, vector<128x384xbf16>, vector<8x384xf32> -> vector<8x384xf32>
    %341 = vector.extract_strided_slice %338 {offsets = [0, 0], sizes = [8, 128], strides = [1, 1]} : vector<8x384xf32> to vector<8x128xf32>
    %342 = vector.extract_strided_slice %340 {offsets = [0, 0], sizes = [8, 128], strides = [1, 1]} : vector<8x384xf32> to vector<8x128xf32>
    %343 = arith.addf %341, %342 : vector<8x128xf32>
    %344 = arith.negf %343 : vector<8x128xf32>
    %345 = math.exp %344 : vector<8x128xf32>
    %cst_182 = arith.constant 1.000000e+00 : f32
    %346 = vector.broadcast %cst_182 : f32 to vector<8x128xf32>
    %347 = arith.addf %346, %345 : vector<8x128xf32>
    %348 = arith.divf %346, %347 : vector<8x128xf32>
    %349 = vector.extract_strided_slice %338 {offsets = [0, 128], sizes = [8, 128], strides = [1, 1]} : vector<8x384xf32> to vector<8x128xf32>
    %350 = vector.extract_strided_slice %340 {offsets = [0, 128], sizes = [8, 128], strides = [1, 1]} : vector<8x384xf32> to vector<8x128xf32>
    %351 = arith.addf %349, %350 : vector<8x128xf32>
    %352 = arith.negf %351 : vector<8x128xf32>
    %353 = math.exp %352 : vector<8x128xf32>
    %cst_183 = arith.constant 1.000000e+00 : f32
    %354 = vector.broadcast %cst_183 : f32 to vector<8x128xf32>
    %355 = arith.addf %354, %353 : vector<8x128xf32>
    %356 = arith.divf %354, %355 : vector<8x128xf32>
    %357 = vector.extract_strided_slice %338 {offsets = [0, 256], sizes = [8, 128], strides = [1, 1]} : vector<8x384xf32> to vector<8x128xf32>
    %358 = vector.extract_strided_slice %340 {offsets = [0, 256], sizes = [8, 128], strides = [1, 1]} : vector<8x384xf32> to vector<8x128xf32>
    %359 = arith.addf %358, %186 : vector<8x128xf32>
    %360 = arith.mulf %348, %359 : vector<8x128xf32>
    %361 = arith.addf %357, %360 : vector<8x128xf32>
    %362 = math.tanh %361 : vector<8x128xf32>
    %cst_184 = arith.constant 1.000000e+00 : f32
    %363 = vector.broadcast %cst_184 : f32 to vector<8x128xf32>
    %364 = arith.subf %363, %356 : vector<8x128xf32>
    %365 = arith.mulf %364, %362 : vector<8x128xf32>
    %366 = arith.mulf %356, %337 : vector<8x128xf32>
    %367 = arith.addf %365, %366 : vector<8x128xf32>
    %368 = vector.extract_strided_slice %182 {offsets = [48, 0], sizes = [8, 384], strides = [1, 1]} : vector<56x384xf32> to vector<8x384xf32>
    %369 = arith.truncf %367 : vector<8x128xf32> to vector<8x128xbf16>
    %cst_185 = arith.constant dense<0.000000e+00> : vector<8x384xf32>
    %370 = tpu.matmul %369, %183, %cst_185 {dimension_numbers = #tpu.dot_dimension_numbers<[1], [0], [0], [1], [0, 0, 1, 1], [], []>} : vector<8x128xbf16>, vector<128x384xbf16>, vector<8x384xf32> -> vector<8x384xf32>
    %371 = vector.extract_strided_slice %368 {offsets = [0, 0], sizes = [8, 128], strides = [1, 1]} : vector<8x384xf32> to vector<8x128xf32>
    %372 = vector.extract_strided_slice %370 {offsets = [0, 0], sizes = [8, 128], strides = [1, 1]} : vector<8x384xf32> to vector<8x128xf32>
    %373 = arith.addf %371, %372 : vector<8x128xf32>
    %374 = arith.negf %373 : vector<8x128xf32>
    %375 = math.exp %374 : vector<8x128xf32>
    %cst_186 = arith.constant 1.000000e+00 : f32
    %376 = vector.broadcast %cst_186 : f32 to vector<8x128xf32>
    %377 = arith.addf %376, %375 : vector<8x128xf32>
    %378 = arith.divf %376, %377 : vector<8x128xf32>
    %379 = vector.extract_strided_slice %368 {offsets = [0, 128], sizes = [8, 128], strides = [1, 1]} : vector<8x384xf32> to vector<8x128xf32>
    %380 = vector.extract_strided_slice %370 {offsets = [0, 128], sizes = [8, 128], strides = [1, 1]} : vector<8x384xf32> to vector<8x128xf32>
    %381 = arith.addf %379, %380 : vector<8x128xf32>
    %382 = arith.negf %381 : vector<8x128xf32>
    %383 = math.exp %382 : vector<8x128xf32>
    %cst_187 = arith.constant 1.000000e+00 : f32
    %384 = vector.broadcast %cst_187 : f32 to vector<8x128xf32>
    %385 = arith.addf %384, %383 : vector<8x128xf32>
    %386 = arith.divf %384, %385 : vector<8x128xf32>
    %387 = vector.extract_strided_slice %368 {offsets = [0, 256], sizes = [8, 128], strides = [1, 1]} : vector<8x384xf32> to vector<8x128xf32>
    %388 = vector.extract_strided_slice %370 {offsets = [0, 256], sizes = [8, 128], strides = [1, 1]} : vector<8x384xf32> to vector<8x128xf32>
    %389 = arith.addf %388, %186 : vector<8x128xf32>
    %390 = arith.mulf %378, %389 : vector<8x128xf32>
    %391 = arith.addf %387, %390 : vector<8x128xf32>
    %392 = math.tanh %391 : vector<8x128xf32>
    %cst_188 = arith.constant 1.000000e+00 : f32
    %393 = vector.broadcast %cst_188 : f32 to vector<8x128xf32>
    %394 = arith.subf %393, %386 : vector<8x128xf32>
    %395 = arith.mulf %394, %392 : vector<8x128xf32>
    %396 = arith.mulf %386, %367 : vector<8x128xf32>
    %397 = arith.addf %395, %396 : vector<8x128xf32>
    %398 = arith.truncf %397 : vector<8x128xf32> to vector<8x128xbf16>
    %cst_189 = arith.constant dense<0.000000e+00> : vector<8x384xf32>
    %399 = tpu.matmul %398, %183, %cst_189 {dimension_numbers = #tpu.dot_dimension_numbers<[1], [0], [0], [1], [0, 0, 1, 1], [], []>} : vector<8x128xbf16>, vector<128x384xbf16>, vector<8x384xf32> -> vector<8x384xf32>
    %400 = vector.extract_strided_slice %97 {offsets = [0, 0], sizes = [8, 128], strides = [1, 1]} : vector<8x384xf32> to vector<8x128xf32>
    %401 = vector.extract_strided_slice %399 {offsets = [0, 0], sizes = [8, 128], strides = [1, 1]} : vector<8x384xf32> to vector<8x128xf32>
    %402 = arith.addf %400, %401 : vector<8x128xf32>
    %403 = arith.negf %402 : vector<8x128xf32>
    %404 = math.exp %403 : vector<8x128xf32>
    %cst_190 = arith.constant 1.000000e+00 : f32
    %405 = vector.broadcast %cst_190 : f32 to vector<8x128xf32>
    %406 = arith.addf %405, %404 : vector<8x128xf32>
    %407 = arith.divf %405, %406 : vector<8x128xf32>
    %408 = vector.extract_strided_slice %97 {offsets = [0, 128], sizes = [8, 128], strides = [1, 1]} : vector<8x384xf32> to vector<8x128xf32>
    %409 = vector.extract_strided_slice %399 {offsets = [0, 128], sizes = [8, 128], strides = [1, 1]} : vector<8x384xf32> to vector<8x128xf32>
    %410 = arith.addf %408, %409 : vector<8x128xf32>
    %411 = arith.negf %410 : vector<8x128xf32>
    %412 = math.exp %411 : vector<8x128xf32>
    %cst_191 = arith.constant 1.000000e+00 : f32
    %413 = vector.broadcast %cst_191 : f32 to vector<8x128xf32>
    %414 = arith.addf %413, %412 : vector<8x128xf32>
    %415 = arith.divf %413, %414 : vector<8x128xf32>
    %416 = vector.extract_strided_slice %97 {offsets = [0, 256], sizes = [8, 128], strides = [1, 1]} : vector<8x384xf32> to vector<8x128xf32>
    %417 = vector.extract_strided_slice %399 {offsets = [0, 256], sizes = [8, 128], strides = [1, 1]} : vector<8x384xf32> to vector<8x128xf32>
    %418 = arith.addf %417, %186 : vector<8x128xf32>
    %419 = arith.mulf %407, %418 : vector<8x128xf32>
    %420 = arith.addf %416, %419 : vector<8x128xf32>
    %421 = math.tanh %420 : vector<8x128xf32>
    %cst_192 = arith.constant 1.000000e+00 : f32
    %422 = vector.broadcast %cst_192 : f32 to vector<8x128xf32>
    %423 = arith.subf %422, %415 : vector<8x128xf32>
    %424 = arith.mulf %423, %421 : vector<8x128xf32>
    %425 = arith.mulf %415, %397 : vector<8x128xf32>
    %426 = arith.addf %424, %425 : vector<8x128xf32>
    %427 = arith.truncf %426 : vector<8x128xf32> to vector<8x128xbf16>
    %c0_193 = arith.constant 0 : index
    %c0_194 = arith.constant 0 : index
    %428 = vector.load %arg9[%c0_193, %c0_194] : memref<128x8xbf16, #tpu.memory_space<vmem>>, vector<128x8xbf16>
    %cst_195 = arith.constant dense<0.000000e+00> : vector<8x8xf32>
    %429 = tpu.matmul %427, %428, %cst_195 {dimension_numbers = #tpu.dot_dimension_numbers<[1], [0], [0], [1], [0, 0, 1, 1], [], []>} : vector<8x128xbf16>, vector<128x8xbf16>, vector<8x8xf32> -> vector<8x8xf32>
    %430 = arith.truncf %119 : vector<8x128xf32> to vector<8x128xbf16>
    %c0_196 = arith.constant 0 : index
    %c0_197 = arith.constant 0 : index
    %431 = vector.load %arg10[%c0_196, %c0_197] : memref<128x8xbf16, #tpu.memory_space<vmem>>, vector<128x8xbf16>
    %cst_198 = arith.constant dense<0.000000e+00> : vector<8x8xf32>
    %432 = tpu.matmul %430, %431, %cst_198 {dimension_numbers = #tpu.dot_dimension_numbers<[1], [0], [0], [1], [0, 0, 1, 1], [], []>} : vector<8x128xbf16>, vector<128x8xbf16>, vector<8x8xf32> -> vector<8x8xf32>
    %433 = arith.addf %429, %432 : vector<8x8xf32>
    %c0_199 = arith.constant 0 : index
    %c0_200 = arith.constant 0 : index
    %434 = vector.load %arg11[%c0_199, %c0_200] : memref<1x8xf32, #tpu.memory_space<vmem>>, vector<1x8xf32>
    %435 = vector.broadcast %434 : vector<1x8xf32> to vector<8x8xf32>
    %436 = arith.addf %433, %435 : vector<8x8xf32>
    %c0_201 = arith.constant 0 : index
    %c0_202 = arith.constant 0 : index
    %437 = vector.load %arg12[%c0_201, %c0_202] : memref<8x8xf32, #tpu.memory_space<vmem>>, vector<8x8xf32>
    tpu.vector_store %arg12[%c0_201, %c0_202], %436 {strides = array<i32>} : memref<8x8xf32, #tpu.memory_space<vmem>>, vector<8x8xf32>,
    return
  }
}

</mosaic_0001>

<llo_original>
// kernel: trans_forward.1
$region0: #{trans_forward.1}
  #allocation0 [shape = 'u32[]', space=smem, size = 0x4, offset = 0x4, fixed_abs, tag = 'smem constant byte address 0x4 - core index']
  #allocation1 [shape = 'u32[144,128]{1,0:T(1,128)}', space=vmem, size = 0x12000, scoped, tag = 'internal scratch']
  #allocation2 [shape = 'f32[64,128]{1,0:T(8,128)}', space=vmem, size = 0x8000, scoped, tag = 'scratch operand']
  #allocation3 [shape = 's32[2]{0}', space=sflag, size = 0x8, scoped, tag = 'scratch operand']
  #allocation8 [shape = 's32[]', space=sflag, size = 0x4, offset = 0, fixed_abs, tag = 'sflag constant byte address 0x0 - dummy sync flag']
  #allocation9 [shape = 's32[]', space=sflag, size = 0x4, offset = 0, fixed_abs, tag = 'sflag constant byte address 0x0 - dummy sync flag']
  #allocation10 [shape = 'u32[]', space=smem, size = 0x4, offset = 0x44, fixed_abs, tag = 'smem constant byte address 0x44 - assertion arg 0']
  #allocation11 [shape = 'u32[]', space=smem, size = 0x4, offset = 0x48, fixed_abs, tag = 'smem constant byte address 0x48 - assertion arg 1']
  #allocation12 [shape = 's32[]', space=sflag, size = 0x4, offset = 0, fixed_abs, tag = 'sflag constant byte address 0x0 - dummy sync flag']
  #allocation13 [shape = 's32[]', space=sflag, size = 0x4, offset = 0, fixed_abs, tag = 'sflag constant byte address 0x0 - dummy sync flag']
  #allocation14 [shape = 's32[]', space=sflag, size = 0x4, offset = 0, fixed_abs, tag = 'sflag constant byte address 0x0 - dummy sync flag']
  #allocation15 [shape = 's32[]', space=sflag, size = 0x4, offset = 0, fixed_abs, tag = 'sflag constant byte address 0x0 - dummy sync flag']
  #allocation16 [shape = 's32[]', space=sflag, size = 0x4, offset = 0, fixed_abs, tag = 'sflag constant byte address 0x0 - dummy sync flag']
  #allocation17 [shape = 's32[]', space=sflag, size = 0x4, offset = 0, fixed_abs, tag = 'sflag constant byte address 0x0 - dummy sync flag']
  #allocation18 [shape = 's32[]', space=sflag, size = 0x4, offset = 0, fixed_abs, tag = 'sflag constant byte address 0x0 - dummy sync flag']
  #allocation19 [shape = 's32[]', space=sflag, size = 0x4, offset = 0, fixed_abs, tag = 'sflag constant byte address 0x0 - dummy sync flag']
  #allocation20 [shape = 's32[]', space=sflag, size = 0x4, offset = 0, fixed_abs, tag = 'sflag constant byte address 0x0 - dummy sync flag']
  #allocation21 [shape = 's32[]', space=sflag, size = 0x4, offset = 0, fixed_abs, tag = 'sflag constant byte address 0x0 - dummy sync flag']
  #allocation22 [shape = 's32[]', space=sflag, size = 0x4, offset = 0, fixed_abs, tag = 'sflag constant byte address 0x0 - dummy sync flag']
  #allocation23 [shape = 's32[]', space=sflag, size = 0x4, offset = 0, fixed_abs, tag = 'sflag constant byte address 0x0 - dummy sync flag']
  #allocation24 [shape = 's32[]', space=sflag, size = 0x4, offset = 0, fixed_abs, tag = 'sflag constant byte address 0x0 - dummy sync flag']
  #allocation25 [shape = 's32[]', space=sflag, size = 0x4, offset = 0, fixed_abs, tag = 'sflag constant byte address 0x0 - dummy sync flag']
  #allocation26 [shape = 's32[]', space=sflag, size = 0x4, offset = 0, fixed_abs, tag = 'sflag constant byte address 0x0 - dummy sync flag']
  #allocation27 [shape = 's32[]', space=sflag, size = 0x4, offset = 0, fixed_abs, tag = 'sflag constant byte address 0x0 - dummy sync flag']
  #allocation28 [shape = 's32[]', space=sflag, size = 0x4, offset = 0, fixed_abs, tag = 'sflag constant byte address 0x0 - dummy sync flag']
  #allocation29 [shape = 's32[]', space=sflag, size = 0x4, offset = 0, fixed_abs, tag = 'sflag constant byte address 0x0 - dummy sync flag']
  #allocation30 [shape = 's32[]', space=sflag, size = 0x4, offset = 0, fixed_abs, tag = 'sflag constant byte address 0x0 - dummy sync flag']
  #allocation31 [shape = 's32[]', space=sflag, size = 0x4, offset = 0, fixed_abs, tag = 'sflag constant byte address 0x0 - dummy sync flag']
  #allocation32 [shape = 's32[]', space=sflag, size = 0x4, offset = 0, fixed_abs, tag = 'sflag constant byte address 0x0 - dummy sync flag']
  #allocation33 [shape = 's32[]', space=sflag, size = 0x4, offset = 0, fixed_abs, tag = 'sflag constant byte address 0x0 - dummy sync flag']
  #allocation34 [shape = 's32[]', space=sflag, size = 0x4, offset = 0, fixed_abs, tag = 'sflag constant byte address 0x0 - dummy sync flag']
  #allocation35 [shape = 's32[]', space=sflag, size = 0x4, offset = 0, fixed_abs, tag = 'sflag constant byte address 0x0 - dummy sync flag']
  #allocation36 [shape = 's32[]', space=sflag, size = 0x4, offset = 0, fixed_abs, tag = 'sflag constant byte address 0x0 - dummy sync flag']
  #allocation37 [shape = 's32[]', space=sflag, size = 0x4, offset = 0, fixed_abs, tag = 'sflag constant byte address 0x0 - dummy sync flag']
  #allocation38 [shape = 's32[]', space=sflag, size = 0x4, offset = 0, fixed_abs, tag = 'sflag constant byte address 0x0 - dummy sync flag']
  #allocation39 [shape = 's32[]', space=sflag, size = 0x4, offset = 0, fixed_abs, tag = 'sflag constant byte address 0x0 - dummy sync flag']
  #allocation40 [shape = 's32[]', space=sflag, size = 0x4, offset = 0, fixed_abs, tag = 'sflag constant byte address 0x0 - dummy sync flag']
  #allocation41 [shape = 's32[]', space=sflag, size = 0x4, offset = 0, fixed_abs, tag = 'sflag constant byte address 0x0 - dummy sync flag']
  %s0 = inlined_call_operand.hbm [shape: s32[2,8], index: 0, kind: input, shape index: {}]
  %s1 = inlined_call_operand.hbm [shape: f32[21128,128], index: 1, kind: input, shape index: {}]
  %s2 = inlined_call_operand.vmem [shape: bf16[128,384], index: 2, kind: input, shape index: {}]
  %s3 = inlined_call_operand.vmem [shape: bf16[128,768], index: 3, kind: input, shape index: {}]
  %s4 = inlined_call_operand.vmem [shape: bf16[128,384], index: 4, kind: input, shape index: {}]
  %s5 = inlined_call_operand.vmem [shape: f32[1,384], index: 5, kind: input, shape index: {}]
  %s6 = inlined_call_operand.vmem [shape: f32[1,768], index: 6, kind: input, shape index: {}]
  %s7 = inlined_call_operand.vmem [shape: f32[1,128], index: 7, kind: input, shape index: {}]
  %s8 = inlined_call_operand.vmem [shape: f32[1,128], index: 8, kind: input, shape index: {}]
  %s9 = inlined_call_operand.vmem [shape: bf16[128,8], index: 9, kind: input, shape index: {}]
  %s10 = inlined_call_operand.vmem [shape: bf16[128,8], index: 10, kind: input, shape index: {}]
  %s11 = inlined_call_operand.hbm [shape: f32[1,8], index: 11, kind: input, shape index: {}]
  %s12 = inlined_call_operand.vmem [shape: f32[8,8], index: 12, kind: output, shape index: {}]
  %s13 = sld [smem:[#allocation0]]
  $region126: #{trans_forward.1} parent=0
    _
  %s15 = ssub.s32 1, %s13
  %s16 = scalar_select 0, %s15, %s13
  $region1: #{trans_forward.1} parent=0
    #allocation4 [shape = 'u8[1024]{0}', space=smem, size = 0x400, scoped, tag = 'input window, operand 0, single buffered']
    #allocation5 [shape = 's32[1]{0}', space=sflag, size = 0x4, scoped, tag = 'scoped memory for trans_forward.1']
    #allocation6 [shape = 's32[1]{0}', space=sflag, size = 0x4, scoped, tag = 'scoped memory for trans_forward.1']
    #allocation7 [shape = 'u8[512]{0}', space=vmem, size = 0x400, scoped, tag = 'input window, operand 11, single buffered']
    %17 = vsyncpa [#allocation6], 0
    %18 = vsyncpa [#allocation5], 0
    // Predicated region
    $region2: #{trans_forward.1} parent=1 // pred_check
      _
    $region3: #{trans_forward.1} parent=1 // pred_check_branch
      %20 = sbr.rel (0) target = $region5
    $region4: #{trans_forward.1} parent=1 // pred_region
      %s22 = ssub.s32 32, 32
      %23 = vsyncadd [#allocation6], %s22
      %26 = dma.hbm_to_smem %s0, 32, [#allocation4], [#allocation6]
    $region5: #{trans_forward.1} parent=1 // pred_fallthru
      _
    // Predicated region
    $region6: #{trans_forward.1} parent=1 // pred_check
      _
    $region7: #{trans_forward.1} parent=1 // pred_check_branch
      %28 = sbr.rel (0) target = $region9
    $region8: #{trans_forward.1} parent=1 // pred_region
      _
    $region9: #{trans_forward.1} parent=1 // pred_fallthru
      _
    // Predicated region
    $region10: #{trans_forward.1} parent=1 // pred_check
      _
    $region11: #{trans_forward.1} parent=1 // pred_check_branch
      %30 = sbr.rel (0) target = $region13
    $region12: #{trans_forward.1} parent=1 // pred_region
      _
    $region13: #{trans_forward.1} parent=1 // pred_fallthru
      _
    // Predicated region
    $region14: #{trans_forward.1} parent=1 // pred_check
      _
    $region15: #{trans_forward.1} parent=1 // pred_check_branch
      %32 = sbr.rel (0) target = $region17
    $region16: #{trans_forward.1} parent=1 // pred_region
      _
    $region17: #{trans_forward.1} parent=1 // pred_fallthru
      _
    // Predicated region
    $region18: #{trans_forward.1} parent=1 // pred_check
      _
    $region19: #{trans_forward.1} parent=1 // pred_check_branch
      %34 = sbr.rel (0) target = $region21
    $region20: #{trans_forward.1} parent=1 // pred_region
      _
    $region21: #{trans_forward.1} parent=1 // pred_fallthru
      _
    // Predicated region
    $region22: #{trans_forward.1} parent=1 // pred_check
      _
    $region23: #{trans_forward.1} parent=1 // pred_check_branch
      %36 = sbr.rel (0) target = $region25
    $region24: #{trans_forward.1} parent=1 // pred_region
      _
    $region25: #{trans_forward.1} parent=1 // pred_fallthru
      _
    // Predicated region
    $region26: #{trans_forward.1} parent=1 // pred_check
      _
    $region27: #{trans_forward.1} parent=1 // pred_check_branch
      %38 = sbr.rel (0) target = $region29
    $region28: #{trans_forward.1} parent=1 // pred_region
      _
    $region29: #{trans_forward.1} parent=1 // pred_fallthru
      _
    // Predicated region
    $region30: #{trans_forward.1} parent=1 // pred_check
      _
    $region31: #{trans_forward.1} parent=1 // pred_check_branch
      %40 = sbr.rel (0) target = $region33
    $region32: #{trans_forward.1} parent=1 // pred_region
      _
    $region33: #{trans_forward.1} parent=1 // pred_fallthru
      _
    // Predicated region
    $region34: #{trans_forward.1} parent=1 // pred_check
      _
    $region35: #{trans_forward.1} parent=1 // pred_check_branch
      %42 = sbr.rel (0) target = $region37
    $region36: #{trans_forward.1} parent=1 // pred_region
      _
    $region37: #{trans_forward.1} parent=1 // pred_fallthru
      _
    // Predicated region
    $region38: #{trans_forward.1} parent=1 // pred_check
      _
    $region39: #{trans_forward.1} parent=1 // pred_check_branch
      %44 = sbr.rel (0) target = $region41
    $region40: #{trans_forward.1} parent=1 // pred_region
      _
    $region41: #{trans_forward.1} parent=1 // pred_fallthru
      _
    // Predicated region
    $region42: #{trans_forward.1} parent=1 // pred_check
      _
    $region43: #{trans_forward.1} parent=1 // pred_check_branch
      %46 = sbr.rel (0) target = $region45
    $region44: #{trans_forward.1} parent=1 // pred_region
      %s48 = ssub.s32 16, 16
      %49 = vsyncadd [#allocation5], %s48
      %s51 = sshll.u32 [#allocation7], 4
      %s52 = int_to_ptr.vmem [resolvable:$true] %s51
      %54 = dma.hbm_to_vmem [thread:$0]  %s11, 16, %s52, [#allocation5]
    $region45: #{trans_forward.1} parent=1 // pred_fallthru
      _
    // Predicated region
    $region46: #{trans_forward.1} parent=1 // pred_check
      _
    $region47: #{trans_forward.1} parent=1 // pred_check_branch
      %56 = sbr.rel (0) target = $region49
    $region48: #{trans_forward.1} parent=1 // pred_region
      %57 = dma.done [#allocation6], 32
    $region49: #{trans_forward.1} parent=1 // pred_fallthru
      _
    // Predicated region
    $region50: #{trans_forward.1} parent=1 // pred_check
      _
    $region51: #{trans_forward.1} parent=1 // pred_check_branch
      %59 = sbr.rel (0) target = $region53
    $region52: #{trans_forward.1} parent=1 // pred_region
      %60 = dma.done [#allocation5], 16
    $region53: #{trans_forward.1} parent=1 // pred_fallthru
      _
    %61 = sfence
    %63 = vst [vmem:[#allocation2] sm:$0xff] 0.0
    %64 = vst [vmem:[#allocation2 + $0x8] sm:$0xff] 0.0
    %65 = vst [vmem:[#allocation2 + $0x10] sm:$0xff] 0.0
    %66 = vst [vmem:[#allocation2 + $0x18] sm:$0xff] 0.0
    %67 = vst [vmem:[#allocation2 + $0x20] sm:$0xff] 0.0
    %68 = vst [vmem:[#allocation2 + $0x28] sm:$0xff] 0.0
    %69 = vst [vmem:[#allocation2 + $0x30] sm:$0xff] 0.0
    %70 = vst [vmem:[#allocation2 + $0x38] sm:$0xff] 0.0
    %s71 = sld [smem:[#allocation4 + $0x7]]
    %s72 = smul.addr %s71, 16
    %s73 = scalar_lea.hbm %s1, %s72
    %s74 = scalar_lea.vmem [#allocation2], 56
    // Predicated region
    $region54: #{trans_forward.1} parent=1 // pred_check
      _
    $region55: #{trans_forward.1} parent=1 // pred_check_branch
      %76 = sbr.rel target = $region57
    $region56: #{trans_forward.1} parent=1 // pred_region
      %77 = sst [smem:[#allocation10]] [#allocation9]
      %78 = sst [smem:[#allocation11]] [#allocation8]
    $region57: #{trans_forward.1} parent=1 // pred_fallthru
      _
    %80 = shalt.err (0)
    %s82 = sshll.u32 %s74, 4
    %s83 = int_to_ptr.vmem [resolvable:$true] %s82
    %85 = dma.hbm_to_vmem [thread:$0]  %s73, 16, %s83, [#allocation3]
    %s86 = sld [smem:[#allocation4 + $0x87]]
    %s87 = smul.addr %s86, 16
    %s88 = scalar_lea.hbm %s1, %s87
    %s89 = scalar_lea.vmem [#allocation2], 57
    // Predicated region
    $region58: #{trans_forward.1} parent=1 // pred_check
      _
    $region59: #{trans_forward.1} parent=1 // pred_check_branch
      %91 = sbr.rel target = $region61
    $region60: #{trans_forward.1} parent=1 // pred_region
      %92 = sst [smem:[#allocation10]] [#allocation13]
      %93 = sst [smem:[#allocation11]] [#allocation12]
    $region61: #{trans_forward.1} parent=1 // pred_fallthru
      _
    %95 = shalt.err (0)
    %s97 = sshll.u32 %s89, 4
    %s98 = int_to_ptr.vmem [resolvable:$true] %s97
    %100 = dma.hbm_to_vmem [thread:$0]  %s88, 16, %s98, [#allocation3]
    %s101 = sld [smem:[#allocation4]]
    %s102 = smul.addr %s101, 16
    %s103 = scalar_lea.hbm %s1, %s102
    %s104 = scalar_lea.sflag [#allocation3], 1
    // Predicated region
    $region62: #{trans_forward.1} parent=1 // pred_check
      _
    $region63: #{trans_forward.1} parent=1 // pred_check_branch
      %106 = sbr.rel target = $region65
    $region64: #{trans_forward.1} parent=1 // pred_region
      %107 = sst [smem:[#allocation10]] [#allocation15]
      %108 = sst [smem:[#allocation11]] [#allocation14]
    $region65: #{trans_forward.1} parent=1 // pred_fallthru
      _
    %110 = shalt.err (0)
    %s112 = sshll.u32 [#allocation2], 4
    %s113 = int_to_ptr.vmem [resolvable:$true] %s112
    %115 = dma.hbm_to_vmem [thread:$0]  %s103, 16, %s113, %s104
    %s116 = sld [smem:[#allocation4 + $0x80]]
    %s117 = smul.addr %s116, 16
    %s118 = scalar_lea.hbm %s1, %s117
    %s119 = scalar_lea.vmem [#allocation2], 1
    // Predicated region
    $region66: #{trans_forward.1} parent=1 // pred_check
      _
    $region67: #{trans_forward.1} parent=1 // pred_check_branch
      %121 = sbr.rel target = $region69
    $region68: #{trans_forward.1} parent=1 // pred_region
      %122 = sst [smem:[#allocation10]] [#allocation17]
      %123 = sst [smem:[#allocation11]] [#allocation16]
    $region69: #{trans_forward.1} parent=1 // pred_fallthru
      _
    %125 = shalt.err (0)
    %s127 = sshll.u32 %s119, 4
    %s128 = int_to_ptr.vmem [resolvable:$true] %s127
    %130 = dma.hbm_to_vmem [thread:$0]  %s118, 16, %s128, %s104
    %s131 = sld [smem:[#allocation4 + $0x1]]
    %s132 = smul.addr %s131, 16
    %s133 = scalar_lea.hbm %s1, %s132
    %s134 = scalar_lea.vmem [#allocation2], 8
    // Predicated region
    $region70: #{trans_forward.1} parent=1 // pred_check
      _
    $region71: #{trans_forward.1} parent=1 // pred_check_branch
      %136 = sbr.rel target = $region73
    $region72: #{trans_forward.1} parent=1 // pred_region
      %137 = sst [smem:[#allocation10]] [#allocation19]
      %138 = sst [smem:[#allocation11]] [#allocation18]
    $region73: #{trans_forward.1} parent=1 // pred_fallthru
      _
    %140 = shalt.err (0)
    %s142 = sshll.u32 %s134, 4
    %s143 = int_to_ptr.vmem [resolvable:$true] %s142
    %145 = dma.hbm_to_vmem [thread:$0]  %s133, 16, %s143, %s104
    %s146 = sld [smem:[#allocation4 + $0x81]]
    %s147 = smul.addr %s146, 16
    %s148 = scalar_lea.hbm %s1, %s147
    %s149 = scalar_lea.vmem [#allocation2], 9
    // Predicated region
    $region74: #{trans_forward.1} parent=1 // pred_check
      _
    $region75: #{trans_forward.1} parent=1 // pred_check_branch
      %151 = sbr.rel target = $region77
    $region76: #{trans_forward.1} parent=1 // pred_region
      %152 = sst [smem:[#allocation10]] [#allocation21]
      %153 = sst [smem:[#allocation11]] [#allocation20]
    $region77: #{trans_forward.1} parent=1 // pred_fallthru
      _
    %155 = shalt.err (0)
    %s157 = sshll.u32 %s149, 4
    %s158 = int_to_ptr.vmem [resolvable:$true] %s157
    %160 = dma.hbm_to_vmem [thread:$0]  %s148, 16, %s158, %s104
    %s161 = sld [smem:[#allocation4 + $0x2]]
    %s162 = smul.addr %s161, 16
    %s163 = scalar_lea.hbm %s1, %s162
    %s164 = scalar_lea.vmem [#allocation2], 16
    // Predicated region
    $region78: #{trans_forward.1} parent=1 // pred_check
      _
    $region79: #{trans_forward.1} parent=1 // pred_check_branch
      %166 = sbr.rel target = $region81
    $region80: #{trans_forward.1} parent=1 // pred_region
      %167 = sst [smem:[#allocation10]] [#allocation23]
      %168 = sst [smem:[#allocation11]] [#allocation22]
    $region81: #{trans_forward.1} parent=1 // pred_fallthru
      _
    %170 = shalt.err (0)
    %s172 = sshll.u32 %s164, 4
    %s173 = int_to_ptr.vmem [resolvable:$true] %s172
    %175 = dma.hbm_to_vmem [thread:$0]  %s163, 16, %s173, %s104
    %s176 = sld [smem:[#allocation4 + $0x82]]
    %s177 = smul.addr %s176, 16
    %s178 = scalar_lea.hbm %s1, %s177
    %s179 = scalar_lea.vmem [#allocation2], 17
    // Predicated region
    $region82: #{trans_forward.1} parent=1 // pred_check
      _
    $region83: #{trans_forward.1} parent=1 // pred_check_branch
      %181 = sbr.rel target = $region85
    $region84: #{trans_forward.1} parent=1 // pred_region
      %182 = sst [smem:[#allocation10]] [#allocation25]
      %183 = sst [smem:[#allocation11]] [#allocation24]
    $region85: #{trans_forward.1} parent=1 // pred_fallthru
      _
    %185 = shalt.err (0)
    %s187 = sshll.u32 %s179, 4
    %s188 = int_to_ptr.vmem [resolvable:$true] %s187
    %190 = dma.hbm_to_vmem [thread:$0]  %s178, 16, %s188, %s104
    %s191 = sld [smem:[#allocation4 + $0x3]]
    %s192 = smul.addr %s191, 16
    %s193 = scalar_lea.hbm %s1, %s192
    %s194 = scalar_lea.vmem [#allocation2], 24
    // Predicated region
    $region86: #{trans_forward.1} parent=1 // pred_check
      _
    $region87: #{trans_forward.1} parent=1 // pred_check_branch
      %196 = sbr.rel target = $region89
    $region88: #{trans_forward.1} parent=1 // pred_region
      %197 = sst [smem:[#allocation10]] [#allocation27]
      %198 = sst [smem:[#allocation11]] [#allocation26]
    $region89: #{trans_forward.1} parent=1 // pred_fallthru
      _
    %200 = shalt.err (0)
    %s202 = sshll.u32 %s194, 4
    %s203 = int_to_ptr.vmem [resolvable:$true] %s202
    %205 = dma.hbm_to_vmem [thread:$0]  %s193, 16, %s203, %s104
    %s206 = sld [smem:[#allocation4 + $0x83]]
    %s207 = smul.addr %s206, 16
    %s208 = scalar_lea.hbm %s1, %s207
    %s209 = scalar_lea.vmem [#allocation2], 25
    // Predicated region
    $region90: #{trans_forward.1} parent=1 // pred_check
      _
    $region91: #{trans_forward.1} parent=1 // pred_check_branch
      %211 = sbr.rel target = $region93
    $region92: #{trans_forward.1} parent=1 // pred_region
      %212 = sst [smem:[#allocation10]] [#allocation29]
      %213 = sst [smem:[#allocation11]] [#allocation28]
    $region93: #{trans_forward.1} parent=1 // pred_fallthru
      _
    %215 = shalt.err (0)
    %s217 = sshll.u32 %s209, 4
    %s218 = int_to_ptr.vmem [resolvable:$true] %s217
    %220 = dma.hbm_to_vmem [thread:$0]  %s208, 16, %s218, %s104
    %s221 = sld [smem:[#allocation4 + $0x4]]
    %s222 = smul.addr %s221, 16
    %s223 = scalar_lea.hbm %s1, %s222
    %s224 = scalar_lea.vmem [#allocation2], 32
    // Predicated region
    $region94: #{trans_forward.1} parent=1 // pred_check
      _
    $region95: #{trans_forward.1} parent=1 // pred_check_branch
      %226 = sbr.rel target = $region97
    $region96: #{trans_forward.1} parent=1 // pred_region
      %227 = sst [smem:[#allocation10]] [#allocation31]
      %228 = sst [smem:[#allocation11]] [#allocation30]
    $region97: #{trans_forward.1} parent=1 // pred_fallthru
      _
    %230 = shalt.err (0)
    %s232 = sshll.u32 %s224, 4
    %s233 = int_to_ptr.vmem [resolvable:$true] %s232
    %235 = dma.hbm_to_vmem [thread:$0]  %s223, 16, %s233, %s104
    %s236 = sld [smem:[#allocation4 + $0x84]]
    %s237 = smul.addr %s236, 16
    %s238 = scalar_lea.hbm %s1, %s237
    %s239 = scalar_lea.vmem [#allocation2], 33
    // Predicated region
    $region98: #{trans_forward.1} parent=1 // pred_check
      _
    $region99: #{trans_forward.1} parent=1 // pred_check_branch
      %241 = sbr.rel target = $region101
    $region100: #{trans_forward.1} parent=1 // pred_region
      %242 = sst [smem:[#allocation10]] [#allocation33]
      %243 = sst [smem:[#allocation11]] [#allocation32]
    $region101: #{trans_forward.1} parent=1 // pred_fallthru
      _
    %245 = shalt.err (0)
    %s247 = sshll.u32 %s239, 4
    %s248 = int_to_ptr.vmem [resolvable:$true] %s247
    %250 = dma.hbm_to_vmem [thread:$0]  %s238, 16, %s248, %s104
    %s251 = sld [smem:[#allocation4 + $0x5]]
    %s252 = smul.addr %s251, 16
    %s253 = scalar_lea.hbm %s1, %s252
    %s254 = scalar_lea.vmem [#allocation2], 40
    // Predicated region
    $region102: #{trans_forward.1} parent=1 // pred_check
      _
    $region103: #{trans_forward.1} parent=1 // pred_check_branch
      %256 = sbr.rel target = $region105
    $region104: #{trans_forward.1} parent=1 // pred_region
      %257 = sst [smem:[#allocation10]] [#allocation35]
      %258 = sst [smem:[#allocation11]] [#allocation34]
    $region105: #{trans_forward.1} parent=1 // pred_fallthru
      _
    %260 = shalt.err (0)
    %s262 = sshll.u32 %s254, 4
    %s263 = int_to_ptr.vmem [resolvable:$true] %s262
    %265 = dma.hbm_to_vmem [thread:$0]  %s253, 16, %s263, %s104
    %s266 = sld [smem:[#allocation4 + $0x85]]
    %s267 = smul.addr %s266, 16
    %s268 = scalar_lea.hbm %s1, %s267
    %s269 = scalar_lea.vmem [#allocation2], 41
    // Predicated region
    $region106: #{trans_forward.1} parent=1 // pred_check
      _
    $region107: #{trans_forward.1} parent=1 // pred_check_branch
      %271 = sbr.rel target = $region109
    $region108: #{trans_forward.1} parent=1 // pred_region
      %272 = sst [smem:[#allocation10]] [#allocation37]
      %273 = sst [smem:[#allocation11]] [#allocation36]
    $region109: #{trans_forward.1} parent=1 // pred_fallthru
      _
    %275 = shalt.err (0)
    %s277 = sshll.u32 %s269, 4
    %s278 = int_to_ptr.vmem [resolvable:$true] %s277
    %280 = dma.hbm_to_vmem [thread:$0]  %s268, 16, %s278, %s104
    %s281 = sld [smem:[#allocation4 + $0x6]]
    %s282 = smul.addr %s281, 16
    %s283 = scalar_lea.hbm %s1, %s282
    %s284 = scalar_lea.vmem [#allocation2], 48
    // Predicated region
    $region110: #{trans_forward.1} parent=1 // pred_check
      _
    $region111: #{trans_forward.1} parent=1 // pred_check_branch
      %286 = sbr.rel target = $region113
    $region112: #{trans_forward.1} parent=1 // pred_region
      %287 = sst [smem:[#allocation10]] [#allocation39]
      %288 = sst [smem:[#allocation11]] [#allocation38]
    $region113: #{trans_forward.1} parent=1 // pred_fallthru
      _
    %290 = shalt.err (0)
    %s292 = sshll.u32 %s284, 4
    %s293 = int_to_ptr.vmem [resolvable:$true] %s292
    %295 = dma.hbm_to_vmem [thread:$0]  %s283, 16, %s293, %s104
    %s296 = sld [smem:[#allocation4 + $0x86]]
    %s297 = smul.addr %s296, 16
    %s298 = scalar_lea.hbm %s1, %s297
    %s299 = scalar_lea.vmem [#allocation2], 49
    // Predicated region
    $region114: #{trans_forward.1} parent=1 // pred_check
      _
    $region115: #{trans_forward.1} parent=1 // pred_check_branch
      %301 = sbr.rel target = $region117
    $region116: #{trans_forward.1} parent=1 // pred_region
      %302 = sst [smem:[#allocation10]] [#allocation41]
      %303 = sst [smem:[#allocation11]] [#allocation40]
    $region117: #{trans_forward.1} parent=1 // pred_fallthru
      _
    %305 = shalt.err (0)
    %s307 = sshll.u32 %s299, 4
    %s308 = int_to_ptr.vmem [resolvable:$true] %s307
    %310 = dma.hbm_to_vmem [thread:$0]  %s298, 16, %s308, %s104
    %s311 = smul.u32 1, 1
    %s312 = sshll.u32 %s311, 4
    %313 = dma.done [#allocation3], %s312
    %s314 = sshll.u32 %s311, 4
    %315 = dma.done [#allocation3], %s314
    %v316 = vld [vmem:[#allocation2 + $0x38] sm:$0xff]
    %v317 = vpack.c.bf16 %v316, %v316
    %v318 = vld [vmem:[%s3] sm:$0xff]
    %v319 = vld [vmem:[%s3 + $0x8] sm:$0xff]
    %v320 = vld [vmem:[%s3 + $0x10] sm:$0xff]
    %v321 = vld [vmem:[%s3 + $0x18] sm:$0xff]
    %v322 = vld [vmem:[%s3 + $0x20] sm:$0xff]
    %v323 = vld [vmem:[%s3 + $0x28] sm:$0xff]
    %v324 = vld [vmem:[%s3 + $0x30] sm:$0xff]
    %v325 = vld [vmem:[%s3 + $0x38] sm:$0xff]
    %v326 = vld [vmem:[%s3 + $0x40] sm:$0xff]
    %v327 = vld [vmem:[%s3 + $0x48] sm:$0xff]
    %v328 = vld [vmem:[%s3 + $0x50] sm:$0xff]
    %v329 = vld [vmem:[%s3 + $0x58] sm:$0xff]
    %v330 = vld [vmem:[%s3 + $0x60] sm:$0xff]
    %v331 = vld [vmem:[%s3 + $0x68] sm:$0xff]
    %v332 = vld [vmem:[%s3 + $0x70] sm:$0xff]
    %v333 = vld [vmem:[%s3 + $0x78] sm:$0xff]
    %v334 = vld [vmem:[%s3 + $0x80] sm:$0xff]
    %v335 = vld [vmem:[%s3 + $0x88] sm:$0xff]
    %v336 = vld [vmem:[%s3 + $0x90] sm:$0xff]
    %v337 = vld [vmem:[%s3 + $0x98] sm:$0xff]
    %v338 = vld [vmem:[%s3 + $0xa0] sm:$0xff]
    %v339 = vld [vmem:[%s3 + $0xa8] sm:$0xff]
    %v340 = vld [vmem:[%s3 + $0xb0] sm:$0xff]
    %v341 = vld [vmem:[%s3 + $0xb8] sm:$0xff]
    %v342 = vld [vmem:[%s3 + $0xc0] sm:$0xff]
    %v343 = vld [vmem:[%s3 + $0xc8] sm:$0xff]
    %v344 = vld [vmem:[%s3 + $0xd0] sm:$0xff]
    %v345 = vld [vmem:[%s3 + $0xd8] sm:$0xff]
    %v346 = vld [vmem:[%s3 + $0xe0] sm:$0xff]
    %v347 = vld [vmem:[%s3 + $0xe8] sm:$0xff]
    %v348 = vld [vmem:[%s3 + $0xf0] sm:$0xff]
    %v349 = vld [vmem:[%s3 + $0xf8] sm:$0xff]
    %v350 = vld [vmem:[%s3 + $0x100] sm:$0xff]
    %v351 = vld [vmem:[%s3 + $0x108] sm:$0xff]
    %v352 = vld [vmem:[%s3 + $0x110] sm:$0xff]
    %v353 = vld [vmem:[%s3 + $0x118] sm:$0xff]
    %v354 = vld [vmem:[%s3 + $0x120] sm:$0xff]
    %v355 = vld [vmem:[%s3 + $0x128] sm:$0xff]
    %v356 = vld [vmem:[%s3 + $0x130] sm:$0xff]
    %v357 = vld [vmem:[%s3 + $0x138] sm:$0xff]
    %v358 = vld [vmem:[%s3 + $0x140] sm:$0xff]
    %v359 = vld [vmem:[%s3 + $0x148] sm:$0xff]
    %v360 = vld [vmem:[%s3 + $0x150] sm:$0xff]
    %v361 = vld [vmem:[%s3 + $0x158] sm:$0xff]
    %v362 = vld [vmem:[%s3 + $0x160] sm:$0xff]
    %v363 = vld [vmem:[%s3 + $0x168] sm:$0xff]
    %v364 = vld [vmem:[%s3 + $0x170] sm:$0xff]
    %v365 = vld [vmem:[%s3 + $0x178] sm:$0xff]
    %v366 = vld [vmem:[%s6] sm:$0x3f]
    %v368 = vlaneseq
    %v369 = vshrl.u32 %v368, 7
    %v370 = vsub.s32 0, %v369
    %v371 = vrot.slane %v366, %v370
    %v372 = vlaneseq
    %v373 = vshrl.u32 %v372, 7
    %v374 = vsub.s32 1, %v373
    %v375 = vrot.slane %v366, %v374
    %v376 = vlaneseq
    %v377 = vshrl.u32 %v376, 7
    %v378 = vsub.s32 2, %v377
    %v379 = vrot.slane %v366, %v378
    %v380 = vlaneseq
    %v381 = vshrl.u32 %v380, 7
    %v382 = vsub.s32 3, %v381
    %v383 = vrot.slane %v366, %v382
    %v384 = vlaneseq
    %v385 = vshrl.u32 %v384, 7
    %v386 = vsub.s32 4, %v385
    %v387 = vrot.slane %v366, %v386
    %v388 = vlaneseq
    %v389 = vshrl.u32 %v388, 7
    %v390 = vsub.s32 5, %v389
    %v391 = vrot.slane %v366, %v390
    %v446 = vunpack.c.l.b16 %v318
    %v447 = vunpack.c.h.b16 %v318
    %v448 = vunpack.c.l.b16 %v319
    %v449 = vunpack.c.h.b16 %v319
    %v450 = vunpack.c.l.b16 %v320
    %v451 = vunpack.c.h.b16 %v320
    %v452 = vunpack.c.l.b16 %v321
    %v453 = vunpack.c.h.b16 %v321
    %v454 = vunpack.c.l.b16 %v322
    %v455 = vunpack.c.h.b16 %v322
    %v456 = vunpack.c.l.b16 %v323
    %v457 = vunpack.c.h.b16 %v323
    %v458 = vunpack.c.l.b16 %v324
    %v459 = vunpack.c.h.b16 %v324
    %v460 = vunpack.c.l.b16 %v325
    %v461 = vunpack.c.h.b16 %v325
    %v462 = vunpack.c.l.b16 %v326
    %v463 = vunpack.c.h.b16 %v326
    %v464 = vunpack.c.l.b16 %v327
    %v465 = vunpack.c.h.b16 %v327
    %v466 = vunpack.c.l.b16 %v328
    %v467 = vunpack.c.h.b16 %v328
    %v468 = vunpack.c.l.b16 %v329
    %v469 = vunpack.c.h.b16 %v329
    %v470 = vunpack.c.l.b16 %v330
    %v471 = vunpack.c.h.b16 %v330
    %v472 = vunpack.c.l.b16 %v331
    %v473 = vunpack.c.h.b16 %v331
    %v474 = vunpack.c.l.b16 %v332
    %v475 = vunpack.c.h.b16 %v332
    %v476 = vunpack.c.l.b16 %v333
    %v477 = vunpack.c.h.b16 %v333
    %v478 = vunpack.c.l.b16 %v334
    %v479 = vunpack.c.h.b16 %v334
    %v480 = vunpack.c.l.b16 %v335
    %v481 = vunpack.c.h.b16 %v335
    %v482 = vunpack.c.l.b16 %v336
    %v483 = vunpack.c.h.b16 %v336
    %v484 = vunpack.c.l.b16 %v337
    %v485 = vunpack.c.h.b16 %v337
    %v486 = vunpack.c.l.b16 %v338
    %v487 = vunpack.c.h.b16 %v338
    %v488 = vunpack.c.l.b16 %v339
    %v489 = vunpack.c.h.b16 %v339
    %v490 = vunpack.c.l.b16 %v340
    %v491 = vunpack.c.h.b16 %v340
    %v492 = vunpack.c.l.b16 %v341
    %v493 = vunpack.c.h.b16 %v341
    %v494 = vunpack.c.l.b16 %v342
    %v495 = vunpack.c.h.b16 %v342
    %v496 = vunpack.c.l.b16 %v343
    %v497 = vunpack.c.h.b16 %v343
    %v498 = vunpack.c.l.b16 %v344
    %v499 = vunpack.c.h.b16 %v344
    %v500 = vunpack.c.l.b16 %v345
    %v501 = vunpack.c.h.b16 %v345
    %v502 = vunpack.c.l.b16 %v346
    %v503 = vunpack.c.h.b16 %v346
    %v504 = vunpack.c.l.b16 %v347
    %v505 = vunpack.c.h.b16 %v347
    %v506 = vunpack.c.l.b16 %v348
    %v507 = vunpack.c.h.b16 %v348
    %v508 = vunpack.c.l.b16 %v349
    %v509 = vunpack.c.h.b16 %v349
    %v510 = vunpack.c.l.b16 %v350
    %v511 = vunpack.c.h.b16 %v350
    %v512 = vunpack.c.l.b16 %v351
    %v513 = vunpack.c.h.b16 %v351
    %v514 = vunpack.c.l.b16 %v352
    %v515 = vunpack.c.h.b16 %v352
    %v516 = vunpack.c.l.b16 %v353
    %v517 = vunpack.c.h.b16 %v353
    %v518 = vunpack.c.l.b16 %v354
    %v519 = vunpack.c.h.b16 %v354
    %v520 = vunpack.c.l.b16 %v355
    %v521 = vunpack.c.h.b16 %v355
    %v522 = vunpack.c.l.b16 %v356
    %v523 = vunpack.c.h.b16 %v356
    %v524 = vunpack.c.l.b16 %v357
    %v525 = vunpack.c.h.b16 %v357
    %v526 = vunpack.c.l.b16 %v358
    %v527 = vunpack.c.h.b16 %v358
    %v528 = vunpack.c.l.b16 %v359
    %v529 = vunpack.c.h.b16 %v359
    %v530 = vunpack.c.l.b16 %v360
    %v531 = vunpack.c.h.b16 %v360
    %v532 = vunpack.c.l.b16 %v361
    %v533 = vunpack.c.h.b16 %v361
    %v534 = vunpack.c.l.b16 %v362
    %v535 = vunpack.c.h.b16 %v362
    %v536 = vunpack.c.l.b16 %v363
    %v537 = vunpack.c.h.b16 %v363
    %v538 = vunpack.c.l.b16 %v364
    %v539 = vunpack.c.h.b16 %v364
    %v540 = vunpack.c.l.b16 %v365
    %v541 = vunpack.c.h.b16 %v365
    %v542 = vpack.c.b16 %v452, %v446
    %v543 = vpack.c.b16 %v453, %v447
    %v544 = vpack.c.b16 %v454, %v448
    %v545 = vpack.c.b16 %v455, %v449
    %v546 = vpack.c.b16 %v456, %v450
    %v547 = vpack.c.b16 %v457, %v451
    %v548 = vpack.c.b16 %v464, %v458
    %v549 = vpack.c.b16 %v465, %v459
    %v550 = vpack.c.b16 %v466, %v460
    %v551 = vpack.c.b16 %v467, %v461
    %v552 = vpack.c.b16 %v468, %v462
    %v553 = vpack.c.b16 %v469, %v463
    %v554 = vpack.c.b16 %v476, %v470
    %v555 = vpack.c.b16 %v477, %v471
    %v556 = vpack.c.b16 %v478, %v472
    %v557 = vpack.c.b16 %v479, %v473
    %v558 = vpack.c.b16 %v480, %v474
    %v559 = vpack.c.b16 %v481, %v475
    %v560 = vpack.c.b16 %v488, %v482
    %v561 = vpack.c.b16 %v489, %v483
    %v562 = vpack.c.b16 %v490, %v484
    %v563 = vpack.c.b16 %v491, %v485
    %v564 = vpack.c.b16 %v492, %v486
    %v565 = vpack.c.b16 %v493, %v487
    %v566 = vpack.c.b16 %v500, %v494
    %v567 = vpack.c.b16 %v501, %v495
    %v568 = vpack.c.b16 %v502, %v496
    %v569 = vpack.c.b16 %v503, %v497
    %v570 = vpack.c.b16 %v504, %v498
    %v571 = vpack.c.b16 %v505, %v499
    %v572 = vpack.c.b16 %v512, %v506
    %v573 = vpack.c.b16 %v513, %v507
    %v574 = vpack.c.b16 %v514, %v508
    %v575 = vpack.c.b16 %v515, %v509
    %v576 = vpack.c.b16 %v516, %v510
    %v577 = vpack.c.b16 %v517, %v511
    %v578 = vpack.c.b16 %v524, %v518
    %v579 = vpack.c.b16 %v525, %v519
    %v580 = vpack.c.b16 %v526, %v520
    %v581 = vpack.c.b16 %v527, %v521
    %v582 = vpack.c.b16 %v528, %v522
    %v583 = vpack.c.b16 %v529, %v523
    %v584 = vpack.c.b16 %v536, %v530
    %v585 = vpack.c.b16 %v537, %v531
    %v586 = vpack.c.b16 %v538, %v532
    %v587 = vpack.c.b16 %v539, %v533
    %v588 = vpack.c.b16 %v540, %v534
    %v589 = vpack.c.b16 %v541, %v535
    %638 = vmatprep.subr.bf16.mxu0 %v585
    %639 = vmatpush1.bf16.msra.mxu0 %v584
    %640 = vmatprep.subr.bf16.mxu0 %v579
    %641 = vmatpush1.bf16.msra.mxu0 %v578
    %642 = vmatprep.subr.bf16.mxu0 %v573
    %643 = vmatpush1.bf16.msra.mxu0 %v572
    %644 = vmatprep.subr.bf16.mxu0 %v567
    %645 = vmatpush1.bf16.msra.mxu0 %v566
    %646 = vmatprep.subr.bf16.mxu0 %v561
    %647 = vmatpush1.bf16.msra.mxu0 %v560
    %648 = vmatprep.subr.bf16.mxu0 %v555
    %649 = vmatpush1.bf16.msra.mxu0 %v554
    %650 = vmatprep.subr.bf16.mxu0 %v549
    %651 = vmatpush1.bf16.msra.mxu0 %v548
    %652 = vmatprep.subr.bf16.mxu0 %v543
    %653 = vmatpush1.bf16.msra.mxu0 %v542
    %654 = vmatprep.subr.bf16.mxu0 0
    %655 = vmatpush2.bf16.msra.mxu0 0
    %656 = vmatprep.subr.bf16.mxu0 0
    %657 = vmatpush2.bf16.msra.mxu0 0
    %658 = vmatprep.subr.bf16.mxu0 0
    %659 = vmatpush2.bf16.msra.mxu0 0
    %660 = vmatprep.subr.bf16.mxu0 0
    %661 = vmatpush2.bf16.msra.mxu0 0
    %662 = vmatprep.subr.bf16.mxu0 0
    %663 = vmatpush2.bf16.msra.mxu0 0
    %664 = vmatprep.subr.bf16.mxu0 0
    %665 = vmatpush2.bf16.msra.mxu0 0
    %666 = vmatprep.subr.bf16.mxu0 0
    %667 = vmatpush2.bf16.msra.mxu0 0
    %668 = vmatprep.subr.bf16.mxu0 0
    %669 = vmatpush2.bf16.msra.mxu0 0
    %670 = vmatprep.mubr.bf16.mxu0 0
    %671 = vmatmul.mubr.bf16.gmra.mxu0 %v317
    %v672 = vpop.f32.mrf.mxu0
    %v673 = vadd.f32 %v371, %v672
    %v674 = vpop.f32.mrf.mxu0
    %v675 = vadd.f32 %v375, %v674
    %v676 = vpop.f32.mrf.mxu0
    %v677 = vpop.f32.mrf.mxu0
    %678 = vdwg.mxu0
    %679 = vmatprep.subr.bf16.mxu0 %v587
    %680 = vmatpush1.bf16.msra.mxu0 %v586
    %681 = vmatprep.subr.bf16.mxu0 %v581
    %682 = vmatpush1.bf16.msra.mxu0 %v580
    %683 = vmatprep.subr.bf16.mxu0 %v575
    %684 = vmatpush1.bf16.msra.mxu0 %v574
    %685 = vmatprep.subr.bf16.mxu0 %v569
    %686 = vmatpush1.bf16.msra.mxu0 %v568
    %687 = vmatprep.subr.bf16.mxu0 %v563
    %688 = vmatpush1.bf16.msra.mxu0 %v562
    %689 = vmatprep.subr.bf16.mxu0 %v557
    %690 = vmatpush1.bf16.msra.mxu0 %v556
    %691 = vmatprep.subr.bf16.mxu0 %v551
    %692 = vmatpush1.bf16.msra.mxu0 %v550
    %693 = vmatprep.subr.bf16.mxu0 %v545
    %694 = vmatpush1.bf16.msra.mxu0 %v544
    %695 = vmatprep.subr.bf16.mxu0 0
    %696 = vmatpush2.bf16.msra.mxu0 0
    %697 = vmatprep.subr.bf16.mxu0 0
    %698 = vmatpush2.bf16.msra.mxu0 0
    %699 = vmatprep.subr.bf16.mxu0 0
    %700 = vmatpush2.bf16.msra.mxu0 0
    %701 = vmatprep.subr.bf16.mxu0 0
    %702 = vmatpush2.bf16.msra.mxu0 0
    %703 = vmatprep.subr.bf16.mxu0 0
    %704 = vmatpush2.bf16.msra.mxu0 0
    %705 = vmatprep.subr.bf16.mxu0 0
    %706 = vmatpush2.bf16.msra.mxu0 0
    %707 = vmatprep.subr.bf16.mxu0 0
    %708 = vmatpush2.bf16.msra.mxu0 0
    %709 = vmatprep.subr.bf16.mxu0 0
    %710 = vmatpush2.bf16.msra.mxu0 0
    %711 = vmatprep.mubr.bf16.mxu0 0
    %712 = vmatmul.mubr.bf16.gmra.mxu0 %v317
    %v713 = vpop.f32.mrf.mxu0
    %v714 = vadd.f32 %v379, %v713
    %v715 = vpop.f32.mrf.mxu0
    %v716 = vadd.f32 %v383, %v715
    %v717 = vpop.f32.mrf.mxu0
    %v718 = vpop.f32.mrf.mxu0
    %719 = vdwg.mxu0
    %720 = vmatprep.subr.bf16.mxu0 %v589
    %721 = vmatpush1.bf16.msra.mxu0 %v588
    %722 = vmatprep.subr.bf16.mxu0 %v583
    %723 = vmatpush1.bf16.msra.mxu0 %v582
    %724 = vmatprep.subr.bf16.mxu0 %v577
    %725 = vmatpush1.bf16.msra.mxu0 %v576
    %726 = vmatprep.subr.bf16.mxu0 %v571
    %727 = vmatpush1.bf16.msra.mxu0 %v570
    %728 = vmatprep.subr.bf16.mxu0 %v565
    %729 = vmatpush1.bf16.msra.mxu0 %v564
    %730 = vmatprep.subr.bf16.mxu0 %v559
    %731 = vmatpush1.bf16.msra.mxu0 %v558
    %732 = vmatprep.subr.bf16.mxu0 %v553
    %733 = vmatpush1.bf16.msra.mxu0 %v552
    %734 = vmatprep.subr.bf16.mxu0 %v547
    %735 = vmatpush1.bf16.msra.mxu0 %v546
    %736 = vmatprep.subr.bf16.mxu0 0
    %737 = vmatpush2.bf16.msra.mxu0 0
    %738 = vmatprep.subr.bf16.mxu0 0
    %739 = vmatpush2.bf16.msra.mxu0 0
    %740 = vmatprep.subr.bf16.mxu0 0
    %741 = vmatpush2.bf16.msra.mxu0 0
    %742 = vmatprep.subr.bf16.mxu0 0
    %743 = vmatpush2.bf16.msra.mxu0 0
    %744 = vmatprep.subr.bf16.mxu0 0
    %745 = vmatpush2.bf16.msra.mxu0 0
    %746 = vmatprep.subr.bf16.mxu0 0
    %747 = vmatpush2.bf16.msra.mxu0 0
    %748 = vmatprep.subr.bf16.mxu0 0
    %749 = vmatpush2.bf16.msra.mxu0 0
    %750 = vmatprep.subr.bf16.mxu0 0
    %751 = vmatpush2.bf16.msra.mxu0 0
    %752 = vmatprep.mubr.bf16.mxu0 0
    %753 = vmatmul.mubr.bf16.gmra.mxu0 %v317
    %v754 = vpop.f32.mrf.mxu0
    %v755 = vadd.f32 %v387, %v754
    %v756 = vpop.f32.mrf.mxu0
    %v757 = vadd.f32 %v391, %v756
    %v758 = vpop.f32.mrf.mxu0
    %v759 = vpop.f32.mrf.mxu0
    %760 = vdwg.mxu0
    %v761 = vxor.u32 %v716, 2147483648
    %v762 = vmul.f32 %v761, 1.442695
    %v763 = vpow.pop %v762
    %v764 = vadd.f32 %v763, 1.0
    %v765 = vrcp.pop %v764
    %v766 = vmul.f32 1.0, %v765
    %v767 = vxor.u32 %v755, 2147483648
    %v768 = vmul.f32 %v767, 1.442695
    %v769 = vpow.pop %v768
    %v770 = vadd.f32 %v769, 1.0
    %v771 = vrcp.pop %v770
    %v772 = vmul.f32 1.0, %v771
    %v773 = vld [vmem:[%s8] sm:$0x1]
    %v775 = vlaneseq
    %v776 = vshrl.u32 %v775, 7
    %v777 = vsub.s32 0, %v776
    %v778 = vrot.slane %v773, %v777
    %v780 = vmul.f32 %v766, %v778
    %v781 = vadd.f32 %v757, %v780
    %v782 = vtanh.pop %v781
    %v783 = vsub.f32 1.0, %v772
    %v784 = vmul.f32 %v783, %v782
    %s785 = sshll.u32 %s311, 4
    %786 = dma.done %s104, %s785
    %s787 = sshll.u32 %s311, 4
    %788 = dma.done %s104, %s787
    %s789 = sshll.u32 %s311, 4
    %790 = dma.done %s104, %s789
    %s791 = sshll.u32 %s311, 4
    %792 = dma.done %s104, %s791
    %s793 = sshll.u32 %s311, 4
    %794 = dma.done %s104, %s793
    %s795 = sshll.u32 %s311, 4
    %796 = dma.done %s104, %s795
    %s797 = sshll.u32 %s311, 4
    %798 = dma.done %s104, %s797
    %s799 = sshll.u32 %s311, 4
    %800 = dma.done %s104, %s799
    %s801 = sshll.u32 %s311, 4
    %802 = dma.done %s104, %s801
    %s803 = sshll.u32 %s311, 4
    %804 = dma.done %s104, %s803
    %s805 = sshll.u32 %s311, 4
    %806 = dma.done %s104, %s805
    %s807 = sshll.u32 %s311, 4
    %808 = dma.done %s104, %s807
    %s809 = sshll.u32 %s311, 4
    %810 = dma.done %s104, %s809
    %s811 = sshll.u32 %s311, 4
    %812 = dma.done %s104, %s811
    %v813 = vld [vmem:[#allocation2] sm:$0xff]
    %v814 = vld [vmem:[#allocation2 + $0x8] sm:$0xff]
    %v815 = vld [vmem:[#allocation2 + $0x10] sm:$0xff]
    %v816 = vld [vmem:[#allocation2 + $0x18] sm:$0xff]
    %v817 = vld [vmem:[#allocation2 + $0x20] sm:$0xff]
    %v818 = vld [vmem:[#allocation2 + $0x28] sm:$0xff]
    %v819 = vld [vmem:[#allocation2 + $0x30] sm:$0xff]
    %v820 = vpack.c.bf16 %v814, %v813
    %v821 = vpack.c.bf16 %v816, %v815
    %v822 = vpack.c.bf16 %v818, %v817
    %v823 = vpack.c.bf16 %v819, %v819
    %v824 = vld [vmem:[%s2] sm:$0xff]
    %v825 = vld [vmem:[%s2 + $0x8] sm:$0xf]
    %v826 = vld [vmem:[%s2 + $0xc] sm:$0xff]
    %v827 = vld [vmem:[%s2 + $0x14] sm:$0xf]
    %v828 = vld [vmem:[%s2 + $0x18] sm:$0xff]
    %v829 = vld [vmem:[%s2 + $0x20] sm:$0xf]
    %v830 = vld [vmem:[%s2 + $0x24] sm:$0xff]
    %v831 = vld [vmem:[%s2 + $0x2c] sm:$0xf]
    %v832 = vld [vmem:[%s2 + $0x30] sm:$0xff]
    %v833 = vld [vmem:[%s2 + $0x38] sm:$0xf]
    %v834 = vld [vmem:[%s2 + $0x3c] sm:$0xff]
    %v835 = vld [vmem:[%s2 + $0x44] sm:$0xf]
    %v836 = vld [vmem:[%s2 + $0x48] sm:$0xff]
    %v837 = vld [vmem:[%s2 + $0x50] sm:$0xf]
    %v838 = vld [vmem:[%s2 + $0x54] sm:$0xff]
    %v839 = vld [vmem:[%s2 + $0x5c] sm:$0xf]
    %v840 = vld [vmem:[%s2 + $0x60] sm:$0xff]
    %v841 = vld [vmem:[%s2 + $0x68] sm:$0xf]
    %v842 = vld [vmem:[%s2 + $0x6c] sm:$0xff]
    %v843 = vld [vmem:[%s2 + $0x74] sm:$0xf]
    %v844 = vld [vmem:[%s2 + $0x78] sm:$0xff]
    %v845 = vld [vmem:[%s2 + $0x80] sm:$0xf]
    %v846 = vld [vmem:[%s2 + $0x84] sm:$0xff]
    %v847 = vld [vmem:[%s2 + $0x8c] sm:$0xf]
    %v848 = vld [vmem:[%s2 + $0x90] sm:$0xff]
    %v849 = vld [vmem:[%s2 + $0x98] sm:$0xf]
    %v850 = vld [vmem:[%s2 + $0x9c] sm:$0xff]
    %v851 = vld [vmem:[%s2 + $0xa4] sm:$0xf]
    %v852 = vld [vmem:[%s2 + $0xa8] sm:$0xff]
    %v853 = vld [vmem:[%s2 + $0xb0] sm:$0xf]
    %v854 = vld [vmem:[%s2 + $0xb4] sm:$0xff]
    %v855 = vld [vmem:[%s2 + $0xbc] sm:$0xf]
    %v856 = vld [vmem:[%s5] sm:$0x7]
    %v858 = vlaneseq
    %v859 = vshrl.u32 %v858, 7
    %v860 = vsub.s32 0, %v859
    %v861 = vrot.slane %v856, %v860
    %v862 = vlaneseq
    %v863 = vshrl.u32 %v862, 7
    %v864 = vsub.s32 1, %v863
    %v865 = vrot.slane %v856, %v864
    %v866 = vlaneseq
    %v867 = vshrl.u32 %v866, 7
    %v868 = vsub.s32 2, %v867
    %v869 = vrot.slane %v856, %v868
    %v905 = vunpack.c.l.b16 %v824
    %v906 = vunpack.c.h.b16 %v824
    %v907 = vunpack.c.l.b16 %v825
    %v908 = vunpack.c.l.b16 %v826
    %v909 = vunpack.c.h.b16 %v826
    %v910 = vunpack.c.l.b16 %v827
    %v911 = vunpack.c.l.b16 %v828
    %v912 = vunpack.c.h.b16 %v828
    %v913 = vunpack.c.l.b16 %v829
    %v914 = vunpack.c.l.b16 %v830
    %v915 = vunpack.c.h.b16 %v830
    %v916 = vunpack.c.l.b16 %v831
    %v917 = vunpack.c.l.b16 %v832
    %v918 = vunpack.c.h.b16 %v832
    %v919 = vunpack.c.l.b16 %v833
    %v920 = vunpack.c.l.b16 %v834
    %v921 = vunpack.c.h.b16 %v834
    %v922 = vunpack.c.l.b16 %v835
    %v923 = vunpack.c.l.b16 %v836
    %v924 = vunpack.c.h.b16 %v836
    %v925 = vunpack.c.l.b16 %v837
    %v926 = vunpack.c.l.b16 %v838
    %v927 = vunpack.c.h.b16 %v838
    %v928 = vunpack.c.l.b16 %v839
    %v929 = vunpack.c.l.b16 %v840
    %v930 = vunpack.c.h.b16 %v840
    %v931 = vunpack.c.l.b16 %v841
    %v932 = vunpack.c.l.b16 %v842
    %v933 = vunpack.c.h.b16 %v842
    %v934 = vunpack.c.l.b16 %v843
    %v935 = vunpack.c.l.b16 %v844
    %v936 = vunpack.c.h.b16 %v844
    %v937 = vunpack.c.l.b16 %v845
    %v938 = vunpack.c.l.b16 %v846
    %v939 = vunpack.c.h.b16 %v846
    %v940 = vunpack.c.l.b16 %v847
    %v941 = vunpack.c.l.b16 %v848
    %v942 = vunpack.c.h.b16 %v848
    %v943 = vunpack.c.l.b16 %v849
    %v944 = vunpack.c.l.b16 %v850
    %v945 = vunpack.c.h.b16 %v850
    %v946 = vunpack.c.l.b16 %v851
    %v947 = vunpack.c.l.b16 %v852
    %v948 = vunpack.c.h.b16 %v852
    %v949 = vunpack.c.l.b16 %v853
    %v950 = vunpack.c.l.b16 %v854
    %v951 = vunpack.c.h.b16 %v854
    %v952 = vunpack.c.l.b16 %v855
    %v953 = vpack.c.b16 %v908, %v905
    %v954 = vpack.c.b16 %v909, %v906
    %v955 = vpack.c.b16 %v910, %v907
    %v956 = vpack.c.b16 %v914, %v911
    %v957 = vpack.c.b16 %v915, %v912
    %v958 = vpack.c.b16 %v916, %v913
    %v959 = vpack.c.b16 %v920, %v917
    %v960 = vpack.c.b16 %v921, %v918
    %v961 = vpack.c.b16 %v922, %v919
    %v962 = vpack.c.b16 %v926, %v923
    %v963 = vpack.c.b16 %v927, %v924
    %v964 = vpack.c.b16 %v928, %v925
    %v965 = vpack.c.b16 %v932, %v929
    %v966 = vpack.c.b16 %v933, %v930
    %v967 = vpack.c.b16 %v934, %v931
    %v968 = vpack.c.b16 %v938, %v935
    %v969 = vpack.c.b16 %v939, %v936
    %v970 = vpack.c.b16 %v940, %v937
    %v971 = vpack.c.b16 %v944, %v941
    %v972 = vpack.c.b16 %v945, %v942
    %v973 = vpack.c.b16 %v946, %v943
    %v974 = vpack.c.b16 %v950, %v947
    %v975 = vpack.c.b16 %v951, %v948
    %v976 = vpack.c.b16 %v952, %v949
    %1001 = vmatprep.subr.bf16.mxu0 %v975
    %1002 = vmatpush1.bf16.msra.mxu0 %v974
    %1003 = vmatprep.subr.bf16.mxu0 %v972
    %1004 = vmatpush1.bf16.msra.mxu0 %v971
    %1005 = vmatprep.subr.bf16.mxu0 %v969
    %1006 = vmatpush1.bf16.msra.mxu0 %v968
    %1007 = vmatprep.subr.bf16.mxu0 %v966
    %1008 = vmatpush1.bf16.msra.mxu0 %v965
    %1009 = vmatprep.subr.bf16.mxu0 %v963
    %1010 = vmatpush1.bf16.msra.mxu0 %v962
    %1011 = vmatprep.subr.bf16.mxu0 %v960
    %1012 = vmatpush1.bf16.msra.mxu0 %v959
    %1013 = vmatprep.subr.bf16.mxu0 %v957
    %1014 = vmatpush1.bf16.msra.mxu0 %v956
    %1015 = vmatprep.subr.bf16.mxu0 %v954
    %1016 = vmatpush1.bf16.msra.mxu0 %v953
    %1017 = vmatprep.subr.bf16.mxu0 0
    %1018 = vmatpush2.bf16.msra.mxu0 0
    %1019 = vmatprep.subr.bf16.mxu0 0
    %1020 = vmatpush2.bf16.msra.mxu0 0
    %1021 = vmatprep.subr.bf16.mxu0 0
    %1022 = vmatpush2.bf16.msra.mxu0 0
    %1023 = vmatprep.subr.bf16.mxu0 0
    %1024 = vmatpush2.bf16.msra.mxu0 0
    %1025 = vmatprep.subr.bf16.mxu0 0
    %1026 = vmatpush2.bf16.msra.mxu0 0
    %1027 = vmatprep.subr.bf16.mxu0 0
    %1028 = vmatpush2.bf16.msra.mxu0 0
    %1029 = vmatprep.subr.bf16.mxu0 0
    %1030 = vmatpush2.bf16.msra.mxu0 0
    %1031 = vmatprep.subr.bf16.mxu0 0
    %1032 = vmatpush2.bf16.msra.mxu0 0
    %1033 = vmatprep.mubr.bf16.mxu0 0
    %1034 = vmatmul.mubr.bf16.gmra.mxu0 %v820
    %v1035 = vpop.f32.mrf.mxu0
    %v1036 = vadd.f32 %v861, %v1035
    %v1037 = vpop.f32.mrf.mxu0
    %v1038 = vadd.f32 %v865, %v1037
    %v1039 = vpop.f32.mrf.mxu0
    %v1040 = vadd.f32 %v861, %v1039
    %v1041 = vpop.f32.mrf.mxu0
    %v1042 = vadd.f32 %v865, %v1041
    %1043 = vmatprep.mubr.bf16.mxu0 0
    %1044 = vmatmul.mubr.bf16.gmra.mxu0 %v821
    %v1045 = vpop.f32.mrf.mxu0
    %v1046 = vadd.f32 %v861, %v1045
    %v1047 = vpop.f32.mrf.mxu0
    %v1048 = vadd.f32 %v865, %v1047
    %v1049 = vpop.f32.mrf.mxu0
    %v1050 = vadd.f32 %v861, %v1049
    %v1051 = vpop.f32.mrf.mxu0
    %v1052 = vadd.f32 %v865, %v1051
    %1053 = vmatprep.mubr.bf16.mxu0 0
    %1054 = vmatmul.mubr.bf16.gmra.mxu0 %v822
    %v1055 = vpop.f32.mrf.mxu0
    %v1056 = vadd.f32 %v861, %v1055
    %v1057 = vpop.f32.mrf.mxu0
    %v1058 = vadd.f32 %v865, %v1057
    %v1059 = vpop.f32.mrf.mxu0
    %v1060 = vadd.f32 %v861, %v1059
    %v1061 = vpop.f32.mrf.mxu0
    %v1062 = vadd.f32 %v865, %v1061
    %1063 = vmatprep.mubr.bf16.mxu0 0
    %1064 = vmatmul.mubr.bf16.gmra.mxu0 %v823
    %v1065 = vpop.f32.mrf.mxu0
    %v1066 = vadd.f32 %v861, %v1065
    %v1067 = vpop.f32.mrf.mxu0
    %v1068 = vadd.f32 %v865, %v1067
    %v1069 = vpop.f32.mrf.mxu0
    %v1070 = vpop.f32.mrf.mxu0
    %1071 = vdwg.mxu0
    %1072 = vmatprep.subr.bf16.mxu0 0
    %1073 = vmatpush1.bf16.msra.mxu0 %v976
    %1074 = vmatprep.subr.bf16.mxu0 0
    %1075 = vmatpush1.bf16.msra.mxu0 %v973
    %1076 = vmatprep.subr.bf16.mxu0 0
    %1077 = vmatpush1.bf16.msra.mxu0 %v970
    %1078 = vmatprep.subr.bf16.mxu0 0
    %1079 = vmatpush1.bf16.msra.mxu0 %v967
    %1080 = vmatprep.subr.bf16.mxu0 0
    %1081 = vmatpush1.bf16.msra.mxu0 %v964
    %1082 = vmatprep.subr.bf16.mxu0 0
    %1083 = vmatpush1.bf16.msra.mxu0 %v961
    %1084 = vmatprep.subr.bf16.mxu0 0
    %1085 = vmatpush1.bf16.msra.mxu0 %v958
    %1086 = vmatprep.subr.bf16.mxu0 0
    %1087 = vmatpush1.bf16.msra.mxu0 %v955
    %1088 = vmatprep.subr.bf16.mxu0 0
    %1089 = vmatpush2.bf16.msra.mxu0 0
    %1090 = vmatprep.subr.bf16.mxu0 0
    %1091 = vmatpush2.bf16.msra.mxu0 0
    %1092 = vmatprep.subr.bf16.mxu0 0
    %1093 = vmatpush2.bf16.msra.mxu0 0
    %1094 = vmatprep.subr.bf16.mxu0 0
    %1095 = vmatpush2.bf16.msra.mxu0 0
    %1096 = vmatprep.subr.bf16.mxu0 0
    %1097 = vmatpush2.bf16.msra.mxu0 0
    %1098 = vmatprep.subr.bf16.mxu0 0
    %1099 = vmatpush2.bf16.msra.mxu0 0
    %1100 = vmatprep.subr.bf16.mxu0 0
    %1101 = vmatpush2.bf16.msra.mxu0 0
    %1102 = vmatprep.subr.bf16.mxu0 0
    %1103 = vmatpush2.bf16.msra.mxu0 0
    %1104 = vmatprep.mubr.bf16.mxu0 0
    %1105 = vmatmul.mubr.bf16.gmra.mxu0 %v820
    %v1106 = vpop.f32.mrf.mxu0
    %v1107 = vadd.f32 %v869, %v1106
    %v1108 = vpop.f32.mrf.mxu0
    %v1109 = vpop.f32.mrf.mxu0
    %v1110 = vadd.f32 %v869, %v1109
    %v1111 = vpop.f32.mrf.mxu0
    %1112 = vmatprep.mubr.bf16.mxu0 0
    %1113 = vmatmul.mubr.bf16.gmra.mxu0 %v821
    %v1114 = vpop.f32.mrf.mxu0
    %v1115 = vadd.f32 %v869, %v1114
    %v1116 = vpop.f32.mrf.mxu0
    %v1117 = vpop.f32.mrf.mxu0
    %v1118 = vadd.f32 %v869, %v1117
    %v1119 = vpop.f32.mrf.mxu0
    %1120 = vmatprep.mubr.bf16.mxu0 0
    %1121 = vmatmul.mubr.bf16.gmra.mxu0 %v822
    %v1122 = vpop.f32.mrf.mxu0
    %v1123 = vadd.f32 %v869, %v1122
    %v1124 = vpop.f32.mrf.mxu0
    %v1125 = vpop.f32.mrf.mxu0
    %v1126 = vadd.f32 %v869, %v1125
    %v1127 = vpop.f32.mrf.mxu0
    %1128 = vmatprep.mubr.bf16.mxu0 0
    %1129 = vmatmul.mubr.bf16.gmra.mxu0 %v823
    %v1130 = vpop.f32.mrf.mxu0
    %v1131 = vadd.f32 %v869, %v1130
    %v1132 = vpop.f32.mrf.mxu0
    %v1133 = vpop.f32.mrf.mxu0
    %v1134 = vpop.f32.mrf.mxu0
    %1135 = vdwg.mxu0
    %v1136 = vld [vmem:[%s4] sm:$0xff]
    %v1137 = vld [vmem:[%s4 + $0x8] sm:$0xf]
    %v1138 = vld [vmem:[%s4 + $0xc] sm:$0xff]
    %v1139 = vld [vmem:[%s4 + $0x14] sm:$0xf]
    %v1140 = vld [vmem:[%s4 + $0x18] sm:$0xff]
    %v1141 = vld [vmem:[%s4 + $0x20] sm:$0xf]
    %v1142 = vld [vmem:[%s4 + $0x24] sm:$0xff]
    %v1143 = vld [vmem:[%s4 + $0x2c] sm:$0xf]
    %v1144 = vld [vmem:[%s4 + $0x30] sm:$0xff]
    %v1145 = vld [vmem:[%s4 + $0x38] sm:$0xf]
    %v1146 = vld [vmem:[%s4 + $0x3c] sm:$0xff]
    %v1147 = vld [vmem:[%s4 + $0x44] sm:$0xf]
    %v1148 = vld [vmem:[%s4 + $0x48] sm:$0xff]
    %v1149 = vld [vmem:[%s4 + $0x50] sm:$0xf]
    %v1150 = vld [vmem:[%s4 + $0x54] sm:$0xff]
    %v1151 = vld [vmem:[%s4 + $0x5c] sm:$0xf]
    %v1152 = vld [vmem:[%s4 + $0x60] sm:$0xff]
    %v1153 = vld [vmem:[%s4 + $0x68] sm:$0xf]
    %v1154 = vld [vmem:[%s4 + $0x6c] sm:$0xff]
    %v1155 = vld [vmem:[%s4 + $0x74] sm:$0xf]
    %v1156 = vld [vmem:[%s4 + $0x78] sm:$0xff]
    %v1157 = vld [vmem:[%s4 + $0x80] sm:$0xf]
    %v1158 = vld [vmem:[%s4 + $0x84] sm:$0xff]
    %v1159 = vld [vmem:[%s4 + $0x8c] sm:$0xf]
    %v1160 = vld [vmem:[%s4 + $0x90] sm:$0xff]
    %v1161 = vld [vmem:[%s4 + $0x98] sm:$0xf]
    %v1162 = vld [vmem:[%s4 + $0x9c] sm:$0xff]
    %v1163 = vld [vmem:[%s4 + $0xa4] sm:$0xf]
    %v1164 = vld [vmem:[%s4 + $0xa8] sm:$0xff]
    %v1165 = vld [vmem:[%s4 + $0xb0] sm:$0xf]
    %v1166 = vld [vmem:[%s4 + $0xb4] sm:$0xff]
    %v1167 = vld [vmem:[%s4 + $0xbc] sm:$0xf]
    %v1168 = vld [vmem:[%s7] sm:$0x1]
    %v1170 = vlaneseq
    %v1171 = vshrl.u32 %v1170, 7
    %v1172 = vsub.s32 0, %v1171
    %v1173 = vrot.slane %v1168, %v1172
    %v1207 = vunpack.c.l.b16 %v1136
    %v1208 = vunpack.c.h.b16 %v1136
    %v1209 = vunpack.c.l.b16 %v1137
    %v1210 = vunpack.c.l.b16 %v1138
    %v1211 = vunpack.c.h.b16 %v1138
    %v1212 = vunpack.c.l.b16 %v1139
    %v1213 = vunpack.c.l.b16 %v1140
    %v1214 = vunpack.c.h.b16 %v1140
    %v1215 = vunpack.c.l.b16 %v1141
    %v1216 = vunpack.c.l.b16 %v1142
    %v1217 = vunpack.c.h.b16 %v1142
    %v1218 = vunpack.c.l.b16 %v1143
    %v1219 = vunpack.c.l.b16 %v1144
    %v1220 = vunpack.c.h.b16 %v1144
    %v1221 = vunpack.c.l.b16 %v1145
    %v1222 = vunpack.c.l.b16 %v1146
    %v1223 = vunpack.c.h.b16 %v1146
    %v1224 = vunpack.c.l.b16 %v1147
    %v1225 = vunpack.c.l.b16 %v1148
    %v1226 = vunpack.c.h.b16 %v1148
    %v1227 = vunpack.c.l.b16 %v1149
    %v1228 = vunpack.c.l.b16 %v1150
    %v1229 = vunpack.c.h.b16 %v1150
    %v1230 = vunpack.c.l.b16 %v1151
    %v1231 = vunpack.c.l.b16 %v1152
    %v1232 = vunpack.c.h.b16 %v1152
    %v1233 = vunpack.c.l.b16 %v1153
    %v1234 = vunpack.c.l.b16 %v1154
    %v1235 = vunpack.c.h.b16 %v1154
    %v1236 = vunpack.c.l.b16 %v1155
    %v1237 = vunpack.c.l.b16 %v1156
    %v1238 = vunpack.c.h.b16 %v1156
    %v1239 = vunpack.c.l.b16 %v1157
    %v1240 = vunpack.c.l.b16 %v1158
    %v1241 = vunpack.c.h.b16 %v1158
    %v1242 = vunpack.c.l.b16 %v1159
    %v1243 = vunpack.c.l.b16 %v1160
    %v1244 = vunpack.c.h.b16 %v1160
    %v1245 = vunpack.c.l.b16 %v1161
    %v1246 = vunpack.c.l.b16 %v1162
    %v1247 = vunpack.c.h.b16 %v1162
    %v1248 = vunpack.c.l.b16 %v1163
    %v1249 = vunpack.c.l.b16 %v1164
    %v1250 = vunpack.c.h.b16 %v1164
    %v1251 = vunpack.c.l.b16 %v1165
    %v1252 = vunpack.c.l.b16 %v1166
    %v1253 = vunpack.c.h.b16 %v1166
    %v1254 = vunpack.c.l.b16 %v1167
    %v1255 = vpack.c.b16 %v1210, %v1207
    %v1256 = vpack.c.b16 %v1211, %v1208
    %v1257 = vpack.c.b16 %v1212, %v1209
    %v1258 = vpack.c.b16 %v1216, %v1213
    %v1259 = vpack.c.b16 %v1217, %v1214
    %v1260 = vpack.c.b16 %v1218, %v1215
    %v1261 = vpack.c.b16 %v1222, %v1219
    %v1262 = vpack.c.b16 %v1223, %v1220
    %v1263 = vpack.c.b16 %v1224, %v1221
    %v1264 = vpack.c.b16 %v1228, %v1225
    %v1265 = vpack.c.b16 %v1229, %v1226
    %v1266 = vpack.c.b16 %v1230, %v1227
    %v1267 = vpack.c.b16 %v1234, %v1231
    %v1268 = vpack.c.b16 %v1235, %v1232
    %v1269 = vpack.c.b16 %v1236, %v1233
    %v1270 = vpack.c.b16 %v1240, %v1237
    %v1271 = vpack.c.b16 %v1241, %v1238
    %v1272 = vpack.c.b16 %v1242, %v1239
    %v1273 = vpack.c.b16 %v1246, %v1243
    %v1274 = vpack.c.b16 %v1247, %v1244
    %v1275 = vpack.c.b16 %v1248, %v1245
    %v1276 = vpack.c.b16 %v1252, %v1249
    %v1277 = vpack.c.b16 %v1253, %v1250
    %v1278 = vpack.c.b16 %v1254, %v1251
    %1303 = vmatprep.subr.bf16.mxu0 %v1277
    %1304 = vmatpush1.bf16.msra.mxu0 %v1276
    %1305 = vmatprep.subr.bf16.mxu0 %v1274
    %1306 = vmatpush1.bf16.msra.mxu0 %v1273
    %1307 = vmatprep.subr.bf16.mxu0 %v1271
    %1308 = vmatpush1.bf16.msra.mxu0 %v1270
    %1309 = vmatprep.subr.bf16.mxu0 %v1268
    %1310 = vmatpush1.bf16.msra.mxu0 %v1267
    %1311 = vmatprep.subr.bf16.mxu0 %v1265
    %1312 = vmatpush1.bf16.msra.mxu0 %v1264
    %1313 = vmatprep.subr.bf16.mxu0 %v1262
    %1314 = vmatpush1.bf16.msra.mxu0 %v1261
    %1315 = vmatprep.subr.bf16.mxu0 %v1259
    %1316 = vmatpush1.bf16.msra.mxu0 %v1258
    %1317 = vmatprep.subr.bf16.mxu0 %v1256
    %1318 = vmatpush1.bf16.msra.mxu0 %v1255
    %1319 = vmatprep.subr.bf16.mxu0 0
    %1320 = vmatpush2.bf16.msra.mxu0 0
    %1321 = vmatprep.subr.bf16.mxu0 0
    %1322 = vmatpush2.bf16.msra.mxu0 0
    %1323 = vmatprep.subr.bf16.mxu0 0
    %1324 = vmatpush2.bf16.msra.mxu0 0
    %1325 = vmatprep.subr.bf16.mxu0 0
    %1326 = vmatpush2.bf16.msra.mxu0 0
    %1327 = vmatprep.subr.bf16.mxu0 0
    %1328 = vmatpush2.bf16.msra.mxu0 0
    %1329 = vmatprep.subr.bf16.mxu0 0
    %1330 = vmatpush2.bf16.msra.mxu0 0
    %1331 = vmatprep.subr.bf16.mxu0 0
    %1332 = vmatpush2.bf16.msra.mxu0 0
    %1333 = vmatprep.subr.bf16.mxu0 0
    %1334 = vmatpush2.bf16.msra.mxu0 0
    %1335 = vmatprep.mubr.bf16.mxu0 0
    %1336 = vmatmul.mubr.bf16.gmra.mxu0 0
    %v1337 = vpop.f32.mrf.mxu0
    %v1338 = vadd.f32 0.0, %v1337
    %v1339 = vpop.f32.mrf.mxu0
    %v1340 = vadd.f32 0.0, %v1339
    %v1341 = vpop.f32.mrf.mxu0
    %v1342 = vpop.f32.mrf.mxu0
    %1343 = vdwg.mxu0
    %1344 = vmatprep.subr.bf16.mxu0 0
    %1345 = vmatpush1.bf16.msra.mxu0 %v1278
    %1346 = vmatprep.subr.bf16.mxu0 0
    %1347 = vmatpush1.bf16.msra.mxu0 %v1275
    %1348 = vmatprep.subr.bf16.mxu0 0
    %1349 = vmatpush1.bf16.msra.mxu0 %v1272
    %1350 = vmatprep.subr.bf16.mxu0 0
    %1351 = vmatpush1.bf16.msra.mxu0 %v1269
    %1352 = vmatprep.subr.bf16.mxu0 0
    %1353 = vmatpush1.bf16.msra.mxu0 %v1266
    %1354 = vmatprep.subr.bf16.mxu0 0
    %1355 = vmatpush1.bf16.msra.mxu0 %v1263
    %1356 = vmatprep.subr.bf16.mxu0 0
    %1357 = vmatpush1.bf16.msra.mxu0 %v1260
    %1358 = vmatprep.subr.bf16.mxu0 0
    %1359 = vmatpush1.bf16.msra.mxu0 %v1257
    %1360 = vmatprep.subr.bf16.mxu0 0
    %1361 = vmatpush2.bf16.msra.mxu0 0
    %1362 = vmatprep.subr.bf16.mxu0 0
    %1363 = vmatpush2.bf16.msra.mxu0 0
    %1364 = vmatprep.subr.bf16.mxu0 0
    %1365 = vmatpush2.bf16.msra.mxu0 0
    %1366 = vmatprep.subr.bf16.mxu0 0
    %1367 = vmatpush2.bf16.msra.mxu0 0
    %1368 = vmatprep.subr.bf16.mxu0 0
    %1369 = vmatpush2.bf16.msra.mxu0 0
    %1370 = vmatprep.subr.bf16.mxu0 0
    %1371 = vmatpush2.bf16.msra.mxu0 0
    %1372 = vmatprep.subr.bf16.mxu0 0
    %1373 = vmatpush2.bf16.msra.mxu0 0
    %1374 = vmatprep.subr.bf16.mxu0 0
    %1375 = vmatpush2.bf16.msra.mxu0 0
    %1376 = vmatprep.mubr.bf16.mxu0 0
    %1377 = vmatmul.mubr.bf16.gmra.mxu0 0
    %v1378 = vpop.f32.mrf.mxu0
    %v1379 = vadd.f32 0.0, %v1378
    %v1380 = vpop.f32.mrf.mxu0
    %v1381 = vpop.f32.mrf.mxu0
    %v1382 = vpop.f32.mrf.mxu0
    %1383 = vdwg.mxu0
    %v1384 = vadd.f32 %v1036, %v1338
    %v1385 = vxor.u32 %v1384, 2147483648
    %v1386 = vmul.f32 %v1385, 1.442695
    %v1387 = vpow.pop %v1386
    %v1388 = vadd.f32 %v1387, 1.0
    %v1389 = vrcp.pop %v1388
    %v1390 = vmul.f32 1.0, %v1389
    %v1391 = vadd.f32 %v1038, %v1340
    %v1392 = vxor.u32 %v1391, 2147483648
    %v1393 = vmul.f32 %v1392, 1.442695
    %v1394 = vpow.pop %v1393
    %v1395 = vadd.f32 %v1394, 1.0
    %v1396 = vrcp.pop %v1395
    %v1397 = vmul.f32 1.0, %v1396
    %v1398 = vadd.f32 %v1379, %v1173
    %v1399 = vmul.f32 %v1390, %v1398
    %v1400 = vadd.f32 %v1107, %v1399
    %v1401 = vtanh.pop %v1400
    %v1402 = vsub.f32 1.0, %v1397
    %v1403 = vmul.f32 %v1402, %v1401
    %v1404 = vmul.f32 %v1397, 0.0
    %v1405 = vadd.f32 %v1403, %v1404
    %v1406 = vpack.c.bf16 %v1405, %v1405
    %1407 = vmatprep.subr.bf16.mxu0 %v1277
    %1408 = vmatpush1.bf16.msra.mxu0 %v1276
    %1409 = vmatprep.subr.bf16.mxu0 %v1274
    %1410 = vmatpush1.bf16.msra.mxu0 %v1273
    %1411 = vmatprep.subr.bf16.mxu0 %v1271
    %1412 = vmatpush1.bf16.msra.mxu0 %v1270
    %1413 = vmatprep.subr.bf16.mxu0 %v1268
    %1414 = vmatpush1.bf16.msra.mxu0 %v1267
    %1415 = vmatprep.subr.bf16.mxu0 %v1265
    %1416 = vmatpush1.bf16.msra.mxu0 %v1264
    %1417 = vmatprep.subr.bf16.mxu0 %v1262
    %1418 = vmatpush1.bf16.msra.mxu0 %v1261
    %1419 = vmatprep.subr.bf16.mxu0 %v1259
    %1420 = vmatpush1.bf16.msra.mxu0 %v1258
    %1421 = vmatprep.subr.bf16.mxu0 %v1256
    %1422 = vmatpush1.bf16.msra.mxu0 %v1255
    %1423 = vmatprep.subr.bf16.mxu0 0
    %1424 = vmatpush2.bf16.msra.mxu0 0
    %1425 = vmatprep.subr.bf16.mxu0 0
    %1426 = vmatpush2.bf16.msra.mxu0 0
    %1427 = vmatprep.subr.bf16.mxu0 0
    %1428 = vmatpush2.bf16.msra.mxu0 0
    %1429 = vmatprep.subr.bf16.mxu0 0
    %1430 = vmatpush2.bf16.msra.mxu0 0
    %1431 = vmatprep.subr.bf16.mxu0 0
    %1432 = vmatpush2.bf16.msra.mxu0 0
    %1433 = vmatprep.subr.bf16.mxu0 0
    %1434 = vmatpush2.bf16.msra.mxu0 0
    %1435 = vmatprep.subr.bf16.mxu0 0
    %1436 = vmatpush2.bf16.msra.mxu0 0
    %1437 = vmatprep.subr.bf16.mxu0 0
    %1438 = vmatpush2.bf16.msra.mxu0 0
    %1439 = vmatprep.mubr.bf16.mxu0 0
    %1440 = vmatmul.mubr.bf16.gmra.mxu0 %v1406
    %v1441 = vpop.f32.mrf.mxu0
    %v1442 = vadd.f32 0.0, %v1441
    %v1443 = vpop.f32.mrf.mxu0
    %v1444 = vadd.f32 0.0, %v1443
    %v1445 = vpop.f32.mrf.mxu0
    %v1446 = vpop.f32.mrf.mxu0
    %1447 = vdwg.mxu0
    %1448 = vmatprep.subr.bf16.mxu0 0
    %1449 = vmatpush1.bf16.msra.mxu0 %v1278
    %1450 = vmatprep.subr.bf16.mxu0 0
    %1451 = vmatpush1.bf16.msra.mxu0 %v1275
    %1452 = vmatprep.subr.bf16.mxu0 0
    %1453 = vmatpush1.bf16.msra.mxu0 %v1272
    %1454 = vmatprep.subr.bf16.mxu0 0
    %1455 = vmatpush1.bf16.msra.mxu0 %v1269
    %1456 = vmatprep.subr.bf16.mxu0 0
    %1457 = vmatpush1.bf16.msra.mxu0 %v1266
    %1458 = vmatprep.subr.bf16.mxu0 0
    %1459 = vmatpush1.bf16.msra.mxu0 %v1263
    %1460 = vmatprep.subr.bf16.mxu0 0
    %1461 = vmatpush1.bf16.msra.mxu0 %v1260
    %1462 = vmatprep.subr.bf16.mxu0 0
    %1463 = vmatpush1.bf16.msra.mxu0 %v1257
    %1464 = vmatprep.subr.bf16.mxu0 0
    %1465 = vmatpush2.bf16.msra.mxu0 0
    %1466 = vmatprep.subr.bf16.mxu0 0
    %1467 = vmatpush2.bf16.msra.mxu0 0
    %1468 = vmatprep.subr.bf16.mxu0 0
    %1469 = vmatpush2.bf16.msra.mxu0 0
    %1470 = vmatprep.subr.bf16.mxu0 0
    %1471 = vmatpush2.bf16.msra.mxu0 0
    %1472 = vmatprep.subr.bf16.mxu0 0
    %1473 = vmatpush2.bf16.msra.mxu0 0
    %1474 = vmatprep.subr.bf16.mxu0 0
    %1475 = vmatpush2.bf16.msra.mxu0 0
    %1476 = vmatprep.subr.bf16.mxu0 0
    %1477 = vmatpush2.bf16.msra.mxu0 0
    %1478 = vmatprep.subr.bf16.mxu0 0
    %1479 = vmatpush2.bf16.msra.mxu0 0
    %1480 = vmatprep.mubr.bf16.mxu0 0
    %1481 = vmatmul.mubr.bf16.gmra.mxu0 %v1406
    %v1482 = vpop.f32.mrf.mxu0
    %v1483 = vadd.f32 0.0, %v1482
    %v1484 = vpop.f32.mrf.mxu0
    %v1485 = vpop.f32.mrf.mxu0
    %v1486 = vpop.f32.mrf.mxu0
    %1487 = vdwg.mxu0
    %v1488 = vadd.f32 %v1040, %v1442
    %v1489 = vxor.u32 %v1488, 2147483648
    %v1490 = vmul.f32 %v1489, 1.442695
    %v1491 = vpow.pop %v1490
    %v1492 = vadd.f32 %v1491, 1.0
    %v1493 = vrcp.pop %v1492
    %v1494 = vmul.f32 1.0, %v1493
    %v1495 = vadd.f32 %v1042, %v1444
    %v1496 = vxor.u32 %v1495, 2147483648
    %v1497 = vmul.f32 %v1496, 1.442695
    %v1498 = vpow.pop %v1497
    %v1499 = vadd.f32 %v1498, 1.0
    %v1500 = vrcp.pop %v1499
    %v1501 = vmul.f32 1.0, %v1500
    %v1502 = vadd.f32 %v1483, %v1173
    %v1503 = vmul.f32 %v1494, %v1502
    %v1504 = vadd.f32 %v1110, %v1503
    %v1505 = vtanh.pop %v1504
    %v1506 = vsub.f32 1.0, %v1501
    %v1507 = vmul.f32 %v1506, %v1505
    %v1508 = vmul.f32 %v1501, %v1405
    %v1509 = vadd.f32 %v1507, %v1508
    %v1510 = vpack.c.bf16 %v1509, %v1509
    %1511 = vmatprep.subr.bf16.mxu0 %v1277
    %1512 = vmatpush1.bf16.msra.mxu0 %v1276
    %1513 = vmatprep.subr.bf16.mxu0 %v1274
    %1514 = vmatpush1.bf16.msra.mxu0 %v1273
    %1515 = vmatprep.subr.bf16.mxu0 %v1271
    %1516 = vmatpush1.bf16.msra.mxu0 %v1270
    %1517 = vmatprep.subr.bf16.mxu0 %v1268
    %1518 = vmatpush1.bf16.msra.mxu0 %v1267
    %1519 = vmatprep.subr.bf16.mxu0 %v1265
    %1520 = vmatpush1.bf16.msra.mxu0 %v1264
    %1521 = vmatprep.subr.bf16.mxu0 %v1262
    %1522 = vmatpush1.bf16.msra.mxu0 %v1261
    %1523 = vmatprep.subr.bf16.mxu0 %v1259
    %1524 = vmatpush1.bf16.msra.mxu0 %v1258
    %1525 = vmatprep.subr.bf16.mxu0 %v1256
    %1526 = vmatpush1.bf16.msra.mxu0 %v1255
    %1527 = vmatprep.subr.bf16.mxu0 0
    %1528 = vmatpush2.bf16.msra.mxu0 0
    %1529 = vmatprep.subr.bf16.mxu0 0
    %1530 = vmatpush2.bf16.msra.mxu0 0
    %1531 = vmatprep.subr.bf16.mxu0 0
    %1532 = vmatpush2.bf16.msra.mxu0 0
    %1533 = vmatprep.subr.bf16.mxu0 0
    %1534 = vmatpush2.bf16.msra.mxu0 0
    %1535 = vmatprep.subr.bf16.mxu0 0
    %1536 = vmatpush2.bf16.msra.mxu0 0
    %1537 = vmatprep.subr.bf16.mxu0 0
    %1538 = vmatpush2.bf16.msra.mxu0 0
    %1539 = vmatprep.subr.bf16.mxu0 0
    %1540 = vmatpush2.bf16.msra.mxu0 0
    %1541 = vmatprep.subr.bf16.mxu0 0
    %1542 = vmatpush2.bf16.msra.mxu0 0
    %1543 = vmatprep.mubr.bf16.mxu0 0
    %1544 = vmatmul.mubr.bf16.gmra.mxu0 %v1510
    %v1545 = vpop.f32.mrf.mxu0
    %v1546 = vadd.f32 0.0, %v1545
    %v1547 = vpop.f32.mrf.mxu0
    %v1548 = vadd.f32 0.0, %v1547
    %v1549 = vpop.f32.mrf.mxu0
    %v1550 = vpop.f32.mrf.mxu0
    %1551 = vdwg.mxu0
    %1552 = vmatprep.subr.bf16.mxu0 0
    %1553 = vmatpush1.bf16.msra.mxu0 %v1278
    %1554 = vmatprep.subr.bf16.mxu0 0
    %1555 = vmatpush1.bf16.msra.mxu0 %v1275
    %1556 = vmatprep.subr.bf16.mxu0 0
    %1557 = vmatpush1.bf16.msra.mxu0 %v1272
    %1558 = vmatprep.subr.bf16.mxu0 0
    %1559 = vmatpush1.bf16.msra.mxu0 %v1269
    %1560 = vmatprep.subr.bf16.mxu0 0
    %1561 = vmatpush1.bf16.msra.mxu0 %v1266
    %1562 = vmatprep.subr.bf16.mxu0 0
    %1563 = vmatpush1.bf16.msra.mxu0 %v1263
    %1564 = vmatprep.subr.bf16.mxu0 0
    %1565 = vmatpush1.bf16.msra.mxu0 %v1260
    %1566 = vmatprep.subr.bf16.mxu0 0
    %1567 = vmatpush1.bf16.msra.mxu0 %v1257
    %1568 = vmatprep.subr.bf16.mxu0 0
    %1569 = vmatpush2.bf16.msra.mxu0 0
    %1570 = vmatprep.subr.bf16.mxu0 0
    %1571 = vmatpush2.bf16.msra.mxu0 0
    %1572 = vmatprep.subr.bf16.mxu0 0
    %1573 = vmatpush2.bf16.msra.mxu0 0
    %1574 = vmatprep.subr.bf16.mxu0 0
    %1575 = vmatpush2.bf16.msra.mxu0 0
    %1576 = vmatprep.subr.bf16.mxu0 0
    %1577 = vmatpush2.bf16.msra.mxu0 0
    %1578 = vmatprep.subr.bf16.mxu0 0
    %1579 = vmatpush2.bf16.msra.mxu0 0
    %1580 = vmatprep.subr.bf16.mxu0 0
    %1581 = vmatpush2.bf16.msra.mxu0 0
    %1582 = vmatprep.subr.bf16.mxu0 0
    %1583 = vmatpush2.bf16.msra.mxu0 0
    %1584 = vmatprep.mubr.bf16.mxu0 0
    %1585 = vmatmul.mubr.bf16.gmra.mxu0 %v1510
    %v1586 = vpop.f32.mrf.mxu0
    %v1587 = vadd.f32 0.0, %v1586
    %v1588 = vpop.f32.mrf.mxu0
    %v1589 = vpop.f32.mrf.mxu0
    %v1590 = vpop.f32.mrf.mxu0
    %1591 = vdwg.mxu0
    %v1592 = vadd.f32 %v1046, %v1546
    %v1593 = vxor.u32 %v1592, 2147483648
    %v1594 = vmul.f32 %v1593, 1.442695
    %v1595 = vpow.pop %v1594
    %v1596 = vadd.f32 %v1595, 1.0
    %v1597 = vrcp.pop %v1596
    %v1598 = vmul.f32 1.0, %v1597
    %v1599 = vadd.f32 %v1048, %v1548
    %v1600 = vxor.u32 %v1599, 2147483648
    %v1601 = vmul.f32 %v1600, 1.442695
    %v1602 = vpow.pop %v1601
    %v1603 = vadd.f32 %v1602, 1.0
    %v1604 = vrcp.pop %v1603
    %v1605 = vmul.f32 1.0, %v1604
    %v1606 = vadd.f32 %v1587, %v1173
    %v1607 = vmul.f32 %v1598, %v1606
    %v1608 = vadd.f32 %v1115, %v1607
    %v1609 = vtanh.pop %v1608
    %v1610 = vsub.f32 1.0, %v1605
    %v1611 = vmul.f32 %v1610, %v1609
    %v1612 = vmul.f32 %v1605, %v1509
    %v1613 = vadd.f32 %v1611, %v1612
    %v1614 = vpack.c.bf16 %v1613, %v1613
    %1615 = vmatprep.subr.bf16.mxu0 %v1277
    %1616 = vmatpush1.bf16.msra.mxu0 %v1276
    %1617 = vmatprep.subr.bf16.mxu0 %v1274
    %1618 = vmatpush1.bf16.msra.mxu0 %v1273
    %1619 = vmatprep.subr.bf16.mxu0 %v1271
    %1620 = vmatpush1.bf16.msra.mxu0 %v1270
    %1621 = vmatprep.subr.bf16.mxu0 %v1268
    %1622 = vmatpush1.bf16.msra.mxu0 %v1267
    %1623 = vmatprep.subr.bf16.mxu0 %v1265
    %1624 = vmatpush1.bf16.msra.mxu0 %v1264
    %1625 = vmatprep.subr.bf16.mxu0 %v1262
    %1626 = vmatpush1.bf16.msra.mxu0 %v1261
    %1627 = vmatprep.subr.bf16.mxu0 %v1259
    %1628 = vmatpush1.bf16.msra.mxu0 %v1258
    %1629 = vmatprep.subr.bf16.mxu0 %v1256
    %1630 = vmatpush1.bf16.msra.mxu0 %v1255
    %1631 = vmatprep.subr.bf16.mxu0 0
    %1632 = vmatpush2.bf16.msra.mxu0 0
    %1633 = vmatprep.subr.bf16.mxu0 0
    %1634 = vmatpush2.bf16.msra.mxu0 0
    %1635 = vmatprep.subr.bf16.mxu0 0
    %1636 = vmatpush2.bf16.msra.mxu0 0
    %1637 = vmatprep.subr.bf16.mxu0 0
    %1638 = vmatpush2.bf16.msra.mxu0 0
    %1639 = vmatprep.subr.bf16.mxu0 0
    %1640 = vmatpush2.bf16.msra.mxu0 0
    %1641 = vmatprep.subr.bf16.mxu0 0
    %1642 = vmatpush2.bf16.msra.mxu0 0
    %1643 = vmatprep.subr.bf16.mxu0 0
    %1644 = vmatpush2.bf16.msra.mxu0 0
    %1645 = vmatprep.subr.bf16.mxu0 0
    %1646 = vmatpush2.bf16.msra.mxu0 0
    %1647 = vmatprep.mubr.bf16.mxu0 0
    %1648 = vmatmul.mubr.bf16.gmra.mxu0 %v1614
    %v1649 = vpop.f32.mrf.mxu0
    %v1650 = vadd.f32 0.0, %v1649
    %v1651 = vpop.f32.mrf.mxu0
    %v1652 = vadd.f32 0.0, %v1651
    %v1653 = vpop.f32.mrf.mxu0
    %v1654 = vpop.f32.mrf.mxu0
    %1655 = vdwg.mxu0
    %1656 = vmatprep.subr.bf16.mxu0 0
    %1657 = vmatpush1.bf16.msra.mxu0 %v1278
    %1658 = vmatprep.subr.bf16.mxu0 0
    %1659 = vmatpush1.bf16.msra.mxu0 %v1275
    %1660 = vmatprep.subr.bf16.mxu0 0
    %1661 = vmatpush1.bf16.msra.mxu0 %v1272
    %1662 = vmatprep.subr.bf16.mxu0 0
    %1663 = vmatpush1.bf16.msra.mxu0 %v1269
    %1664 = vmatprep.subr.bf16.mxu0 0
    %1665 = vmatpush1.bf16.msra.mxu0 %v1266
    %1666 = vmatprep.subr.bf16.mxu0 0
    %1667 = vmatpush1.bf16.msra.mxu0 %v1263
    %1668 = vmatprep.subr.bf16.mxu0 0
    %1669 = vmatpush1.bf16.msra.mxu0 %v1260
    %1670 = vmatprep.subr.bf16.mxu0 0
    %1671 = vmatpush1.bf16.msra.mxu0 %v1257
    %1672 = vmatprep.subr.bf16.mxu0 0
    %1673 = vmatpush2.bf16.msra.mxu0 0
    %1674 = vmatprep.subr.bf16.mxu0 0
    %1675 = vmatpush2.bf16.msra.mxu0 0
    %1676 = vmatprep.subr.bf16.mxu0 0
    %1677 = vmatpush2.bf16.msra.mxu0 0
    %1678 = vmatprep.subr.bf16.mxu0 0
    %1679 = vmatpush2.bf16.msra.mxu0 0
    %1680 = vmatprep.subr.bf16.mxu0 0
    %1681 = vmatpush2.bf16.msra.mxu0 0
    %1682 = vmatprep.subr.bf16.mxu0 0
    %1683 = vmatpush2.bf16.msra.mxu0 0
    %1684 = vmatprep.subr.bf16.mxu0 0
    %1685 = vmatpush2.bf16.msra.mxu0 0
    %1686 = vmatprep.subr.bf16.mxu0 0
    %1687 = vmatpush2.bf16.msra.mxu0 0
    %1688 = vmatprep.mubr.bf16.mxu0 0
    %1689 = vmatmul.mubr.bf16.gmra.mxu0 %v1614
    %v1690 = vpop.f32.mrf.mxu0
    %v1691 = vadd.f32 0.0, %v1690
    %v1692 = vpop.f32.mrf.mxu0
    %v1693 = vpop.f32.mrf.mxu0
    %v1694 = vpop.f32.mrf.mxu0
    %1695 = vdwg.mxu0
    %v1696 = vadd.f32 %v1050, %v1650
    %v1697 = vxor.u32 %v1696, 2147483648
    %v1698 = vmul.f32 %v1697, 1.442695
    %v1699 = vpow.pop %v1698
    %v1700 = vadd.f32 %v1699, 1.0
    %v1701 = vrcp.pop %v1700
    %v1702 = vmul.f32 1.0, %v1701
    %v1703 = vadd.f32 %v1052, %v1652
    %v1704 = vxor.u32 %v1703, 2147483648
    %v1705 = vmul.f32 %v1704, 1.442695
    %v1706 = vpow.pop %v1705
    %v1707 = vadd.f32 %v1706, 1.0
    %v1708 = vrcp.pop %v1707
    %v1709 = vmul.f32 1.0, %v1708
    %v1710 = vadd.f32 %v1691, %v1173
    %v1711 = vmul.f32 %v1702, %v1710
    %v1712 = vadd.f32 %v1118, %v1711
    %v1713 = vtanh.pop %v1712
    %v1714 = vsub.f32 1.0, %v1709
    %v1715 = vmul.f32 %v1714, %v1713
    %v1716 = vmul.f32 %v1709, %v1613
    %v1717 = vadd.f32 %v1715, %v1716
    %v1718 = vpack.c.bf16 %v1717, %v1717
    %1719 = vmatprep.subr.bf16.mxu0 %v1277
    %1720 = vmatpush1.bf16.msra.mxu0 %v1276
    %1721 = vmatprep.subr.bf16.mxu0 %v1274
    %1722 = vmatpush1.bf16.msra.mxu0 %v1273
    %1723 = vmatprep.subr.bf16.mxu0 %v1271
    %1724 = vmatpush1.bf16.msra.mxu0 %v1270
    %1725 = vmatprep.subr.bf16.mxu0 %v1268
    %1726 = vmatpush1.bf16.msra.mxu0 %v1267
    %1727 = vmatprep.subr.bf16.mxu0 %v1265
    %1728 = vmatpush1.bf16.msra.mxu0 %v1264
    %1729 = vmatprep.subr.bf16.mxu0 %v1262
    %1730 = vmatpush1.bf16.msra.mxu0 %v1261
    %1731 = vmatprep.subr.bf16.mxu0 %v1259
    %1732 = vmatpush1.bf16.msra.mxu0 %v1258
    %1733 = vmatprep.subr.bf16.mxu0 %v1256
    %1734 = vmatpush1.bf16.msra.mxu0 %v1255
    %1735 = vmatprep.subr.bf16.mxu0 0
    %1736 = vmatpush2.bf16.msra.mxu0 0
    %1737 = vmatprep.subr.bf16.mxu0 0
    %1738 = vmatpush2.bf16.msra.mxu0 0
    %1739 = vmatprep.subr.bf16.mxu0 0
    %1740 = vmatpush2.bf16.msra.mxu0 0
    %1741 = vmatprep.subr.bf16.mxu0 0
    %1742 = vmatpush2.bf16.msra.mxu0 0
    %1743 = vmatprep.subr.bf16.mxu0 0
    %1744 = vmatpush2.bf16.msra.mxu0 0
    %1745 = vmatprep.subr.bf16.mxu0 0
    %1746 = vmatpush2.bf16.msra.mxu0 0
    %1747 = vmatprep.subr.bf16.mxu0 0
    %1748 = vmatpush2.bf16.msra.mxu0 0
    %1749 = vmatprep.subr.bf16.mxu0 0
    %1750 = vmatpush2.bf16.msra.mxu0 0
    %1751 = vmatprep.mubr.bf16.mxu0 0
    %1752 = vmatmul.mubr.bf16.gmra.mxu0 %v1718
    %v1753 = vpop.f32.mrf.mxu0
    %v1754 = vadd.f32 0.0, %v1753
    %v1755 = vpop.f32.mrf.mxu0
    %v1756 = vadd.f32 0.0, %v1755
    %v1757 = vpop.f32.mrf.mxu0
    %v1758 = vpop.f32.mrf.mxu0
    %1759 = vdwg.mxu0
    %1760 = vmatprep.subr.bf16.mxu0 0
    %1761 = vmatpush1.bf16.msra.mxu0 %v1278
    %1762 = vmatprep.subr.bf16.mxu0 0
    %1763 = vmatpush1.bf16.msra.mxu0 %v1275
    %1764 = vmatprep.subr.bf16.mxu0 0
    %1765 = vmatpush1.bf16.msra.mxu0 %v1272
    %1766 = vmatprep.subr.bf16.mxu0 0
    %1767 = vmatpush1.bf16.msra.mxu0 %v1269
    %1768 = vmatprep.subr.bf16.mxu0 0
    %1769 = vmatpush1.bf16.msra.mxu0 %v1266
    %1770 = vmatprep.subr.bf16.mxu0 0
    %1771 = vmatpush1.bf16.msra.mxu0 %v1263
    %1772 = vmatprep.subr.bf16.mxu0 0
    %1773 = vmatpush1.bf16.msra.mxu0 %v1260
    %1774 = vmatprep.subr.bf16.mxu0 0
    %1775 = vmatpush1.bf16.msra.mxu0 %v1257
    %1776 = vmatprep.subr.bf16.mxu0 0
    %1777 = vmatpush2.bf16.msra.mxu0 0
    %1778 = vmatprep.subr.bf16.mxu0 0
    %1779 = vmatpush2.bf16.msra.mxu0 0
    %1780 = vmatprep.subr.bf16.mxu0 0
    %1781 = vmatpush2.bf16.msra.mxu0 0
    %1782 = vmatprep.subr.bf16.mxu0 0
    %1783 = vmatpush2.bf16.msra.mxu0 0
    %1784 = vmatprep.subr.bf16.mxu0 0
    %1785 = vmatpush2.bf16.msra.mxu0 0
    %1786 = vmatprep.subr.bf16.mxu0 0
    %1787 = vmatpush2.bf16.msra.mxu0 0
    %1788 = vmatprep.subr.bf16.mxu0 0
    %1789 = vmatpush2.bf16.msra.mxu0 0
    %1790 = vmatprep.subr.bf16.mxu0 0
    %1791 = vmatpush2.bf16.msra.mxu0 0
    %1792 = vmatprep.mubr.bf16.mxu0 0
    %1793 = vmatmul.mubr.bf16.gmra.mxu0 %v1718
    %v1794 = vpop.f32.mrf.mxu0
    %v1795 = vadd.f32 0.0, %v1794
    %v1796 = vpop.f32.mrf.mxu0
    %v1797 = vpop.f32.mrf.mxu0
    %v1798 = vpop.f32.mrf.mxu0
    %1799 = vdwg.mxu0
    %v1800 = vadd.f32 %v1056, %v1754
    %v1801 = vxor.u32 %v1800, 2147483648
    %v1802 = vmul.f32 %v1801, 1.442695
    %v1803 = vpow.pop %v1802
    %v1804 = vadd.f32 %v1803, 1.0
    %v1805 = vrcp.pop %v1804
    %v1806 = vmul.f32 1.0, %v1805
    %v1807 = vadd.f32 %v1058, %v1756
    %v1808 = vxor.u32 %v1807, 2147483648
    %v1809 = vmul.f32 %v1808, 1.442695
    %v1810 = vpow.pop %v1809
    %v1811 = vadd.f32 %v1810, 1.0
    %v1812 = vrcp.pop %v1811
    %v1813 = vmul.f32 1.0, %v1812
    %v1814 = vadd.f32 %v1795, %v1173
    %v1815 = vmul.f32 %v1806, %v1814
    %v1816 = vadd.f32 %v1123, %v1815
    %v1817 = vtanh.pop %v1816
    %v1818 = vsub.f32 1.0, %v1813
    %v1819 = vmul.f32 %v1818, %v1817
    %v1820 = vmul.f32 %v1813, %v1717
    %v1821 = vadd.f32 %v1819, %v1820
    %v1822 = vpack.c.bf16 %v1821, %v1821
    %1823 = vmatprep.subr.bf16.mxu0 %v1277
    %1824 = vmatpush1.bf16.msra.mxu0 %v1276
    %1825 = vmatprep.subr.bf16.mxu0 %v1274
    %1826 = vmatpush1.bf16.msra.mxu0 %v1273
    %1827 = vmatprep.subr.bf16.mxu0 %v1271
    %1828 = vmatpush1.bf16.msra.mxu0 %v1270
    %1829 = vmatprep.subr.bf16.mxu0 %v1268
    %1830 = vmatpush1.bf16.msra.mxu0 %v1267
    %1831 = vmatprep.subr.bf16.mxu0 %v1265
    %1832 = vmatpush1.bf16.msra.mxu0 %v1264
    %1833 = vmatprep.subr.bf16.mxu0 %v1262
    %1834 = vmatpush1.bf16.msra.mxu0 %v1261
    %1835 = vmatprep.subr.bf16.mxu0 %v1259
    %1836 = vmatpush1.bf16.msra.mxu0 %v1258
    %1837 = vmatprep.subr.bf16.mxu0 %v1256
    %1838 = vmatpush1.bf16.msra.mxu0 %v1255
    %1839 = vmatprep.subr.bf16.mxu0 0
    %1840 = vmatpush2.bf16.msra.mxu0 0
    %1841 = vmatprep.subr.bf16.mxu0 0
    %1842 = vmatpush2.bf16.msra.mxu0 0
    %1843 = vmatprep.subr.bf16.mxu0 0
    %1844 = vmatpush2.bf16.msra.mxu0 0
    %1845 = vmatprep.subr.bf16.mxu0 0
    %1846 = vmatpush2.bf16.msra.mxu0 0
    %1847 = vmatprep.subr.bf16.mxu0 0
    %1848 = vmatpush2.bf16.msra.mxu0 0
    %1849 = vmatprep.subr.bf16.mxu0 0
    %1850 = vmatpush2.bf16.msra.mxu0 0
    %1851 = vmatprep.subr.bf16.mxu0 0
    %1852 = vmatpush2.bf16.msra.mxu0 0
    %1853 = vmatprep.subr.bf16.mxu0 0
    %1854 = vmatpush2.bf16.msra.mxu0 0
    %1855 = vmatprep.mubr.bf16.mxu0 0
    %1856 = vmatmul.mubr.bf16.gmra.mxu0 %v1822
    %v1857 = vpop.f32.mrf.mxu0
    %v1858 = vadd.f32 0.0, %v1857
    %v1859 = vpop.f32.mrf.mxu0
    %v1860 = vadd.f32 0.0, %v1859
    %v1861 = vpop.f32.mrf.mxu0
    %v1862 = vpop.f32.mrf.mxu0
    %1863 = vdwg.mxu0
    %1864 = vmatprep.subr.bf16.mxu0 0
    %1865 = vmatpush1.bf16.msra.mxu0 %v1278
    %1866 = vmatprep.subr.bf16.mxu0 0
    %1867 = vmatpush1.bf16.msra.mxu0 %v1275
    %1868 = vmatprep.subr.bf16.mxu0 0
    %1869 = vmatpush1.bf16.msra.mxu0 %v1272
    %1870 = vmatprep.subr.bf16.mxu0 0
    %1871 = vmatpush1.bf16.msra.mxu0 %v1269
    %1872 = vmatprep.subr.bf16.mxu0 0
    %1873 = vmatpush1.bf16.msra.mxu0 %v1266
    %1874 = vmatprep.subr.bf16.mxu0 0
    %1875 = vmatpush1.bf16.msra.mxu0 %v1263
    %1876 = vmatprep.subr.bf16.mxu0 0
    %1877 = vmatpush1.bf16.msra.mxu0 %v1260
    %1878 = vmatprep.subr.bf16.mxu0 0
    %1879 = vmatpush1.bf16.msra.mxu0 %v1257
    %1880 = vmatprep.subr.bf16.mxu0 0
    %1881 = vmatpush2.bf16.msra.mxu0 0
    %1882 = vmatprep.subr.bf16.mxu0 0
    %1883 = vmatpush2.bf16.msra.mxu0 0
    %1884 = vmatprep.subr.bf16.mxu0 0
    %1885 = vmatpush2.bf16.msra.mxu0 0
    %1886 = vmatprep.subr.bf16.mxu0 0
    %1887 = vmatpush2.bf16.msra.mxu0 0
    %1888 = vmatprep.subr.bf16.mxu0 0
    %1889 = vmatpush2.bf16.msra.mxu0 0
    %1890 = vmatprep.subr.bf16.mxu0 0
    %1891 = vmatpush2.bf16.msra.mxu0 0
    %1892 = vmatprep.subr.bf16.mxu0 0
    %1893 = vmatpush2.bf16.msra.mxu0 0
    %1894 = vmatprep.subr.bf16.mxu0 0
    %1895 = vmatpush2.bf16.msra.mxu0 0
    %1896 = vmatprep.mubr.bf16.mxu0 0
    %1897 = vmatmul.mubr.bf16.gmra.mxu0 %v1822
    %v1898 = vpop.f32.mrf.mxu0
    %v1899 = vadd.f32 0.0, %v1898
    %v1900 = vpop.f32.mrf.mxu0
    %v1901 = vpop.f32.mrf.mxu0
    %v1902 = vpop.f32.mrf.mxu0
    %1903 = vdwg.mxu0
    %v1904 = vadd.f32 %v1060, %v1858
    %v1905 = vxor.u32 %v1904, 2147483648
    %v1906 = vmul.f32 %v1905, 1.442695
    %v1907 = vpow.pop %v1906
    %v1908 = vadd.f32 %v1907, 1.0
    %v1909 = vrcp.pop %v1908
    %v1910 = vmul.f32 1.0, %v1909
    %v1911 = vadd.f32 %v1062, %v1860
    %v1912 = vxor.u32 %v1911, 2147483648
    %v1913 = vmul.f32 %v1912, 1.442695
    %v1914 = vpow.pop %v1913
    %v1915 = vadd.f32 %v1914, 1.0
    %v1916 = vrcp.pop %v1915
    %v1917 = vmul.f32 1.0, %v1916
    %v1918 = vadd.f32 %v1899, %v1173
    %v1919 = vmul.f32 %v1910, %v1918
    %v1920 = vadd.f32 %v1126, %v1919
    %v1921 = vtanh.pop %v1920
    %v1922 = vsub.f32 1.0, %v1917
    %v1923 = vmul.f32 %v1922, %v1921
    %v1924 = vmul.f32 %v1917, %v1821
    %v1925 = vadd.f32 %v1923, %v1924
    %v1926 = vpack.c.bf16 %v1925, %v1925
    %1927 = vmatprep.subr.bf16.mxu0 %v1277
    %1928 = vmatpush1.bf16.msra.mxu0 %v1276
    %1929 = vmatprep.subr.bf16.mxu0 %v1274
    %1930 = vmatpush1.bf16.msra.mxu0 %v1273
    %1931 = vmatprep.subr.bf16.mxu0 %v1271
    %1932 = vmatpush1.bf16.msra.mxu0 %v1270
    %1933 = vmatprep.subr.bf16.mxu0 %v1268
    %1934 = vmatpush1.bf16.msra.mxu0 %v1267
    %1935 = vmatprep.subr.bf16.mxu0 %v1265
    %1936 = vmatpush1.bf16.msra.mxu0 %v1264
    %1937 = vmatprep.subr.bf16.mxu0 %v1262
    %1938 = vmatpush1.bf16.msra.mxu0 %v1261
    %1939 = vmatprep.subr.bf16.mxu0 %v1259
    %1940 = vmatpush1.bf16.msra.mxu0 %v1258
    %1941 = vmatprep.subr.bf16.mxu0 %v1256
    %1942 = vmatpush1.bf16.msra.mxu0 %v1255
    %1943 = vmatprep.subr.bf16.mxu0 0
    %1944 = vmatpush2.bf16.msra.mxu0 0
    %1945 = vmatprep.subr.bf16.mxu0 0
    %1946 = vmatpush2.bf16.msra.mxu0 0
    %1947 = vmatprep.subr.bf16.mxu0 0
    %1948 = vmatpush2.bf16.msra.mxu0 0
    %1949 = vmatprep.subr.bf16.mxu0 0
    %1950 = vmatpush2.bf16.msra.mxu0 0
    %1951 = vmatprep.subr.bf16.mxu0 0
    %1952 = vmatpush2.bf16.msra.mxu0 0
    %1953 = vmatprep.subr.bf16.mxu0 0
    %1954 = vmatpush2.bf16.msra.mxu0 0
    %1955 = vmatprep.subr.bf16.mxu0 0
    %1956 = vmatpush2.bf16.msra.mxu0 0
    %1957 = vmatprep.subr.bf16.mxu0 0
    %1958 = vmatpush2.bf16.msra.mxu0 0
    %1959 = vmatprep.mubr.bf16.mxu0 0
    %1960 = vmatmul.mubr.bf16.gmra.mxu0 %v1926
    %v1961 = vpop.f32.mrf.mxu0
    %v1962 = vadd.f32 0.0, %v1961
    %v1963 = vpop.f32.mrf.mxu0
    %v1964 = vadd.f32 0.0, %v1963
    %v1965 = vpop.f32.mrf.mxu0
    %v1966 = vpop.f32.mrf.mxu0
    %1967 = vdwg.mxu0
    %1968 = vmatprep.subr.bf16.mxu0 0
    %1969 = vmatpush1.bf16.msra.mxu0 %v1278
    %1970 = vmatprep.subr.bf16.mxu0 0
    %1971 = vmatpush1.bf16.msra.mxu0 %v1275
    %1972 = vmatprep.subr.bf16.mxu0 0
    %1973 = vmatpush1.bf16.msra.mxu0 %v1272
    %1974 = vmatprep.subr.bf16.mxu0 0
    %1975 = vmatpush1.bf16.msra.mxu0 %v1269
    %1976 = vmatprep.subr.bf16.mxu0 0
    %1977 = vmatpush1.bf16.msra.mxu0 %v1266
    %1978 = vmatprep.subr.bf16.mxu0 0
    %1979 = vmatpush1.bf16.msra.mxu0 %v1263
    %1980 = vmatprep.subr.bf16.mxu0 0
    %1981 = vmatpush1.bf16.msra.mxu0 %v1260
    %1982 = vmatprep.subr.bf16.mxu0 0
    %1983 = vmatpush1.bf16.msra.mxu0 %v1257
    %1984 = vmatprep.subr.bf16.mxu0 0
    %1985 = vmatpush2.bf16.msra.mxu0 0
    %1986 = vmatprep.subr.bf16.mxu0 0
    %1987 = vmatpush2.bf16.msra.mxu0 0
    %1988 = vmatprep.subr.bf16.mxu0 0
    %1989 = vmatpush2.bf16.msra.mxu0 0
    %1990 = vmatprep.subr.bf16.mxu0 0
    %1991 = vmatpush2.bf16.msra.mxu0 0
    %1992 = vmatprep.subr.bf16.mxu0 0
    %1993 = vmatpush2.bf16.msra.mxu0 0
    %1994 = vmatprep.subr.bf16.mxu0 0
    %1995 = vmatpush2.bf16.msra.mxu0 0
    %1996 = vmatprep.subr.bf16.mxu0 0
    %1997 = vmatpush2.bf16.msra.mxu0 0
    %1998 = vmatprep.subr.bf16.mxu0 0
    %1999 = vmatpush2.bf16.msra.mxu0 0
    %2000 = vmatprep.mubr.bf16.mxu0 0
    %2001 = vmatmul.mubr.bf16.gmra.mxu0 %v1926
    %v2002 = vpop.f32.mrf.mxu0
    %v2003 = vadd.f32 0.0, %v2002
    %v2004 = vpop.f32.mrf.mxu0
    %v2005 = vpop.f32.mrf.mxu0
    %v2006 = vpop.f32.mrf.mxu0
    %2007 = vdwg.mxu0
    %v2008 = vadd.f32 %v1066, %v1962
    %v2009 = vxor.u32 %v2008, 2147483648
    %v2010 = vmul.f32 %v2009, 1.442695
    %v2011 = vpow.pop %v2010
    %v2012 = vadd.f32 %v2011, 1.0
    %v2013 = vrcp.pop %v2012
    %v2014 = vmul.f32 1.0, %v2013
    %v2015 = vadd.f32 %v1068, %v1964
    %v2016 = vxor.u32 %v2015, 2147483648
    %v2017 = vmul.f32 %v2016, 1.442695
    %v2018 = vpow.pop %v2017
    %v2019 = vadd.f32 %v2018, 1.0
    %v2020 = vrcp.pop %v2019
    %v2021 = vmul.f32 1.0, %v2020
    %v2022 = vadd.f32 %v2003, %v1173
    %v2023 = vmul.f32 %v2014, %v2022
    %v2024 = vadd.f32 %v1131, %v2023
    %v2025 = vtanh.pop %v2024
    %v2026 = vsub.f32 1.0, %v2021
    %v2027 = vmul.f32 %v2026, %v2025
    %v2028 = vmul.f32 %v2021, %v1925
    %v2029 = vadd.f32 %v2027, %v2028
    %v2030 = vpack.c.bf16 %v2029, %v2029
    %2031 = vmatprep.subr.bf16.mxu0 %v1277
    %2032 = vmatpush1.bf16.msra.mxu0 %v1276
    %2033 = vmatprep.subr.bf16.mxu0 %v1274
    %2034 = vmatpush1.bf16.msra.mxu0 %v1273
    %2035 = vmatprep.subr.bf16.mxu0 %v1271
    %2036 = vmatpush1.bf16.msra.mxu0 %v1270
    %2037 = vmatprep.subr.bf16.mxu0 %v1268
    %2038 = vmatpush1.bf16.msra.mxu0 %v1267
    %2039 = vmatprep.subr.bf16.mxu0 %v1265
    %2040 = vmatpush1.bf16.msra.mxu0 %v1264
    %2041 = vmatprep.subr.bf16.mxu0 %v1262
    %2042 = vmatpush1.bf16.msra.mxu0 %v1261
    %2043 = vmatprep.subr.bf16.mxu0 %v1259
    %2044 = vmatpush1.bf16.msra.mxu0 %v1258
    %2045 = vmatprep.subr.bf16.mxu0 %v1256
    %2046 = vmatpush1.bf16.msra.mxu0 %v1255
    %2047 = vmatprep.subr.bf16.mxu0 0
    %2048 = vmatpush2.bf16.msra.mxu0 0
    %2049 = vmatprep.subr.bf16.mxu0 0
    %2050 = vmatpush2.bf16.msra.mxu0 0
    %2051 = vmatprep.subr.bf16.mxu0 0
    %2052 = vmatpush2.bf16.msra.mxu0 0
    %2053 = vmatprep.subr.bf16.mxu0 0
    %2054 = vmatpush2.bf16.msra.mxu0 0
    %2055 = vmatprep.subr.bf16.mxu0 0
    %2056 = vmatpush2.bf16.msra.mxu0 0
    %2057 = vmatprep.subr.bf16.mxu0 0
    %2058 = vmatpush2.bf16.msra.mxu0 0
    %2059 = vmatprep.subr.bf16.mxu0 0
    %2060 = vmatpush2.bf16.msra.mxu0 0
    %2061 = vmatprep.subr.bf16.mxu0 0
    %2062 = vmatpush2.bf16.msra.mxu0 0
    %2063 = vmatprep.mubr.bf16.mxu0 0
    %2064 = vmatmul.mubr.bf16.gmra.mxu0 %v2030
    %v2065 = vpop.f32.mrf.mxu0
    %v2066 = vadd.f32 0.0, %v2065
    %v2067 = vpop.f32.mrf.mxu0
    %v2068 = vadd.f32 0.0, %v2067
    %v2069 = vpop.f32.mrf.mxu0
    %v2070 = vpop.f32.mrf.mxu0
    %2071 = vdwg.mxu0
    %2072 = vmatprep.subr.bf16.mxu0 0
    %2073 = vmatpush1.bf16.msra.mxu0 %v1278
    %2074 = vmatprep.subr.bf16.mxu0 0
    %2075 = vmatpush1.bf16.msra.mxu0 %v1275
    %2076 = vmatprep.subr.bf16.mxu0 0
    %2077 = vmatpush1.bf16.msra.mxu0 %v1272
    %2078 = vmatprep.subr.bf16.mxu0 0
    %2079 = vmatpush1.bf16.msra.mxu0 %v1269
    %2080 = vmatprep.subr.bf16.mxu0 0
    %2081 = vmatpush1.bf16.msra.mxu0 %v1266
    %2082 = vmatprep.subr.bf16.mxu0 0
    %2083 = vmatpush1.bf16.msra.mxu0 %v1263
    %2084 = vmatprep.subr.bf16.mxu0 0
    %2085 = vmatpush1.bf16.msra.mxu0 %v1260
    %2086 = vmatprep.subr.bf16.mxu0 0
    %2087 = vmatpush1.bf16.msra.mxu0 %v1257
    %2088 = vmatprep.subr.bf16.mxu0 0
    %2089 = vmatpush2.bf16.msra.mxu0 0
    %2090 = vmatprep.subr.bf16.mxu0 0
    %2091 = vmatpush2.bf16.msra.mxu0 0
    %2092 = vmatprep.subr.bf16.mxu0 0
    %2093 = vmatpush2.bf16.msra.mxu0 0
    %2094 = vmatprep.subr.bf16.mxu0 0
    %2095 = vmatpush2.bf16.msra.mxu0 0
    %2096 = vmatprep.subr.bf16.mxu0 0
    %2097 = vmatpush2.bf16.msra.mxu0 0
    %2098 = vmatprep.subr.bf16.mxu0 0
    %2099 = vmatpush2.bf16.msra.mxu0 0
    %2100 = vmatprep.subr.bf16.mxu0 0
    %2101 = vmatpush2.bf16.msra.mxu0 0
    %2102 = vmatprep.subr.bf16.mxu0 0
    %2103 = vmatpush2.bf16.msra.mxu0 0
    %2104 = vmatprep.mubr.bf16.mxu0 0
    %2105 = vmatmul.mubr.bf16.gmra.mxu0 %v2030
    %v2106 = vpop.f32.mrf.mxu0
    %v2107 = vadd.f32 0.0, %v2106
    %v2108 = vpop.f32.mrf.mxu0
    %v2109 = vpop.f32.mrf.mxu0
    %v2110 = vpop.f32.mrf.mxu0
    %2111 = vdwg.mxu0
    %v2112 = vadd.f32 %v673, %v2066
    %v2113 = vxor.u32 %v2112, 2147483648
    %v2114 = vmul.f32 %v2113, 1.442695
    %v2115 = vpow.pop %v2114
    %v2116 = vadd.f32 %v2115, 1.0
    %v2117 = vrcp.pop %v2116
    %v2118 = vmul.f32 1.0, %v2117
    %v2119 = vadd.f32 %v675, %v2068
    %v2120 = vxor.u32 %v2119, 2147483648
    %v2121 = vmul.f32 %v2120, 1.442695
    %v2122 = vpow.pop %v2121
    %v2123 = vadd.f32 %v2122, 1.0
    %v2124 = vrcp.pop %v2123
    %v2125 = vmul.f32 1.0, %v2124
    %v2126 = vadd.f32 %v2107, %v1173
    %v2127 = vmul.f32 %v2118, %v2126
    %v2128 = vadd.f32 %v714, %v2127
    %v2129 = vtanh.pop %v2128
    %v2130 = vsub.f32 1.0, %v2125
    %v2131 = vmul.f32 %v2130, %v2129
    %v2132 = vmul.f32 %v2125, %v2029
    %v2133 = vadd.f32 %v2131, %v2132
    %v2134 = vpack.c.bf16 %v2133, %v2133
    %v2135 = vld [vmem:[%s9] sm:$0xf]
    %v2136 = vld [vmem:[%s9 + $0x4] sm:$0xf]
    %v2137 = vld [vmem:[%s9 + $0x8] sm:$0xf]
    %v2138 = vld [vmem:[%s9 + $0xc] sm:$0xf]
    %v2139 = vld [vmem:[%s9 + $0x10] sm:$0xf]
    %v2140 = vld [vmem:[%s9 + $0x14] sm:$0xf]
    %v2141 = vld [vmem:[%s9 + $0x18] sm:$0xf]
    %v2142 = vld [vmem:[%s9 + $0x1c] sm:$0xf]
    %v2143 = vld [vmem:[%s9 + $0x20] sm:$0xf]
    %v2144 = vld [vmem:[%s9 + $0x24] sm:$0xf]
    %v2145 = vld [vmem:[%s9 + $0x28] sm:$0xf]
    %v2146 = vld [vmem:[%s9 + $0x2c] sm:$0xf]
    %v2147 = vld [vmem:[%s9 + $0x30] sm:$0xf]
    %v2148 = vld [vmem:[%s9 + $0x34] sm:$0xf]
    %v2149 = vld [vmem:[%s9 + $0x38] sm:$0xf]
    %v2150 = vld [vmem:[%s9 + $0x3c] sm:$0xf]
    %v2151 = vpack.c.bf16 %v784, %v784
    %v2152 = vld [vmem:[%s10] sm:$0xf]
    %v2153 = vld [vmem:[%s10 + $0x4] sm:$0xf]
    %v2154 = vld [vmem:[%s10 + $0x8] sm:$0xf]
    %v2155 = vld [vmem:[%s10 + $0xc] sm:$0xf]
    %v2156 = vld [vmem:[%s10 + $0x10] sm:$0xf]
    %v2157 = vld [vmem:[%s10 + $0x14] sm:$0xf]
    %v2158 = vld [vmem:[%s10 + $0x18] sm:$0xf]
    %v2159 = vld [vmem:[%s10 + $0x1c] sm:$0xf]
    %v2160 = vld [vmem:[%s10 + $0x20] sm:$0xf]
    %v2161 = vld [vmem:[%s10 + $0x24] sm:$0xf]
    %v2162 = vld [vmem:[%s10 + $0x28] sm:$0xf]
    %v2163 = vld [vmem:[%s10 + $0x2c] sm:$0xf]
    %v2164 = vld [vmem:[%s10 + $0x30] sm:$0xf]
    %v2165 = vld [vmem:[%s10 + $0x34] sm:$0xf]
    %v2166 = vld [vmem:[%s10 + $0x38] sm:$0xf]
    %v2167 = vld [vmem:[%s10 + $0x3c] sm:$0xf]
    %v2184 = vunpack.c.l.b16 %v2152
    %v2185 = vunpack.c.l.b16 %v2153
    %v2186 = vunpack.c.l.b16 %v2154
    %v2187 = vunpack.c.l.b16 %v2155
    %v2188 = vunpack.c.l.b16 %v2156
    %v2189 = vunpack.c.l.b16 %v2157
    %v2190 = vunpack.c.l.b16 %v2158
    %v2191 = vunpack.c.l.b16 %v2159
    %v2192 = vunpack.c.l.b16 %v2160
    %v2193 = vunpack.c.l.b16 %v2161
    %v2194 = vunpack.c.l.b16 %v2162
    %v2195 = vunpack.c.l.b16 %v2163
    %v2196 = vunpack.c.l.b16 %v2164
    %v2197 = vunpack.c.l.b16 %v2165
    %v2198 = vunpack.c.l.b16 %v2166
    %v2199 = vunpack.c.l.b16 %v2167
    %v2200 = vpack.c.b16 %v2185, %v2184
    %v2201 = vpack.c.b16 %v2187, %v2186
    %v2202 = vpack.c.b16 %v2189, %v2188
    %v2203 = vpack.c.b16 %v2191, %v2190
    %v2204 = vpack.c.b16 %v2193, %v2192
    %v2205 = vpack.c.b16 %v2195, %v2194
    %v2206 = vpack.c.b16 %v2197, %v2196
    %v2207 = vpack.c.b16 %v2199, %v2198
    %2216 = vmatprep.subr.bf16.mxu0 0
    %2217 = vmatpush1.bf16.msra.mxu0 %v2207
    %2218 = vmatprep.subr.bf16.mxu0 0
    %2219 = vmatpush1.bf16.msra.mxu0 %v2206
    %2220 = vmatprep.subr.bf16.mxu0 0
    %2221 = vmatpush1.bf16.msra.mxu0 %v2205
    %2222 = vmatprep.subr.bf16.mxu0 0
    %2223 = vmatpush1.bf16.msra.mxu0 %v2204
    %2224 = vmatprep.subr.bf16.mxu0 0
    %2225 = vmatpush1.bf16.msra.mxu0 %v2203
    %2226 = vmatprep.subr.bf16.mxu0 0
    %2227 = vmatpush1.bf16.msra.mxu0 %v2202
    %2228 = vmatprep.subr.bf16.mxu0 0
    %2229 = vmatpush1.bf16.msra.mxu0 %v2201
    %2230 = vmatprep.subr.bf16.mxu0 0
    %2231 = vmatpush1.bf16.msra.mxu0 %v2200
    %2232 = vmatprep.subr.bf16.mxu0 0
    %2233 = vmatpush2.bf16.msra.mxu0 0
    %2234 = vmatprep.subr.bf16.mxu0 0
    %2235 = vmatpush2.bf16.msra.mxu0 0
    %2236 = vmatprep.subr.bf16.mxu0 0
    %2237 = vmatpush2.bf16.msra.mxu0 0
    %2238 = vmatprep.subr.bf16.mxu0 0
    %2239 = vmatpush2.bf16.msra.mxu0 0
    %2240 = vmatprep.subr.bf16.mxu0 0
    %2241 = vmatpush2.bf16.msra.mxu0 0
    %2242 = vmatprep.subr.bf16.mxu0 0
    %2243 = vmatpush2.bf16.msra.mxu0 0
    %2244 = vmatprep.subr.bf16.mxu0 0
    %2245 = vmatpush2.bf16.msra.mxu0 0
    %2246 = vmatprep.subr.bf16.mxu0 0
    %2247 = vmatpush2.bf16.msra.mxu0 0
    %2248 = vmatprep.mubr.bf16.mxu0 0
    %2249 = vmatmul.mubr.bf16.gmra.mxu0 %v2151
    %v2250 = vpop.f32.mrf.mxu0
    %v2251 = vadd.f32 0.0, %v2250
    %v2252 = vpop.f32.mrf.mxu0
    %v2253 = vpop.f32.mrf.mxu0
    %v2254 = vpop.f32.mrf.mxu0
    %2255 = vdwg.mxu0
    %v2272 = vunpack.c.l.b16 %v2135
    %v2273 = vunpack.c.l.b16 %v2136
    %v2274 = vunpack.c.l.b16 %v2137
    %v2275 = vunpack.c.l.b16 %v2138
    %v2276 = vunpack.c.l.b16 %v2139
    %v2277 = vunpack.c.l.b16 %v2140
    %v2278 = vunpack.c.l.b16 %v2141
    %v2279 = vunpack.c.l.b16 %v2142
    %v2280 = vunpack.c.l.b16 %v2143
    %v2281 = vunpack.c.l.b16 %v2144
    %v2282 = vunpack.c.l.b16 %v2145
    %v2283 = vunpack.c.l.b16 %v2146
    %v2284 = vunpack.c.l.b16 %v2147
    %v2285 = vunpack.c.l.b16 %v2148
    %v2286 = vunpack.c.l.b16 %v2149
    %v2287 = vunpack.c.l.b16 %v2150
    %v2288 = vpack.c.b16 %v2273, %v2272
    %v2289 = vpack.c.b16 %v2275, %v2274
    %v2290 = vpack.c.b16 %v2277, %v2276
    %v2291 = vpack.c.b16 %v2279, %v2278
    %v2292 = vpack.c.b16 %v2281, %v2280
    %v2293 = vpack.c.b16 %v2283, %v2282
    %v2294 = vpack.c.b16 %v2285, %v2284
    %v2295 = vpack.c.b16 %v2287, %v2286
    %2304 = vmatprep.subr.bf16.mxu0 0
    %2305 = vmatpush1.bf16.msra.mxu0 %v2295
    %2306 = vmatprep.subr.bf16.mxu0 0
    %2307 = vmatpush1.bf16.msra.mxu0 %v2294
    %2308 = vmatprep.subr.bf16.mxu0 0
    %2309 = vmatpush1.bf16.msra.mxu0 %v2293
    %2310 = vmatprep.subr.bf16.mxu0 0
    %2311 = vmatpush1.bf16.msra.mxu0 %v2292
    %2312 = vmatprep.subr.bf16.mxu0 0
    %2313 = vmatpush1.bf16.msra.mxu0 %v2291
    %2314 = vmatprep.subr.bf16.mxu0 0
    %2315 = vmatpush1.bf16.msra.mxu0 %v2290
    %2316 = vmatprep.subr.bf16.mxu0 0
    %2317 = vmatpush1.bf16.msra.mxu0 %v2289
    %2318 = vmatprep.subr.bf16.mxu0 0
    %2319 = vmatpush1.bf16.msra.mxu0 %v2288
    %2320 = vmatprep.subr.bf16.mxu0 0
    %2321 = vmatpush2.bf16.msra.mxu0 0
    %2322 = vmatprep.subr.bf16.mxu0 0
    %2323 = vmatpush2.bf16.msra.mxu0 0
    %2324 = vmatprep.subr.bf16.mxu0 0
    %2325 = vmatpush2.bf16.msra.mxu0 0
    %2326 = vmatprep.subr.bf16.mxu0 0
    %2327 = vmatpush2.bf16.msra.mxu0 0
    %2328 = vmatprep.subr.bf16.mxu0 0
    %2329 = vmatpush2.bf16.msra.mxu0 0
    %2330 = vmatprep.subr.bf16.mxu0 0
    %2331 = vmatpush2.bf16.msra.mxu0 0
    %2332 = vmatprep.subr.bf16.mxu0 0
    %2333 = vmatpush2.bf16.msra.mxu0 0
    %2334 = vmatprep.subr.bf16.mxu0 0
    %2335 = vmatpush2.bf16.msra.mxu0 0
    %2336 = vmatprep.mubr.bf16.mxu0 0
    %2337 = vmatmul.mubr.bf16.gmra.mxu0 %v2134
    %v2338 = vpop.f32.mrf.mxu0
    %v2339 = vadd.f32 %v2251, %v2338
    %v2340 = vpop.f32.mrf.mxu0
    %v2341 = vpop.f32.mrf.mxu0
    %v2342 = vpop.f32.mrf.mxu0
    %2343 = vdwg.mxu0
    %v2344 = vld [vmem:[#allocation7] sm:$0x1]
    %v2346 = vlaneseq
    %v2347 = vshrl.u32 %v2346, 7
    %v2348 = vsub.s32 0, %v2347
    %v2349 = vrot.slane %v2344, %v2348
    %v2351 = vadd.f32 %v2339, %v2349
    %vm2352 = vcmask 64512
    %2353 = vst.msk [vmem:[%s12] sm:$0xff] %vm2352, %v2351
    // Predicated region
    $region118: #{trans_forward.1} parent=1 // pred_check
      _
    $region119: #{trans_forward.1} parent=1 // pred_check_branch
      %2355 = sbr.rel (0) target = $region121
    $region120: #{trans_forward.1} parent=1 // pred_region
      _
    $region121: #{trans_forward.1} parent=1 // pred_fallthru
      _
    // Predicated region
    $region122: #{trans_forward.1} parent=1 // pred_check
      _
    $region123: #{trans_forward.1} parent=1 // pred_check_branch
      %2357 = sbr.rel (0) target = $region125
    $region124: #{trans_forward.1} parent=1 // pred_region
      _
    $region125: #{trans_forward.1} parent=1 // pred_fallthru
      _
    %2358 = vsyncpa [#allocation5], 1
    %2359 = vsyncpa [#allocation6], 1
  %2360 = vsyncmov [#allocation3]
  %s2361 = vpop.sfrf %2360
  %p2362 = scmp.eq.s32.totalorder %s2361, 0
  %p2363 = pneg %p2362
  %2365 = shalt.err (%p2363)
  %s2366 = scalar_lea.sflag [#allocation3], 1
  %2367 = vsyncmov %s2366
  %s2368 = vpop.sfrf %2367
  %p2369 = scmp.eq.s32.totalorder %s2368, 0
  %p2370 = pneg %p2369
  %2372 = shalt.err (%p2370)

</llo_original>
